<compile_context>
chip_gen: v6e
topology: v6e:2x2x1
jax: 0.10.0
libtpu: 0.0.40
codegen_flags: <defaults>
</compile_context>

<pallas_src>
import functools

import jax
import jax.numpy as jnp
from jax.experimental import pallas as pl
from jax.experimental.pallas import tpu as pltpu


def _gelu(x):
    # TODO(synk): PyTorch nn.GELU default is the exact erf form; the tanh
    # approximation is used here for robust TPU (EUP) lowering (~1e-3 level
    # difference vs the PyTorch module; the in-file reference matches it).
    return jax.nn.gelu(x, approximate=True)


def tokeniser_pool_kernel(edge_feat_ref, tgt_ref, w1_ref, b1_ref, w2_ref,
                          b2_ref, gamma_ref, beta_ref, out_ref, *, d_model):
    """One edge tile: pooling MLP + scatter-max into the resident accumulator."""
    e = pl.program_id(0)

    # Init the max-accumulator on the first edge tile.
    @pl.when(e == 0)
    def _():
        out_ref[...] = jnp.full(out_ref.shape, -jnp.inf, dtype=out_ref.dtype)

    # Pooling MLP: Linear -> GELU -> Linear -> LayerNorm -> GELU on one big,
    # lane-dense edge tile; matmuls accumulate in f32 on the MXU.
    h = jnp.dot(edge_feat_ref[...], w1_ref[...],
                preferred_element_type=jnp.float32) + b1_ref[...]
    h = _gelu(h)
    h = jnp.dot(h, w2_ref[...], preferred_element_type=jnp.float32) + b2_ref[...]

    # LayerNorm over the real d_model lanes only. Lanes >= d_model hold exact
    # zeros (w2/b2 zero-padded) and gamma/beta are zero there, so the padded
    # lanes stay exactly 0 after the affine + GELU.
    inv_d = jnp.float32(1.0 / d_model)
    lane = jax.lax.broadcasted_iota(jnp.int32, h.shape, 1)
    valid = lane < d_model
    mu = jnp.sum(h, axis=-1, keepdims=True) * inv_d           # pad lanes are 0
    centered = jnp.where(valid, h - mu, 0.0)
    var = jnp.sum(centered * centered, axis=-1, keepdims=True) * inv_d
    h = centered * jax.lax.rsqrt(var + 1e-5) * gamma_ref[...] + beta_ref[...]
    h = _gelu(h)                                              # (TE, D_pad)

    # Scatter-max aggregation (aggr='max'). Each target's candidate row is a
    # full-width (TE, D_pad) select + one sublane reduce; the candidates are
    # concatenated and the resident accumulator is updated with a SINGLE
    # unmasked full-block maximum (no per-row masked stores). Padded edges
    # carry target -1 and never match, so they are ignored by construction.
    # TODO(synk): for production-scale num_pooled, sort edges by target in the
    # wrapper and use PrefetchScalarGridSpec offsets so each grid step owns its
    # output rows outright (removes the cross-grid accumulator entirely).
    tgt = tgt_ref[...]                                        # (TE, 1) int32
    rows = []
    for m in range(out_ref.shape[0]):                         # small static unroll
        sel = tgt == m                                        # (TE, 1)
        rows.append(jnp.max(jnp.where(sel, h, -jnp.inf), axis=0, keepdims=True))
    contrib = jnp.concatenate(rows, axis=0)                   # (M_pad, D_pad)
    out_ref[...] = jnp.maximum(out_ref[...], contrib)

    # torch_geometric scatter 'max' convention: empty targets -> 0.
    @pl.when(e == pl.num_programs(0) - 1)
    def _():
        o = out_ref[...]
        out_ref[...] = jnp.where(o == -jnp.inf, 0.0, o)


def tokeniser_forward(params, x, pos, pool_source, pool_target,
                      sampling_index, num_pooled, *, edge_tile=256):
    """Pallas implementation of Tokeniser.forward (the `pool` path).

    edge_tile must be a multiple of 8 (256-1024 recommended).
    """
    # --- JAX glue: gathers + concat (pure indexing) ---
    pos_pooled = pos[sampling_index]                                  # (M, 3)
    edge_feat = jnp.concatenate(
        [x[pool_source], pos[pool_source] - pos_pooled[pool_target]],
        axis=-1).astype(jnp.float32)                                  # (E, C_in+3)

    num_edges, feat = edge_feat.shape
    d_model = params['w2'].shape[1]

    # Pad the contraction dim (C_in+3 = 7) to a sublane multiple of 8.
    k_pad = (-feat) % 8
    k_tot = feat + k_pad
    edge_feat = jnp.pad(edge_feat, ((0, 0), (0, k_pad)))
    w1 = jnp.pad(params['w1'].astype(jnp.float32), ((0, k_pad), (0, 0)))
    b1 = params['b1'].astype(jnp.float32)

    # Pad d_model to a lane multiple of 128 -> all kernel stores are unmasked.
    d_tot = ((d_model + 127) // 128) * 128
    d_extra = d_tot - d_model
    w2 = jnp.pad(params['w2'].astype(jnp.float32), ((0, 0), (0, d_extra)))
    b2 = jnp.pad(params['b2'].astype(jnp.float32), ((0, 0), (0, d_extra)))
    gamma = jnp.pad(params['gamma'].astype(jnp.float32), ((0, 0), (0, d_extra)))
    beta = jnp.pad(params['beta'].astype(jnp.float32), ((0, 0), (0, d_extra)))

    # Pad the pooled-node (output row) dim to a sublane multiple of 8.
    m_tot = ((num_pooled + 7) // 8) * 8

    # Ragged E: pad the edge axis to a multiple of edge_tile with sentinel
    # target -1 (never matches a pooled node, so it is ignored by the max).
    e_pad = (-num_edges) % edge_tile
    edge_feat = jnp.pad(edge_feat, ((0, e_pad), (0, 0)))
    tgt = jnp.pad(pool_target.astype(jnp.int32), (0, e_pad),
                  constant_values=-1)[:, None]                        # (E_pad, 1)
    num_tiles = (num_edges + e_pad) // edge_tile

    def full_spec(a):
        return pl.BlockSpec(a.shape, lambda e, _nd=a.ndim: (0,) * _nd)

    kernel = functools.partial(tokeniser_pool_kernel, d_model=d_model)

    out = pl.pallas_call(
        kernel,
        out_shape=jax.ShapeDtypeStruct((m_tot, d_tot), jnp.float32),
        grid=(num_tiles,),
        in_specs=[
            pl.BlockSpec((edge_tile, k_tot), lambda e: (e, 0)),   # edge features
            pl.BlockSpec((edge_tile, 1), lambda e: (e, 0)),       # edge targets
            full_spec(w1), full_spec(b1), full_spec(w2), full_spec(b2),
            full_spec(gamma), full_spec(beta),
        ],
        out_specs=pl.BlockSpec((m_tot, d_tot), lambda e: (0, 0)),
        compiler_params=pltpu.CompilerParams(
            dimension_semantics=("arbitrary",)),   # edge axis is a reduction
    )(edge_feat, tgt, w1, b1, w2, b2, gamma, beta)

    return out[:num_pooled, :d_model], pos_pooled


def tokeniser_reference(params, x, pos, pool_source, pool_target,
                        sampling_index, num_pooled):
    """Pure-JAX reference of the same forward pass."""
    pos_pooled = pos[sampling_index]
    ef = jnp.concatenate(
        [x[pool_source], pos[pool_source] - pos_pooled[pool_target]], axis=-1)
    h = _gelu(ef @ params['w1'] + params['b1'])
    h = h @ params['w2'] + params['b2']
    mu = h.mean(-1, keepdims=True)
    var = ((h - mu) ** 2).mean(-1, keepdims=True)
    h = (h - mu) * jax.lax.rsqrt(var + 1e-5) * params['gamma'] + params['beta']
    h = _gelu(h)
    out = jnp.full((num_pooled, h.shape[-1]), -jnp.inf,
                   jnp.float32).at[pool_target].max(h)
    return jnp.where(out == -jnp.inf, 0.0, out), pos_pooled


if __name__ == "__main__":
    # Small, module-consistent shapes.
    N = 64            # input points
    C_IN = 4          # num_input_channels
    M = 8             # pooled points (scale0_sampling_index size)
    E = 200           # pooling edges (deliberately ragged vs the tile size)
    L = 16            # num_latent_channels
    D_MODEL = 32      # d_model

    key = jax.random.PRNGKey(0)
    kx, kp, kw1, kb1, kw2, kb2, kg, kbt, ks, kt = jax.random.split(key, 10)

    x = jax.random.normal(kx, (N, C_IN), jnp.float32)
    pos = jax.random.normal(kp, (N, 3), jnp.float32)
    sampling_index = jnp.arange(0, N, N // M, dtype=jnp.int32)          # (M,)
    pool_source = jax.random.randint(ks, (E,), 0, N, dtype=jnp.int32)   # (E,)
    pool_target = jax.random.randint(kt, (E,), 0, M, dtype=jnp.int32)   # (E,)

    # Deterministic parameter init for the pooling MLP (C_IN+3 -> L -> D_MODEL).
    params = {
        'w1': 0.2 * jax.random.normal(kw1, (C_IN + 3, L), jnp.float32),
        'b1': 0.1 * jax.random.normal(kb1, (1, L), jnp.float32),
        'w2': 0.2 * jax.random.normal(kw2, (L, D_MODEL), jnp.float32),
        'b2': 0.1 * jax.random.normal(kb2, (1, D_MODEL), jnp.float32),
        'gamma': 1.0 + 0.1 * jax.random.normal(kg, (1, D_MODEL), jnp.float32),
        'beta': 0.1 * jax.random.normal(kbt, (1, D_MODEL), jnp.float32),
    }
    # NOTE: self.mlp (used only in Tokeniser.lift / extract_class, not in
    # forward) is not needed for the forward pass and is not materialised here.

    ref, ref_pos = tokeniser_reference(params, x, pos, pool_source,
                                       pool_target, sampling_index, M)

    # Default big tile (edge_tile=256): all edges in one grid step.
    out, pos_pooled = tokeniser_forward(params, x, pos, pool_source,
                                        pool_target, sampling_index, M)
    out = jax.block_until_ready(out)
    assert out.shape == (M, D_MODEL)
    assert jnp.allclose(out, ref, rtol=1e-4, atol=1e-5), "mismatch (1 tile)"
    assert jnp.allclose(pos_pooled, ref_pos)

    # Multi-tile path: 4 edge tiles, ragged tail padded with sentinel targets.
    out2, _ = tokeniser_forward(params, x, pos, pool_source, pool_target,
                                sampling_index, M, edge_tile=64)
    out2 = jax.block_until_ready(out2)
    assert jnp.allclose(out2, ref, rtol=1e-4, atol=1e-5), "mismatch (4 tiles)"

    print("KERNEL_OK")
</pallas_src>

<mosaic_0001>
module attributes {stable_mosaic.version = 11 : i64} {
  func.func @tokeniser_pool_kernel(%arg0: i32, %arg1: memref<256x8xf32, #tpu.memory_space<vmem>>, %arg2: memref<256x1xi32, #tpu.memory_space<vmem>>, %arg3: memref<8x16xf32, #tpu.memory_space<vmem>>, %arg4: memref<1x16xf32, #tpu.memory_space<vmem>>, %arg5: memref<16x128xf32, #tpu.memory_space<vmem>>, %arg6: memref<1x128xf32, #tpu.memory_space<vmem>>, %arg7: memref<1x128xf32, #tpu.memory_space<vmem>>, %arg8: memref<1x128xf32, #tpu.memory_space<vmem>>, %arg9: memref<8x128xf32, #tpu.memory_space<vmem>>) attributes {dimension_semantics = [#tpu.dimension_semantics<arbitrary>], iteration_bounds = array<i64: 1>, scalar_prefetch = 0 : i64, scratch_operands = 0 : i64, tpu.core_type = #tpu.core_type<tc>, window_params = [{transform_indices = @transform_0, window_bounds = array<i64: 256, 8>}, {transform_indices = @transform_1, window_bounds = array<i64: 256, 1>}, {pipeline_mode = #tpu.pipeline_mode<synchronous>, transform_indices = @transform_2, window_bounds = array<i64: 8, 16>}, {pipeline_mode = #tpu.pipeline_mode<synchronous>, transform_indices = @transform_3, window_bounds = array<i64: 1, 16>}, {pipeline_mode = #tpu.pipeline_mode<synchronous>, transform_indices = @transform_4, window_bounds = array<i64: 16, 128>}, {pipeline_mode = #tpu.pipeline_mode<synchronous>, transform_indices = @transform_5, window_bounds = array<i64: 1, 128>}, {pipeline_mode = #tpu.pipeline_mode<synchronous>, transform_indices = @transform_6, window_bounds = array<i64: 1, 128>}, {pipeline_mode = #tpu.pipeline_mode<synchronous>, transform_indices = @transform_7, window_bounds = array<i64: 1, 128>}, {pipeline_mode = #tpu.pipeline_mode<synchronous>, transform_indices = @transform_8, window_bounds = array<i64: 8, 128>}]} {
    %c0_i32 = arith.constant 0 : i32
    %0 = arith.cmpi eq, %arg0, %c0_i32 : i32
    %1 = arith.extui %0 : i1 to i32
    %c0_i32_0 = arith.constant 0 : i32
    %2 = arith.cmpi ne, %1, %c0_i32_0 : i32
    scf.if %2 {
      %cst_54 = arith.constant 0xFF800000 : f32
      %139 = vector.broadcast %cst_54 : f32 to vector<8x128xf32>
      %c0_55 = arith.constant 0 : index
      %c0_56 = arith.constant 0 : index
      %140 = vector.load %arg9[%c0_55, %c0_56] : memref<8x128xf32, #tpu.memory_space<vmem>>, vector<8x128xf32>
      tpu.vector_store %arg9[%c0_55, %c0_56], %139 {strides = array<i32>} : memref<8x128xf32, #tpu.memory_space<vmem>>, vector<8x128xf32>,
    } else {
    }
    %c0 = arith.constant 0 : index
    %c0_1 = arith.constant 0 : index
    %3 = vector.load %arg1[%c0, %c0_1] : memref<256x8xf32, #tpu.memory_space<vmem>>, vector<256x8xf32>
    %c0_2 = arith.constant 0 : index
    %c0_3 = arith.constant 0 : index
    %4 = vector.load %arg3[%c0_2, %c0_3] : memref<8x16xf32, #tpu.memory_space<vmem>>, vector<8x16xf32>
    %cst = arith.constant dense<0.000000e+00> : vector<256x16xf32>
    %5 = tpu.matmul %3, %4, %cst {dimension_numbers = #tpu.dot_dimension_numbers<[1], [0], [0], [1], [0, 0, 1, 1], [], []>} : vector<256x8xf32>, vector<8x16xf32>, vector<256x16xf32> -> vector<256x16xf32>
    %c0_4 = arith.constant 0 : index
    %c0_5 = arith.constant 0 : index
    %6 = vector.load %arg4[%c0_4, %c0_5] : memref<1x16xf32, #tpu.memory_space<vmem>>, vector<1x16xf32>
    %7 = vector.broadcast %6 : vector<1x16xf32> to vector<256x16xf32>
    %8 = arith.addf %5, %7 : vector<256x16xf32>
    %9 = arith.mulf %8, %8 : vector<256x16xf32>
    %10 = arith.mulf %8, %9 : vector<256x16xf32>
    %cst_6 = arith.constant 4.471500e-02 : f32
    %11 = vector.broadcast %cst_6 : f32 to vector<256x16xf32>
    %12 = arith.mulf %11, %10 : vector<256x16xf32>
    %13 = arith.addf %8, %12 : vector<256x16xf32>
    %cst_7 = arith.constant 0.797884583 : f32
    %14 = vector.broadcast %cst_7 : f32 to vector<256x16xf32>
    %15 = arith.mulf %14, %13 : vector<256x16xf32>
    %16 = math.tanh %15 : vector<256x16xf32>
    %cst_8 = arith.constant 1.000000e+00 : f32
    %17 = vector.broadcast %cst_8 : f32 to vector<256x16xf32>
    %18 = arith.addf %17, %16 : vector<256x16xf32>
    %cst_9 = arith.constant 5.000000e-01 : f32
    %19 = vector.broadcast %cst_9 : f32 to vector<256x16xf32>
    %20 = arith.mulf %19, %18 : vector<256x16xf32>
    %21 = arith.mulf %8, %20 : vector<256x16xf32>
    %c0_10 = arith.constant 0 : index
    %c0_11 = arith.constant 0 : index
    %22 = vector.load %arg5[%c0_10, %c0_11] : memref<16x128xf32, #tpu.memory_space<vmem>>, vector<16x128xf32>
    %cst_12 = arith.constant dense<0.000000e+00> : vector<256x128xf32>
    %23 = tpu.matmul %21, %22, %cst_12 {dimension_numbers = #tpu.dot_dimension_numbers<[1], [0], [0], [1], [0, 0, 1, 1], [], []>} : vector<256x16xf32>, vector<16x128xf32>, vector<256x128xf32> -> vector<256x128xf32>
    %c0_13 = arith.constant 0 : index
    %c0_14 = arith.constant 0 : index
    %24 = vector.load %arg6[%c0_13, %c0_14] : memref<1x128xf32, #tpu.memory_space<vmem>>, vector<1x128xf32>
    %25 = vector.broadcast %24 : vector<1x128xf32> to vector<256x128xf32>
    %26 = arith.addf %23, %25 : vector<256x128xf32>
    %27 = tpu.iota {dimensions = array<i32: 1>} : vector<256x128xi32>
    %c32_i32 = arith.constant 32 : i32
    %28 = vector.broadcast %c32_i32 : i32 to vector<256x128xi32>
    %29 = arith.cmpi slt, %27, %28 : vector<256x128xi32>
    %cst_15 = arith.constant dense<0.000000e+00> : vector<256xf32>
    %30 = vector.multi_reduction <add>, %26, %cst_15 [1] : vector<256x128xf32> to vector<256xf32>
    %31 = vector.shape_cast %30 : vector<256xf32> to vector<256x1xf32>
    %cst_16 = arith.constant 3.125000e-02 : f32
    %32 = vector.broadcast %cst_16 : f32 to vector<256x1xf32>
    %33 = arith.mulf %31, %32 : vector<256x1xf32>
    %34 = vector.broadcast %33 : vector<256x1xf32> to vector<256x128xf32>
    %35 = arith.subf %26, %34 : vector<256x128xf32>
    %cst_17 = arith.constant 0.000000e+00 : f32
    %36 = vector.broadcast %cst_17 : f32 to vector<256x128xf32>
    %37 = arith.select %29, %35, %36 : vector<256x128xi1>, vector<256x128xf32>
    %38 = arith.mulf %37, %37 : vector<256x128xf32>
    %cst_18 = arith.constant dense<0.000000e+00> : vector<256xf32>
    %39 = vector.multi_reduction <add>, %38, %cst_18 [1] : vector<256x128xf32> to vector<256xf32>
    %40 = vector.shape_cast %39 : vector<256xf32> to vector<256x1xf32>
    %cst_19 = arith.constant 3.125000e-02 : f32
    %41 = vector.broadcast %cst_19 : f32 to vector<256x1xf32>
    %42 = arith.mulf %40, %41 : vector<256x1xf32>
    %cst_20 = arith.constant 9.99999974E-6 : f32
    %43 = vector.broadcast %cst_20 : f32 to vector<256x1xf32>
    %44 = arith.addf %42, %43 : vector<256x1xf32>
    %45 = math.rsqrt %44 : vector<256x1xf32>
    %46 = vector.broadcast %45 : vector<256x1xf32> to vector<256x128xf32>
    %47 = arith.mulf %37, %46 : vector<256x128xf32>
    %c0_21 = arith.constant 0 : index
    %c0_22 = arith.constant 0 : index
    %48 = vector.load %arg7[%c0_21, %c0_22] : memref<1x128xf32, #tpu.memory_space<vmem>>, vector<1x128xf32>
    %49 = vector.broadcast %48 : vector<1x128xf32> to vector<256x128xf32>
    %50 = arith.mulf %47, %49 : vector<256x128xf32>
    %c0_23 = arith.constant 0 : index
    %c0_24 = arith.constant 0 : index
    %51 = vector.load %arg8[%c0_23, %c0_24] : memref<1x128xf32, #tpu.memory_space<vmem>>, vector<1x128xf32>
    %52 = vector.broadcast %51 : vector<1x128xf32> to vector<256x128xf32>
    %53 = arith.addf %50, %52 : vector<256x128xf32>
    %54 = arith.mulf %53, %53 : vector<256x128xf32>
    %55 = arith.mulf %53, %54 : vector<256x128xf32>
    %cst_25 = arith.constant 4.471500e-02 : f32
    %56 = vector.broadcast %cst_25 : f32 to vector<256x128xf32>
    %57 = arith.mulf %56, %55 : vector<256x128xf32>
    %58 = arith.addf %53, %57 : vector<256x128xf32>
    %cst_26 = arith.constant 0.797884583 : f32
    %59 = vector.broadcast %cst_26 : f32 to vector<256x128xf32>
    %60 = arith.mulf %59, %58 : vector<256x128xf32>
    %61 = math.tanh %60 : vector<256x128xf32>
    %cst_27 = arith.constant 1.000000e+00 : f32
    %62 = vector.broadcast %cst_27 : f32 to vector<256x128xf32>
    %63 = arith.addf %62, %61 : vector<256x128xf32>
    %cst_28 = arith.constant 5.000000e-01 : f32
    %64 = vector.broadcast %cst_28 : f32 to vector<256x128xf32>
    %65 = arith.mulf %64, %63 : vector<256x128xf32>
    %66 = arith.mulf %53, %65 : vector<256x128xf32>
    %c0_29 = arith.constant 0 : index
    %c0_30 = arith.constant 0 : index
    %67 = vector.load %arg2[%c0_29, %c0_30] : memref<256x1xi32, #tpu.memory_space<vmem>>, vector<256x1xi32>
    %c0_i32_31 = arith.constant 0 : i32
    %68 = vector.broadcast %c0_i32_31 : i32 to vector<256x1xi32>
    %69 = arith.cmpi eq, %67, %68 : vector<256x1xi32>
    %cst_32 = arith.constant 0xFF800000 : f32
    %70 = vector.shape_cast %69 : vector<256x1xi1> to vector<256x1xi1>
    %71 = vector.broadcast %70 : vector<256x1xi1> to vector<256x128xi1>
    %72 = vector.broadcast %cst_32 : f32 to vector<256x128xf32>
    %73 = arith.select %71, %66, %72 : vector<256x128xi1>, vector<256x128xf32>
    %cst_33 = arith.constant dense<0xFF800000> : vector<128xf32>
    %74 = vector.multi_reduction <maximumf>, %73, %cst_33 [0] : vector<256x128xf32> to vector<128xf32>
    %75 = vector.shape_cast %74 : vector<128xf32> to vector<1x128xf32>
    %c1_i32 = arith.constant 1 : i32
    %76 = vector.broadcast %c1_i32 : i32 to vector<256x1xi32>
    %77 = arith.cmpi eq, %67, %76 : vector<256x1xi32>
    %cst_34 = arith.constant 0xFF800000 : f32
    %78 = vector.shape_cast %77 : vector<256x1xi1> to vector<256x1xi1>
    %79 = vector.broadcast %78 : vector<256x1xi1> to vector<256x128xi1>
    %80 = vector.broadcast %cst_34 : f32 to vector<256x128xf32>
    %81 = arith.select %79, %66, %80 : vector<256x128xi1>, vector<256x128xf32>
    %cst_35 = arith.constant dense<0xFF800000> : vector<128xf32>
    %82 = vector.multi_reduction <maximumf>, %81, %cst_35 [0] : vector<256x128xf32> to vector<128xf32>
    %83 = vector.shape_cast %82 : vector<128xf32> to vector<1x128xf32>
    %c2_i32 = arith.constant 2 : i32
    %84 = vector.broadcast %c2_i32 : i32 to vector<256x1xi32>
    %85 = arith.cmpi eq, %67, %84 : vector<256x1xi32>
    %cst_36 = arith.constant 0xFF800000 : f32
    %86 = vector.shape_cast %85 : vector<256x1xi1> to vector<256x1xi1>
    %87 = vector.broadcast %86 : vector<256x1xi1> to vector<256x128xi1>
    %88 = vector.broadcast %cst_36 : f32 to vector<256x128xf32>
    %89 = arith.select %87, %66, %88 : vector<256x128xi1>, vector<256x128xf32>
    %cst_37 = arith.constant dense<0xFF800000> : vector<128xf32>
    %90 = vector.multi_reduction <maximumf>, %89, %cst_37 [0] : vector<256x128xf32> to vector<128xf32>
    %91 = vector.shape_cast %90 : vector<128xf32> to vector<1x128xf32>
    %c3_i32 = arith.constant 3 : i32
    %92 = vector.broadcast %c3_i32 : i32 to vector<256x1xi32>
    %93 = arith.cmpi eq, %67, %92 : vector<256x1xi32>
    %cst_38 = arith.constant 0xFF800000 : f32
    %94 = vector.shape_cast %93 : vector<256x1xi1> to vector<256x1xi1>
    %95 = vector.broadcast %94 : vector<256x1xi1> to vector<256x128xi1>
    %96 = vector.broadcast %cst_38 : f32 to vector<256x128xf32>
    %97 = arith.select %95, %66, %96 : vector<256x128xi1>, vector<256x128xf32>
    %cst_39 = arith.constant dense<0xFF800000> : vector<128xf32>
    %98 = vector.multi_reduction <maximumf>, %97, %cst_39 [0] : vector<256x128xf32> to vector<128xf32>
    %99 = vector.shape_cast %98 : vector<128xf32> to vector<1x128xf32>
    %c4_i32 = arith.constant 4 : i32
    %100 = vector.broadcast %c4_i32 : i32 to vector<256x1xi32>
    %101 = arith.cmpi eq, %67, %100 : vector<256x1xi32>
    %cst_40 = arith.constant 0xFF800000 : f32
    %102 = vector.shape_cast %101 : vector<256x1xi1> to vector<256x1xi1>
    %103 = vector.broadcast %102 : vector<256x1xi1> to vector<256x128xi1>
    %104 = vector.broadcast %cst_40 : f32 to vector<256x128xf32>
    %105 = arith.select %103, %66, %104 : vector<256x128xi1>, vector<256x128xf32>
    %cst_41 = arith.constant dense<0xFF800000> : vector<128xf32>
    %106 = vector.multi_reduction <maximumf>, %105, %cst_41 [0] : vector<256x128xf32> to vector<128xf32>
    %107 = vector.shape_cast %106 : vector<128xf32> to vector<1x128xf32>
    %c5_i32 = arith.constant 5 : i32
    %108 = vector.broadcast %c5_i32 : i32 to vector<256x1xi32>
    %109 = arith.cmpi eq, %67, %108 : vector<256x1xi32>
    %cst_42 = arith.constant 0xFF800000 : f32
    %110 = vector.shape_cast %109 : vector<256x1xi1> to vector<256x1xi1>
    %111 = vector.broadcast %110 : vector<256x1xi1> to vector<256x128xi1>
    %112 = vector.broadcast %cst_42 : f32 to vector<256x128xf32>
    %113 = arith.select %111, %66, %112 : vector<256x128xi1>, vector<256x128xf32>
    %cst_43 = arith.constant dense<0xFF800000> : vector<128xf32>
    %114 = vector.multi_reduction <maximumf>, %113, %cst_43 [0] : vector<256x128xf32> to vector<128xf32>
    %115 = vector.shape_cast %114 : vector<128xf32> to vector<1x128xf32>
    %c6_i32 = arith.constant 6 : i32
    %116 = vector.broadcast %c6_i32 : i32 to vector<256x1xi32>
    %117 = arith.cmpi eq, %67, %116 : vector<256x1xi32>
    %cst_44 = arith.constant 0xFF800000 : f32
    %118 = vector.shape_cast %117 : vector<256x1xi1> to vector<256x1xi1>
    %119 = vector.broadcast %118 : vector<256x1xi1> to vector<256x128xi1>
    %120 = vector.broadcast %cst_44 : f32 to vector<256x128xf32>
    %121 = arith.select %119, %66, %120 : vector<256x128xi1>, vector<256x128xf32>
    %cst_45 = arith.constant dense<0xFF800000> : vector<128xf32>
    %122 = vector.multi_reduction <maximumf>, %121, %cst_45 [0] : vector<256x128xf32> to vector<128xf32>
    %123 = vector.shape_cast %122 : vector<128xf32> to vector<1x128xf32>
    %c7_i32 = arith.constant 7 : i32
    %124 = vector.broadcast %c7_i32 : i32 to vector<256x1xi32>
    %125 = arith.cmpi eq, %67, %124 : vector<256x1xi32>
    %cst_46 = arith.constant 0xFF800000 : f32
    %126 = vector.shape_cast %125 : vector<256x1xi1> to vector<256x1xi1>
    %127 = vector.broadcast %126 : vector<256x1xi1> to vector<256x128xi1>
    %128 = vector.broadcast %cst_46 : f32 to vector<256x128xf32>
    %129 = arith.select %127, %66, %128 : vector<256x128xi1>, vector<256x128xf32>
    %cst_47 = arith.constant dense<0xFF800000> : vector<128xf32>
    %130 = vector.multi_reduction <maximumf>, %129, %cst_47 [0] : vector<256x128xf32> to vector<128xf32>
    %131 = vector.shape_cast %130 : vector<128xf32> to vector<1x128xf32>
    %132 = tpu.concatenate %75, %83, %91, %99, %107, %115, %123, %131 in 0 : vector<1x128xf32>, vector<1x128xf32>, vector<1x128xf32>, vector<1x128xf32>, vector<1x128xf32>, vector<1x128xf32>, vector<1x128xf32>, vector<1x128xf32> -> vector<8x128xf32>
    %c0_48 = arith.constant 0 : index
    %c0_49 = arith.constant 0 : index
    %133 = vector.load %arg9[%c0_48, %c0_49] : memref<8x128xf32, #tpu.memory_space<vmem>>, vector<8x128xf32>
    %134 = arith.maximumf %133, %132 : vector<8x128xf32>
    %c0_50 = arith.constant 0 : index
    %c0_51 = arith.constant 0 : index
    %135 = vector.load %arg9[%c0_50, %c0_51] : memref<8x128xf32, #tpu.memory_space<vmem>>, vector<8x128xf32>
    tpu.vector_store %arg9[%c0_50, %c0_51], %134 {strides = array<i32>} : memref<8x128xf32, #tpu.memory_space<vmem>>, vector<8x128xf32>,
    %c0_i32_52 = arith.constant 0 : i32
    %136 = arith.cmpi eq, %arg0, %c0_i32_52 : i32
    %137 = arith.extui %136 : i1 to i32
    %c0_i32_53 = arith.constant 0 : i32
    %138 = arith.cmpi ne, %137, %c0_i32_53 : i32
    scf.if %138 {
      %c0_54 = arith.constant 0 : index
      %c0_55 = arith.constant 0 : index
      %139 = vector.load %arg9[%c0_54, %c0_55] : memref<8x128xf32, #tpu.memory_space<vmem>>, vector<8x128xf32>
      %cst_56 = arith.constant 0xFF800000 : f32
      %140 = vector.broadcast %cst_56 : f32 to vector<8x128xf32>
      %141 = arith.cmpf oeq, %139, %140 : vector<8x128xf32>
      %cst_57 = arith.constant 0.000000e+00 : f32
      %142 = vector.broadcast %cst_57 : f32 to vector<8x128xf32>
      %143 = arith.select %141, %142, %139 : vector<8x128xi1>, vector<8x128xf32>
      %c0_58 = arith.constant 0 : index
      %c0_59 = arith.constant 0 : index
      %144 = vector.load %arg9[%c0_58, %c0_59] : memref<8x128xf32, #tpu.memory_space<vmem>>, vector<8x128xf32>
      tpu.vector_store %arg9[%c0_58, %c0_59], %143 {strides = array<i32>} : memref<8x128xf32, #tpu.memory_space<vmem>>, vector<8x128xf32>,
    } else {
    }
    return
  }
  func.func @transform_0(%arg0: i32) -> (i32, i32) {
    %c0_i32 = arith.constant 0 : i32
    %c0_i32_0 = arith.constant 0 : i32
    return %arg0, %c0_i32 : i32, i32
  }
  func.func @transform_1(%arg0: i32) -> (i32, i32) {
    %c0_i32 = arith.constant 0 : i32
    %c0_i32_0 = arith.constant 0 : i32
    return %arg0, %c0_i32 : i32, i32
  }
  func.func @transform_2(%arg0: i32) -> (i32, i32) {
    %c0_i32 = arith.constant 0 : i32
    %c0_i32_0 = arith.constant 0 : i32
    %c0_i32_1 = arith.constant 0 : i32
    return %c0_i32, %c0_i32_0 : i32, i32
  }
  func.func @transform_3(%arg0: i32) -> (i32, i32) {
    %c0_i32 = arith.constant 0 : i32
    %c0_i32_0 = arith.constant 0 : i32
    %c0_i32_1 = arith.constant 0 : i32
    return %c0_i32, %c0_i32_0 : i32, i32
  }
  func.func @transform_4(%arg0: i32) -> (i32, i32) {
    %c0_i32 = arith.constant 0 : i32
    %c0_i32_0 = arith.constant 0 : i32
    %c0_i32_1 = arith.constant 0 : i32
    return %c0_i32, %c0_i32_0 : i32, i32
  }
  func.func @transform_5(%arg0: i32) -> (i32, i32) {
    %c0_i32 = arith.constant 0 : i32
    %c0_i32_0 = arith.constant 0 : i32
    %c0_i32_1 = arith.constant 0 : i32
    return %c0_i32, %c0_i32_0 : i32, i32
  }
  func.func @transform_6(%arg0: i32) -> (i32, i32) {
    %c0_i32 = arith.constant 0 : i32
    %c0_i32_0 = arith.constant 0 : i32
    %c0_i32_1 = arith.constant 0 : i32
    return %c0_i32, %c0_i32_0 : i32, i32
  }
  func.func @transform_7(%arg0: i32) -> (i32, i32) {
    %c0_i32 = arith.constant 0 : i32
    %c0_i32_0 = arith.constant 0 : i32
    %c0_i32_1 = arith.constant 0 : i32
    return %c0_i32, %c0_i32_0 : i32, i32
  }
  func.func @transform_8(%arg0: i32) -> (i32, i32) {
    %c0_i32 = arith.constant 0 : i32
    %c0_i32_0 = arith.constant 0 : i32
    %c0_i32_1 = arith.constant 0 : i32
    return %c0_i32, %c0_i32_0 : i32, i32
  }
}

</mosaic_0001>

<llo_original>
// kernel: tpu_custom_call.1
$region0: #{tpu_custom_call.1}
  #allocation0 [shape = 'u32[]', space=smem, size = 0x4, offset = 0x4, fixed_abs, tag = 'smem constant byte address 0x4 - core index']
  #allocation1 [shape = 'u32[144,128]{1,0:T(1,128)}', space=vmem, size = 0x12000, scoped, tag = 'internal scratch']
  %s0 = inlined_call_operand.vmem [shape: f32[256,8], index: 0, kind: input, shape index: {}]
  %s1 = inlined_call_operand.vmem [shape: s32[256,1], index: 1, kind: input, shape index: {}]
  %s2 = inlined_call_operand.vmem [shape: f32[8,16], index: 2, kind: input, shape index: {}]
  %s3 = inlined_call_operand.vmem [shape: f32[1,16], index: 3, kind: input, shape index: {}]
  %s4 = inlined_call_operand.vmem [shape: f32[16,128], index: 4, kind: input, shape index: {}]
  %s5 = inlined_call_operand.vmem [shape: f32[1,128], index: 5, kind: input, shape index: {}]
  %s6 = inlined_call_operand.vmem [shape: f32[1,128], index: 6, kind: input, shape index: {}]
  %s7 = inlined_call_operand.vmem [shape: f32[1,128], index: 7, kind: input, shape index: {}]
  %s8 = inlined_call_operand.hbm [shape: f32[8,128], index: 8, kind: output, shape index: {}]
  %s9 = sld [smem:[#allocation0]]
  $region50: #{tpu_custom_call.1} parent=0
    _
  %s11 = ssub.s32 1, %s9
  %s12 = scalar_select 0, %s11, %s9
  $region1: #{tpu_custom_call.1} parent=0
    #allocation2 [shape = 'u8[4096]{0}', space=vmem, size = 0x1000, scoped, tag = 'output window, operand 0, single buffered']
    #allocation3 [shape = 's32[1]{0}', space=sflag, size = 0x4, scoped, tag = 'scoped memory for tpu_custom_call.1']
    %13 = vsyncpa [#allocation3], 0
    // Predicated region
    $region2: #{tpu_custom_call.1} parent=1 // pred_check
      _
    $region3: #{tpu_custom_call.1} parent=1 // pred_check_branch
      %15 = sbr.rel (0) target = $region5
    $region4: #{tpu_custom_call.1} parent=1 // pred_region
      _
    $region5: #{tpu_custom_call.1} parent=1 // pred_fallthru
      _
    // Predicated region
    $region6: #{tpu_custom_call.1} parent=1 // pred_check
      _
    $region7: #{tpu_custom_call.1} parent=1 // pred_check_branch
      %17 = sbr.rel (0) target = $region9
    $region8: #{tpu_custom_call.1} parent=1 // pred_region
      _
    $region9: #{tpu_custom_call.1} parent=1 // pred_fallthru
      _
    // Predicated region
    $region10: #{tpu_custom_call.1} parent=1 // pred_check
      _
    $region11: #{tpu_custom_call.1} parent=1 // pred_check_branch
      %19 = sbr.rel (0) target = $region13
    $region12: #{tpu_custom_call.1} parent=1 // pred_region
      _
    $region13: #{tpu_custom_call.1} parent=1 // pred_fallthru
      _
    // Predicated region
    $region14: #{tpu_custom_call.1} parent=1 // pred_check
      _
    $region15: #{tpu_custom_call.1} parent=1 // pred_check_branch
      %21 = sbr.rel (0) target = $region17
    $region16: #{tpu_custom_call.1} parent=1 // pred_region
      _
    $region17: #{tpu_custom_call.1} parent=1 // pred_fallthru
      _
    // Predicated region
    $region18: #{tpu_custom_call.1} parent=1 // pred_check
      _
    $region19: #{tpu_custom_call.1} parent=1 // pred_check_branch
      %23 = sbr.rel (0) target = $region21
    $region20: #{tpu_custom_call.1} parent=1 // pred_region
      _
    $region21: #{tpu_custom_call.1} parent=1 // pred_fallthru
      _
    // Predicated region
    $region22: #{tpu_custom_call.1} parent=1 // pred_check
      _
    $region23: #{tpu_custom_call.1} parent=1 // pred_check_branch
      %25 = sbr.rel (0) target = $region25
    $region24: #{tpu_custom_call.1} parent=1 // pred_region
      _
    $region25: #{tpu_custom_call.1} parent=1 // pred_fallthru
      _
    // Predicated region
    $region26: #{tpu_custom_call.1} parent=1 // pred_check
      _
    $region27: #{tpu_custom_call.1} parent=1 // pred_check_branch
      %27 = sbr.rel (0) target = $region29
    $region28: #{tpu_custom_call.1} parent=1 // pred_region
      _
    $region29: #{tpu_custom_call.1} parent=1 // pred_fallthru
      _
    // Predicated region
    $region30: #{tpu_custom_call.1} parent=1 // pred_check
      _
    $region31: #{tpu_custom_call.1} parent=1 // pred_check_branch
      %29 = sbr.rel (0) target = $region33
    $region32: #{tpu_custom_call.1} parent=1 // pred_region
      _
    $region33: #{tpu_custom_call.1} parent=1 // pred_fallthru
      _
    %p30 = scmp.eq.s32.totalorder 0, 0
    // Predicated region
    $region34: #{tpu_custom_call.1} parent=1 // pred_check
      %p31 = pneg %p30
    $region35: #{tpu_custom_call.1} parent=1 // pred_check_branch
      %33 = sbr.rel (%p31) target = $region37
    $region36: #{tpu_custom_call.1} parent=1 // pred_region
      %34 = vst [vmem:[#allocation2] sm:$0xff] -inf
    $region37: #{tpu_custom_call.1} parent=1 // pred_fallthru
      _
    %v35 = vld [vmem:[%s0] sm:$0xff]
    %v36 = vld [vmem:[%s0 + $0x8] sm:$0xff]
    %v37 = vld [vmem:[%s0 + $0x10] sm:$0xff]
    %v38 = vld [vmem:[%s0 + $0x18] sm:$0xff]
    %v39 = vld [vmem:[%s0 + $0x20] sm:$0xff]
    %v40 = vld [vmem:[%s0 + $0x28] sm:$0xff]
    %v41 = vld [vmem:[%s0 + $0x30] sm:$0xff]
    %v42 = vld [vmem:[%s0 + $0x38] sm:$0xff]
    %v43 = vld [vmem:[%s0 + $0x40] sm:$0xff]
    %v44 = vld [vmem:[%s0 + $0x48] sm:$0xff]
    %v45 = vld [vmem:[%s0 + $0x50] sm:$0xff]
    %v46 = vld [vmem:[%s0 + $0x58] sm:$0xff]
    %v47 = vld [vmem:[%s0 + $0x60] sm:$0xff]
    %v48 = vld [vmem:[%s0 + $0x68] sm:$0xff]
    %v49 = vld [vmem:[%s0 + $0x70] sm:$0xff]
    %v50 = vld [vmem:[%s0 + $0x78] sm:$0xff]
    %v51 = vld [vmem:[%s0 + $0x80] sm:$0xff]
    %v52 = vld [vmem:[%s0 + $0x88] sm:$0xff]
    %v53 = vld [vmem:[%s0 + $0x90] sm:$0xff]
    %v54 = vld [vmem:[%s0 + $0x98] sm:$0xff]
    %v55 = vld [vmem:[%s0 + $0xa0] sm:$0xff]
    %v56 = vld [vmem:[%s0 + $0xa8] sm:$0xff]
    %v57 = vld [vmem:[%s0 + $0xb0] sm:$0xff]
    %v58 = vld [vmem:[%s0 + $0xb8] sm:$0xff]
    %v59 = vld [vmem:[%s0 + $0xc0] sm:$0xff]
    %v60 = vld [vmem:[%s0 + $0xc8] sm:$0xff]
    %v61 = vld [vmem:[%s0 + $0xd0] sm:$0xff]
    %v62 = vld [vmem:[%s0 + $0xd8] sm:$0xff]
    %v63 = vld [vmem:[%s0 + $0xe0] sm:$0xff]
    %v64 = vld [vmem:[%s0 + $0xe8] sm:$0xff]
    %v65 = vld [vmem:[%s0 + $0xf0] sm:$0xff]
    %v66 = vld [vmem:[%s0 + $0xf8] sm:$0xff]
    %v67 = vld [vmem:[%s2] sm:$0xff]
    %v68 = vld [vmem:[%s3] sm:$0x1]
    %v70 = vlaneseq
    %v71 = vshrl.u32 %v70, 7
    %v72 = vsub.s32 0, %v71
    %v73 = vrot.slane %v68, %v72
    %vm75 = vcmask 64512
    %v77 = vsel %vm75, %v35, 0
    %v80 = vsel %vm75, %v36, 0
    %v83 = vsel %vm75, %v37, 0
    %v86 = vsel %vm75, %v38, 0
    %v89 = vsel %vm75, %v39, 0
    %v92 = vsel %vm75, %v40, 0
    %v95 = vsel %vm75, %v41, 0
    %v98 = vsel %vm75, %v42, 0
    %v101 = vsel %vm75, %v43, 0
    %v104 = vsel %vm75, %v44, 0
    %v107 = vsel %vm75, %v45, 0
    %v110 = vsel %vm75, %v46, 0
    %v113 = vsel %vm75, %v47, 0
    %v116 = vsel %vm75, %v48, 0
    %v119 = vsel %vm75, %v49, 0
    %v122 = vsel %vm75, %v50, 0
    %v125 = vsel %vm75, %v51, 0
    %v128 = vsel %vm75, %v52, 0
    %v131 = vsel %vm75, %v53, 0
    %v134 = vsel %vm75, %v54, 0
    %v137 = vsel %vm75, %v55, 0
    %v140 = vsel %vm75, %v56, 0
    %v143 = vsel %vm75, %v57, 0
    %v146 = vsel %vm75, %v58, 0
    %v149 = vsel %vm75, %v59, 0
    %v152 = vsel %vm75, %v60, 0
    %v155 = vsel %vm75, %v61, 0
    %v158 = vsel %vm75, %v62, 0
    %v161 = vsel %vm75, %v63, 0
    %v164 = vsel %vm75, %v64, 0
    %v167 = vsel %vm75, %v65, 0
    %v170 = vsel %vm75, %v66, 0
    %172 = vmatprep.subr.mxu0 0.0
    %173 = vmatpush1.msra.mxu0 0.0
    %174 = vmatprep.subr.mxu0 0.0
    %175 = vmatpush1.msra.mxu0 0.0
    %176 = vmatprep.subr.mxu0 0.0
    %177 = vmatpush1.msra.mxu0 0.0
    %178 = vmatprep.subr.mxu0 0.0
    %179 = vmatpush1.msra.mxu0 0.0
    %180 = vmatprep.subr.mxu0 0.0
    %181 = vmatpush1.msra.mxu0 0.0
    %182 = vmatprep.subr.mxu0 0.0
    %183 = vmatpush1.msra.mxu0 0.0
    %184 = vmatprep.subr.mxu0 0.0
    %185 = vmatpush1.msra.mxu0 0.0
    %186 = vmatprep.subr.mxu0 0.0
    %187 = vmatpush1.msra.mxu0 0.0
    %188 = vmatprep.subr.mxu0 0.0
    %189 = vmatpush1.msra.mxu0 0.0
    %190 = vmatprep.subr.mxu0 0.0
    %191 = vmatpush1.msra.mxu0 0.0
    %192 = vmatprep.subr.mxu0 0.0
    %193 = vmatpush1.msra.mxu0 0.0
    %194 = vmatprep.subr.mxu0 0.0
    %195 = vmatpush1.msra.mxu0 0.0
    %196 = vmatprep.subr.mxu0 0.0
    %197 = vmatpush1.msra.mxu0 0.0
    %198 = vmatprep.subr.mxu0 0.0
    %199 = vmatpush1.msra.mxu0 0.0
    %200 = vmatprep.subr.mxu0 0.0
    %201 = vmatpush1.msra.mxu0 0.0
    %202 = vmatprep.subr.mxu0 0.0
    %203 = vmatpush1.msra.mxu0 %v67
    %204 = vmatprep.subr.mxu0 0.0
    %205 = vmatpush2.msra.mxu0 0.0
    %206 = vmatprep.subr.mxu0 0.0
    %207 = vmatpush2.msra.mxu0 0.0
    %208 = vmatprep.subr.mxu0 0.0
    %209 = vmatpush2.msra.mxu0 0.0
    %210 = vmatprep.subr.mxu0 0.0
    %211 = vmatpush2.msra.mxu0 0.0
    %212 = vmatprep.subr.mxu0 0.0
    %213 = vmatpush2.msra.mxu0 0.0
    %214 = vmatprep.subr.mxu0 0.0
    %215 = vmatpush2.msra.mxu0 0.0
    %216 = vmatprep.subr.mxu0 0.0
    %217 = vmatpush2.msra.mxu0 0.0
    %218 = vmatprep.subr.mxu0 0.0
    %219 = vmatpush2.msra.mxu0 0.0
    %220 = vmatprep.subr.mxu0 0.0
    %221 = vmatpush2.msra.mxu0 0.0
    %222 = vmatprep.subr.mxu0 0.0
    %223 = vmatpush2.msra.mxu0 0.0
    %224 = vmatprep.subr.mxu0 0.0
    %225 = vmatpush2.msra.mxu0 0.0
    %226 = vmatprep.subr.mxu0 0.0
    %227 = vmatpush2.msra.mxu0 0.0
    %228 = vmatprep.subr.mxu0 0.0
    %229 = vmatpush2.msra.mxu0 0.0
    %230 = vmatprep.subr.mxu0 0.0
    %231 = vmatpush2.msra.mxu0 0.0
    %232 = vmatprep.subr.mxu0 0.0
    %233 = vmatpush2.msra.mxu0 0.0
    %234 = vmatprep.subr.mxu0 0.0
    %235 = vmatpush2.msra.mxu0 0.0
    %236 = vmatprep.mubr.f32.mxu0 0.0
    %237 = vmatmul.mubr.f32.gmra.mxu0 %v77
    %v238 = vpop.f32.mrf.mxu0
    %v239 = vadd.f32 %v73, %v238
    %v240 = vpop.f32.mrf.mxu0
    %241 = vmatprep.mubr.f32.mxu0 0.0
    %242 = vmatmul.mubr.f32.gmra.mxu0 %v80
    %v243 = vpop.f32.mrf.mxu0
    %v244 = vadd.f32 %v73, %v243
    %v245 = vpop.f32.mrf.mxu0
    %246 = vmatprep.mubr.f32.mxu0 0.0
    %247 = vmatmul.mubr.f32.gmra.mxu0 %v83
    %v248 = vpop.f32.mrf.mxu0
    %v249 = vadd.f32 %v73, %v248
    %v250 = vpop.f32.mrf.mxu0
    %251 = vmatprep.mubr.f32.mxu0 0.0
    %252 = vmatmul.mubr.f32.gmra.mxu0 %v86
    %v253 = vpop.f32.mrf.mxu0
    %v254 = vadd.f32 %v73, %v253
    %v255 = vpop.f32.mrf.mxu0
    %256 = vmatprep.mubr.f32.mxu0 0.0
    %257 = vmatmul.mubr.f32.gmra.mxu0 %v89
    %v258 = vpop.f32.mrf.mxu0
    %v259 = vadd.f32 %v73, %v258
    %v260 = vpop.f32.mrf.mxu0
    %261 = vmatprep.mubr.f32.mxu0 0.0
    %262 = vmatmul.mubr.f32.gmra.mxu0 %v92
    %v263 = vpop.f32.mrf.mxu0
    %v264 = vadd.f32 %v73, %v263
    %v265 = vpop.f32.mrf.mxu0
    %266 = vmatprep.mubr.f32.mxu0 0.0
    %267 = vmatmul.mubr.f32.gmra.mxu0 %v95
    %v268 = vpop.f32.mrf.mxu0
    %v269 = vadd.f32 %v73, %v268
    %v270 = vpop.f32.mrf.mxu0
    %271 = vmatprep.mubr.f32.mxu0 0.0
    %272 = vmatmul.mubr.f32.gmra.mxu0 %v98
    %v273 = vpop.f32.mrf.mxu0
    %v274 = vadd.f32 %v73, %v273
    %v275 = vpop.f32.mrf.mxu0
    %276 = vmatprep.mubr.f32.mxu0 0.0
    %277 = vmatmul.mubr.f32.gmra.mxu0 %v101
    %v278 = vpop.f32.mrf.mxu0
    %v279 = vadd.f32 %v73, %v278
    %v280 = vpop.f32.mrf.mxu0
    %281 = vmatprep.mubr.f32.mxu0 0.0
    %282 = vmatmul.mubr.f32.gmra.mxu0 %v104
    %v283 = vpop.f32.mrf.mxu0
    %v284 = vadd.f32 %v73, %v283
    %v285 = vpop.f32.mrf.mxu0
    %286 = vmatprep.mubr.f32.mxu0 0.0
    %287 = vmatmul.mubr.f32.gmra.mxu0 %v107
    %v288 = vpop.f32.mrf.mxu0
    %v289 = vadd.f32 %v73, %v288
    %v290 = vpop.f32.mrf.mxu0
    %291 = vmatprep.mubr.f32.mxu0 0.0
    %292 = vmatmul.mubr.f32.gmra.mxu0 %v110
    %v293 = vpop.f32.mrf.mxu0
    %v294 = vadd.f32 %v73, %v293
    %v295 = vpop.f32.mrf.mxu0
    %296 = vmatprep.mubr.f32.mxu0 0.0
    %297 = vmatmul.mubr.f32.gmra.mxu0 %v113
    %v298 = vpop.f32.mrf.mxu0
    %v299 = vadd.f32 %v73, %v298
    %v300 = vpop.f32.mrf.mxu0
    %301 = vmatprep.mubr.f32.mxu0 0.0
    %302 = vmatmul.mubr.f32.gmra.mxu0 %v116
    %v303 = vpop.f32.mrf.mxu0
    %v304 = vadd.f32 %v73, %v303
    %v305 = vpop.f32.mrf.mxu0
    %306 = vmatprep.mubr.f32.mxu0 0.0
    %307 = vmatmul.mubr.f32.gmra.mxu0 %v119
    %v308 = vpop.f32.mrf.mxu0
    %v309 = vadd.f32 %v73, %v308
    %v310 = vpop.f32.mrf.mxu0
    %311 = vmatprep.mubr.f32.mxu0 0.0
    %312 = vmatmul.mubr.f32.gmra.mxu0 %v122
    %v313 = vpop.f32.mrf.mxu0
    %v314 = vadd.f32 %v73, %v313
    %v315 = vpop.f32.mrf.mxu0
    %316 = vmatprep.mubr.f32.mxu0 0.0
    %317 = vmatmul.mubr.f32.gmra.mxu0 %v125
    %v318 = vpop.f32.mrf.mxu0
    %v319 = vadd.f32 %v73, %v318
    %v320 = vpop.f32.mrf.mxu0
    %321 = vmatprep.mubr.f32.mxu0 0.0
    %322 = vmatmul.mubr.f32.gmra.mxu0 %v128
    %v323 = vpop.f32.mrf.mxu0
    %v324 = vadd.f32 %v73, %v323
    %v325 = vpop.f32.mrf.mxu0
    %326 = vmatprep.mubr.f32.mxu0 0.0
    %327 = vmatmul.mubr.f32.gmra.mxu0 %v131
    %v328 = vpop.f32.mrf.mxu0
    %v329 = vadd.f32 %v73, %v328
    %v330 = vpop.f32.mrf.mxu0
    %331 = vmatprep.mubr.f32.mxu0 0.0
    %332 = vmatmul.mubr.f32.gmra.mxu0 %v134
    %v333 = vpop.f32.mrf.mxu0
    %v334 = vadd.f32 %v73, %v333
    %v335 = vpop.f32.mrf.mxu0
    %336 = vmatprep.mubr.f32.mxu0 0.0
    %337 = vmatmul.mubr.f32.gmra.mxu0 %v137
    %v338 = vpop.f32.mrf.mxu0
    %v339 = vadd.f32 %v73, %v338
    %v340 = vpop.f32.mrf.mxu0
    %341 = vmatprep.mubr.f32.mxu0 0.0
    %342 = vmatmul.mubr.f32.gmra.mxu0 %v140
    %v343 = vpop.f32.mrf.mxu0
    %v344 = vadd.f32 %v73, %v343
    %v345 = vpop.f32.mrf.mxu0
    %346 = vmatprep.mubr.f32.mxu0 0.0
    %347 = vmatmul.mubr.f32.gmra.mxu0 %v143
    %v348 = vpop.f32.mrf.mxu0
    %v349 = vadd.f32 %v73, %v348
    %v350 = vpop.f32.mrf.mxu0
    %351 = vmatprep.mubr.f32.mxu0 0.0
    %352 = vmatmul.mubr.f32.gmra.mxu0 %v146
    %v353 = vpop.f32.mrf.mxu0
    %v354 = vadd.f32 %v73, %v353
    %v355 = vpop.f32.mrf.mxu0
    %356 = vmatprep.mubr.f32.mxu0 0.0
    %357 = vmatmul.mubr.f32.gmra.mxu0 %v149
    %v358 = vpop.f32.mrf.mxu0
    %v359 = vadd.f32 %v73, %v358
    %v360 = vpop.f32.mrf.mxu0
    %361 = vmatprep.mubr.f32.mxu0 0.0
    %362 = vmatmul.mubr.f32.gmra.mxu0 %v152
    %v363 = vpop.f32.mrf.mxu0
    %v364 = vadd.f32 %v73, %v363
    %v365 = vpop.f32.mrf.mxu0
    %366 = vmatprep.mubr.f32.mxu0 0.0
    %367 = vmatmul.mubr.f32.gmra.mxu0 %v155
    %v368 = vpop.f32.mrf.mxu0
    %v369 = vadd.f32 %v73, %v368
    %v370 = vpop.f32.mrf.mxu0
    %371 = vmatprep.mubr.f32.mxu0 0.0
    %372 = vmatmul.mubr.f32.gmra.mxu0 %v158
    %v373 = vpop.f32.mrf.mxu0
    %v374 = vadd.f32 %v73, %v373
    %v375 = vpop.f32.mrf.mxu0
    %376 = vmatprep.mubr.f32.mxu0 0.0
    %377 = vmatmul.mubr.f32.gmra.mxu0 %v161
    %v378 = vpop.f32.mrf.mxu0
    %v379 = vadd.f32 %v73, %v378
    %v380 = vpop.f32.mrf.mxu0
    %381 = vmatprep.mubr.f32.mxu0 0.0
    %382 = vmatmul.mubr.f32.gmra.mxu0 %v164
    %v383 = vpop.f32.mrf.mxu0
    %v384 = vadd.f32 %v73, %v383
    %v385 = vpop.f32.mrf.mxu0
    %386 = vmatprep.mubr.f32.mxu0 0.0
    %387 = vmatmul.mubr.f32.gmra.mxu0 %v167
    %v388 = vpop.f32.mrf.mxu0
    %v389 = vadd.f32 %v73, %v388
    %v390 = vpop.f32.mrf.mxu0
    %391 = vmatprep.mubr.f32.mxu0 0.0
    %392 = vmatmul.mubr.f32.gmra.mxu0 %v170
    %v393 = vpop.f32.mrf.mxu0
    %v394 = vadd.f32 %v73, %v393
    %v395 = vpop.f32.mrf.mxu0
    %396 = vdwg.mxu0
    %v397 = vmul.f32 %v239, %v239
    %v398 = vmul.f32 %v244, %v244
    %v399 = vmul.f32 %v249, %v249
    %v400 = vmul.f32 %v254, %v254
    %v401 = vmul.f32 %v259, %v259
    %v402 = vmul.f32 %v264, %v264
    %v403 = vmul.f32 %v269, %v269
    %v404 = vmul.f32 %v274, %v274
    %v405 = vmul.f32 %v279, %v279
    %v406 = vmul.f32 %v284, %v284
    %v407 = vmul.f32 %v289, %v289
    %v408 = vmul.f32 %v294, %v294
    %v409 = vmul.f32 %v299, %v299
    %v410 = vmul.f32 %v304, %v304
    %v411 = vmul.f32 %v309, %v309
    %v412 = vmul.f32 %v314, %v314
    %v413 = vmul.f32 %v319, %v319
    %v414 = vmul.f32 %v324, %v324
    %v415 = vmul.f32 %v329, %v329
    %v416 = vmul.f32 %v334, %v334
    %v417 = vmul.f32 %v339, %v339
    %v418 = vmul.f32 %v344, %v344
    %v419 = vmul.f32 %v349, %v349
    %v420 = vmul.f32 %v354, %v354
    %v421 = vmul.f32 %v359, %v359
    %v422 = vmul.f32 %v364, %v364
    %v423 = vmul.f32 %v369, %v369
    %v424 = vmul.f32 %v374, %v374
    %v425 = vmul.f32 %v379, %v379
    %v426 = vmul.f32 %v384, %v384
    %v427 = vmul.f32 %v389, %v389
    %v428 = vmul.f32 %v394, %v394
    %v429 = vmul.f32 %v239, %v397
    %v430 = vmul.f32 %v244, %v398
    %v431 = vmul.f32 %v249, %v399
    %v432 = vmul.f32 %v254, %v400
    %v433 = vmul.f32 %v259, %v401
    %v434 = vmul.f32 %v264, %v402
    %v435 = vmul.f32 %v269, %v403
    %v436 = vmul.f32 %v274, %v404
    %v437 = vmul.f32 %v279, %v405
    %v438 = vmul.f32 %v284, %v406
    %v439 = vmul.f32 %v289, %v407
    %v440 = vmul.f32 %v294, %v408
    %v441 = vmul.f32 %v299, %v409
    %v442 = vmul.f32 %v304, %v410
    %v443 = vmul.f32 %v309, %v411
    %v444 = vmul.f32 %v314, %v412
    %v445 = vmul.f32 %v319, %v413
    %v446 = vmul.f32 %v324, %v414
    %v447 = vmul.f32 %v329, %v415
    %v448 = vmul.f32 %v334, %v416
    %v449 = vmul.f32 %v339, %v417
    %v450 = vmul.f32 %v344, %v418
    %v451 = vmul.f32 %v349, %v419
    %v452 = vmul.f32 %v354, %v420
    %v453 = vmul.f32 %v359, %v421
    %v454 = vmul.f32 %v364, %v422
    %v455 = vmul.f32 %v369, %v423
    %v456 = vmul.f32 %v374, %v424
    %v457 = vmul.f32 %v379, %v425
    %v458 = vmul.f32 %v384, %v426
    %v459 = vmul.f32 %v389, %v427
    %v460 = vmul.f32 %v394, %v428
    %v461 = vmul.f32 %v429, 0.044715
    %v462 = vmul.f32 %v430, 0.044715
    %v463 = vmul.f32 %v431, 0.044715
    %v464 = vmul.f32 %v432, 0.044715
    %v465 = vmul.f32 %v433, 0.044715
    %v466 = vmul.f32 %v434, 0.044715
    %v467 = vmul.f32 %v435, 0.044715
    %v468 = vmul.f32 %v436, 0.044715
    %v469 = vmul.f32 %v437, 0.044715
    %v470 = vmul.f32 %v438, 0.044715
    %v471 = vmul.f32 %v439, 0.044715
    %v472 = vmul.f32 %v440, 0.044715
    %v473 = vmul.f32 %v441, 0.044715
    %v474 = vmul.f32 %v442, 0.044715
    %v475 = vmul.f32 %v443, 0.044715
    %v476 = vmul.f32 %v444, 0.044715
    %v477 = vmul.f32 %v445, 0.044715
    %v478 = vmul.f32 %v446, 0.044715
    %v479 = vmul.f32 %v447, 0.044715
    %v480 = vmul.f32 %v448, 0.044715
    %v481 = vmul.f32 %v449, 0.044715
    %v482 = vmul.f32 %v450, 0.044715
    %v483 = vmul.f32 %v451, 0.044715
    %v484 = vmul.f32 %v452, 0.044715
    %v485 = vmul.f32 %v453, 0.044715
    %v486 = vmul.f32 %v454, 0.044715
    %v487 = vmul.f32 %v455, 0.044715
    %v488 = vmul.f32 %v456, 0.044715
    %v489 = vmul.f32 %v457, 0.044715
    %v490 = vmul.f32 %v458, 0.044715
    %v491 = vmul.f32 %v459, 0.044715
    %v492 = vmul.f32 %v460, 0.044715
    %v493 = vadd.f32 %v239, %v461
    %v494 = vadd.f32 %v244, %v462
    %v495 = vadd.f32 %v249, %v463
    %v496 = vadd.f32 %v254, %v464
    %v497 = vadd.f32 %v259, %v465
    %v498 = vadd.f32 %v264, %v466
    %v499 = vadd.f32 %v269, %v467
    %v500 = vadd.f32 %v274, %v468
    %v501 = vadd.f32 %v279, %v469
    %v502 = vadd.f32 %v284, %v470
    %v503 = vadd.f32 %v289, %v471
    %v504 = vadd.f32 %v294, %v472
    %v505 = vadd.f32 %v299, %v473
    %v506 = vadd.f32 %v304, %v474
    %v507 = vadd.f32 %v309, %v475
    %v508 = vadd.f32 %v314, %v476
    %v509 = vadd.f32 %v319, %v477
    %v510 = vadd.f32 %v324, %v478
    %v511 = vadd.f32 %v329, %v479
    %v512 = vadd.f32 %v334, %v480
    %v513 = vadd.f32 %v339, %v481
    %v514 = vadd.f32 %v344, %v482
    %v515 = vadd.f32 %v349, %v483
    %v516 = vadd.f32 %v354, %v484
    %v517 = vadd.f32 %v359, %v485
    %v518 = vadd.f32 %v364, %v486
    %v519 = vadd.f32 %v369, %v487
    %v520 = vadd.f32 %v374, %v488
    %v521 = vadd.f32 %v379, %v489
    %v522 = vadd.f32 %v384, %v490
    %v523 = vadd.f32 %v389, %v491
    %v524 = vadd.f32 %v394, %v492
    %v525 = vmul.f32 %v493, 0.7978846
    %v526 = vmul.f32 %v494, 0.7978846
    %v527 = vmul.f32 %v495, 0.7978846
    %v528 = vmul.f32 %v496, 0.7978846
    %v529 = vmul.f32 %v497, 0.7978846
    %v530 = vmul.f32 %v498, 0.7978846
    %v531 = vmul.f32 %v499, 0.7978846
    %v532 = vmul.f32 %v500, 0.7978846
    %v533 = vmul.f32 %v501, 0.7978846
    %v534 = vmul.f32 %v502, 0.7978846
    %v535 = vmul.f32 %v503, 0.7978846
    %v536 = vmul.f32 %v504, 0.7978846
    %v537 = vmul.f32 %v505, 0.7978846
    %v538 = vmul.f32 %v506, 0.7978846
    %v539 = vmul.f32 %v507, 0.7978846
    %v540 = vmul.f32 %v508, 0.7978846
    %v541 = vmul.f32 %v509, 0.7978846
    %v542 = vmul.f32 %v510, 0.7978846
    %v543 = vmul.f32 %v511, 0.7978846
    %v544 = vmul.f32 %v512, 0.7978846
    %v545 = vmul.f32 %v513, 0.7978846
    %v546 = vmul.f32 %v514, 0.7978846
    %v547 = vmul.f32 %v515, 0.7978846
    %v548 = vmul.f32 %v516, 0.7978846
    %v549 = vmul.f32 %v517, 0.7978846
    %v550 = vmul.f32 %v518, 0.7978846
    %v551 = vmul.f32 %v519, 0.7978846
    %v552 = vmul.f32 %v520, 0.7978846
    %v553 = vmul.f32 %v521, 0.7978846
    %v554 = vmul.f32 %v522, 0.7978846
    %v555 = vmul.f32 %v523, 0.7978846
    %v556 = vmul.f32 %v524, 0.7978846
    %v557 = vtanh.pop %v525
    %v558 = vtanh.pop %v526
    %v559 = vtanh.pop %v527
    %v560 = vtanh.pop %v528
    %v561 = vtanh.pop %v529
    %v562 = vtanh.pop %v530
    %v563 = vtanh.pop %v531
    %v564 = vtanh.pop %v532
    %v565 = vtanh.pop %v533
    %v566 = vtanh.pop %v534
    %v567 = vtanh.pop %v535
    %v568 = vtanh.pop %v536
    %v569 = vtanh.pop %v537
    %v570 = vtanh.pop %v538
    %v571 = vtanh.pop %v539
    %v572 = vtanh.pop %v540
    %v573 = vtanh.pop %v541
    %v574 = vtanh.pop %v542
    %v575 = vtanh.pop %v543
    %v576 = vtanh.pop %v544
    %v577 = vtanh.pop %v545
    %v578 = vtanh.pop %v546
    %v579 = vtanh.pop %v547
    %v580 = vtanh.pop %v548
    %v581 = vtanh.pop %v549
    %v582 = vtanh.pop %v550
    %v583 = vtanh.pop %v551
    %v584 = vtanh.pop %v552
    %v585 = vtanh.pop %v553
    %v586 = vtanh.pop %v554
    %v587 = vtanh.pop %v555
    %v588 = vtanh.pop %v556
    %v589 = vadd.f32 %v557, 1.0
    %v590 = vadd.f32 %v558, 1.0
    %v591 = vadd.f32 %v559, 1.0
    %v592 = vadd.f32 %v560, 1.0
    %v593 = vadd.f32 %v561, 1.0
    %v594 = vadd.f32 %v562, 1.0
    %v595 = vadd.f32 %v563, 1.0
    %v596 = vadd.f32 %v564, 1.0
    %v597 = vadd.f32 %v565, 1.0
    %v598 = vadd.f32 %v566, 1.0
    %v599 = vadd.f32 %v567, 1.0
    %v600 = vadd.f32 %v568, 1.0
    %v601 = vadd.f32 %v569, 1.0
    %v602 = vadd.f32 %v570, 1.0
    %v603 = vadd.f32 %v571, 1.0
    %v604 = vadd.f32 %v572, 1.0
    %v605 = vadd.f32 %v573, 1.0
    %v606 = vadd.f32 %v574, 1.0
    %v607 = vadd.f32 %v575, 1.0
    %v608 = vadd.f32 %v576, 1.0
    %v609 = vadd.f32 %v577, 1.0
    %v610 = vadd.f32 %v578, 1.0
    %v611 = vadd.f32 %v579, 1.0
    %v612 = vadd.f32 %v580, 1.0
    %v613 = vadd.f32 %v581, 1.0
    %v614 = vadd.f32 %v582, 1.0
    %v615 = vadd.f32 %v583, 1.0
    %v616 = vadd.f32 %v584, 1.0
    %v617 = vadd.f32 %v585, 1.0
    %v618 = vadd.f32 %v586, 1.0
    %v619 = vadd.f32 %v587, 1.0
    %v620 = vadd.f32 %v588, 1.0
    %v621 = vmul.f32 %v589, 0.5
    %v622 = vmul.f32 %v590, 0.5
    %v623 = vmul.f32 %v591, 0.5
    %v624 = vmul.f32 %v592, 0.5
    %v625 = vmul.f32 %v593, 0.5
    %v626 = vmul.f32 %v594, 0.5
    %v627 = vmul.f32 %v595, 0.5
    %v628 = vmul.f32 %v596, 0.5
    %v629 = vmul.f32 %v597, 0.5
    %v630 = vmul.f32 %v598, 0.5
    %v631 = vmul.f32 %v599, 0.5
    %v632 = vmul.f32 %v600, 0.5
    %v633 = vmul.f32 %v601, 0.5
    %v634 = vmul.f32 %v602, 0.5
    %v635 = vmul.f32 %v603, 0.5
    %v636 = vmul.f32 %v604, 0.5
    %v637 = vmul.f32 %v605, 0.5
    %v638 = vmul.f32 %v606, 0.5
    %v639 = vmul.f32 %v607, 0.5
    %v640 = vmul.f32 %v608, 0.5
    %v641 = vmul.f32 %v609, 0.5
    %v642 = vmul.f32 %v610, 0.5
    %v643 = vmul.f32 %v611, 0.5
    %v644 = vmul.f32 %v612, 0.5
    %v645 = vmul.f32 %v613, 0.5
    %v646 = vmul.f32 %v614, 0.5
    %v647 = vmul.f32 %v615, 0.5
    %v648 = vmul.f32 %v616, 0.5
    %v649 = vmul.f32 %v617, 0.5
    %v650 = vmul.f32 %v618, 0.5
    %v651 = vmul.f32 %v619, 0.5
    %v652 = vmul.f32 %v620, 0.5
    %v653 = vmul.f32 %v239, %v621
    %v654 = vmul.f32 %v244, %v622
    %v655 = vmul.f32 %v249, %v623
    %v656 = vmul.f32 %v254, %v624
    %v657 = vmul.f32 %v259, %v625
    %v658 = vmul.f32 %v264, %v626
    %v659 = vmul.f32 %v269, %v627
    %v660 = vmul.f32 %v274, %v628
    %v661 = vmul.f32 %v279, %v629
    %v662 = vmul.f32 %v284, %v630
    %v663 = vmul.f32 %v289, %v631
    %v664 = vmul.f32 %v294, %v632
    %v665 = vmul.f32 %v299, %v633
    %v666 = vmul.f32 %v304, %v634
    %v667 = vmul.f32 %v309, %v635
    %v668 = vmul.f32 %v314, %v636
    %v669 = vmul.f32 %v319, %v637
    %v670 = vmul.f32 %v324, %v638
    %v671 = vmul.f32 %v329, %v639
    %v672 = vmul.f32 %v334, %v640
    %v673 = vmul.f32 %v339, %v641
    %v674 = vmul.f32 %v344, %v642
    %v675 = vmul.f32 %v349, %v643
    %v676 = vmul.f32 %v354, %v644
    %v677 = vmul.f32 %v359, %v645
    %v678 = vmul.f32 %v364, %v646
    %v679 = vmul.f32 %v369, %v647
    %v680 = vmul.f32 %v374, %v648
    %v681 = vmul.f32 %v379, %v649
    %v682 = vmul.f32 %v384, %v650
    %v683 = vmul.f32 %v389, %v651
    %v684 = vmul.f32 %v394, %v652
    %v685 = vld [vmem:[%s4] sm:$0xff]
    %v686 = vld [vmem:[%s4 + $0x8] sm:$0xff]
    %v687 = vld [vmem:[%s5] sm:$0x1]
    %v689 = vlaneseq
    %v690 = vshrl.u32 %v689, 7
    %v691 = vsub.s32 0, %v690
    %v692 = vrot.slane %v687, %v691
    %vm694 = vcmask 130048
    %v696 = vsel %vm694, %v653, 0
    %v699 = vsel %vm694, %v654, 0
    %v702 = vsel %vm694, %v655, 0
    %v705 = vsel %vm694, %v656, 0
    %v708 = vsel %vm694, %v657, 0
    %v711 = vsel %vm694, %v658, 0
    %v714 = vsel %vm694, %v659, 0
    %v717 = vsel %vm694, %v660, 0
    %v720 = vsel %vm694, %v661, 0
    %v723 = vsel %vm694, %v662, 0
    %v726 = vsel %vm694, %v663, 0
    %v729 = vsel %vm694, %v664, 0
    %v732 = vsel %vm694, %v665, 0
    %v735 = vsel %vm694, %v666, 0
    %v738 = vsel %vm694, %v667, 0
    %v741 = vsel %vm694, %v668, 0
    %v744 = vsel %vm694, %v669, 0
    %v747 = vsel %vm694, %v670, 0
    %v750 = vsel %vm694, %v671, 0
    %v753 = vsel %vm694, %v672, 0
    %v756 = vsel %vm694, %v673, 0
    %v759 = vsel %vm694, %v674, 0
    %v762 = vsel %vm694, %v675, 0
    %v765 = vsel %vm694, %v676, 0
    %v768 = vsel %vm694, %v677, 0
    %v771 = vsel %vm694, %v678, 0
    %v774 = vsel %vm694, %v679, 0
    %v777 = vsel %vm694, %v680, 0
    %v780 = vsel %vm694, %v681, 0
    %v783 = vsel %vm694, %v682, 0
    %v786 = vsel %vm694, %v683, 0
    %v789 = vsel %vm694, %v684, 0
    %791 = vmatprep.subr.mxu0 0.0
    %792 = vmatpush1.msra.mxu0 0.0
    %793 = vmatprep.subr.mxu0 0.0
    %794 = vmatpush1.msra.mxu0 0.0
    %795 = vmatprep.subr.mxu0 0.0
    %796 = vmatpush1.msra.mxu0 0.0
    %797 = vmatprep.subr.mxu0 0.0
    %798 = vmatpush1.msra.mxu0 0.0
    %799 = vmatprep.subr.mxu0 0.0
    %800 = vmatpush1.msra.mxu0 0.0
    %801 = vmatprep.subr.mxu0 0.0
    %802 = vmatpush1.msra.mxu0 0.0
    %803 = vmatprep.subr.mxu0 0.0
    %804 = vmatpush1.msra.mxu0 0.0
    %805 = vmatprep.subr.mxu0 0.0
    %806 = vmatpush1.msra.mxu0 0.0
    %807 = vmatprep.subr.mxu0 0.0
    %808 = vmatpush1.msra.mxu0 0.0
    %809 = vmatprep.subr.mxu0 0.0
    %810 = vmatpush1.msra.mxu0 0.0
    %811 = vmatprep.subr.mxu0 0.0
    %812 = vmatpush1.msra.mxu0 0.0
    %813 = vmatprep.subr.mxu0 0.0
    %814 = vmatpush1.msra.mxu0 0.0
    %815 = vmatprep.subr.mxu0 0.0
    %816 = vmatpush1.msra.mxu0 0.0
    %817 = vmatprep.subr.mxu0 0.0
    %818 = vmatpush1.msra.mxu0 0.0
    %819 = vmatprep.subr.mxu0 0.0
    %820 = vmatpush1.msra.mxu0 %v686
    %821 = vmatprep.subr.mxu0 0.0
    %822 = vmatpush1.msra.mxu0 %v685
    %823 = vmatprep.subr.mxu0 0.0
    %824 = vmatpush2.msra.mxu0 0.0
    %825 = vmatprep.subr.mxu0 0.0
    %826 = vmatpush2.msra.mxu0 0.0
    %827 = vmatprep.subr.mxu0 0.0
    %828 = vmatpush2.msra.mxu0 0.0
    %829 = vmatprep.subr.mxu0 0.0
    %830 = vmatpush2.msra.mxu0 0.0
    %831 = vmatprep.subr.mxu0 0.0
    %832 = vmatpush2.msra.mxu0 0.0
    %833 = vmatprep.subr.mxu0 0.0
    %834 = vmatpush2.msra.mxu0 0.0
    %835 = vmatprep.subr.mxu0 0.0
    %836 = vmatpush2.msra.mxu0 0.0
    %837 = vmatprep.subr.mxu0 0.0
    %838 = vmatpush2.msra.mxu0 0.0
    %839 = vmatprep.subr.mxu0 0.0
    %840 = vmatpush2.msra.mxu0 0.0
    %841 = vmatprep.subr.mxu0 0.0
    %842 = vmatpush2.msra.mxu0 0.0
    %843 = vmatprep.subr.mxu0 0.0
    %844 = vmatpush2.msra.mxu0 0.0
    %845 = vmatprep.subr.mxu0 0.0
    %846 = vmatpush2.msra.mxu0 0.0
    %847 = vmatprep.subr.mxu0 0.0
    %848 = vmatpush2.msra.mxu0 0.0
    %849 = vmatprep.subr.mxu0 0.0
    %850 = vmatpush2.msra.mxu0 0.0
    %851 = vmatprep.subr.mxu0 0.0
    %852 = vmatpush2.msra.mxu0 0.0
    %853 = vmatprep.subr.mxu0 0.0
    %854 = vmatpush2.msra.mxu0 0.0
    %855 = vmatprep.mubr.f32.mxu0 0.0
    %856 = vmatmul.mubr.f32.gmra.mxu0 %v696
    %v857 = vpop.f32.mrf.mxu0
    %v858 = vadd.f32 %v692, %v857
    %v859 = vpop.f32.mrf.mxu0
    %860 = vmatprep.mubr.f32.mxu0 0.0
    %861 = vmatmul.mubr.f32.gmra.mxu0 %v699
    %v862 = vpop.f32.mrf.mxu0
    %v863 = vadd.f32 %v692, %v862
    %v864 = vpop.f32.mrf.mxu0
    %865 = vmatprep.mubr.f32.mxu0 0.0
    %866 = vmatmul.mubr.f32.gmra.mxu0 %v702
    %v867 = vpop.f32.mrf.mxu0
    %v868 = vadd.f32 %v692, %v867
    %v869 = vpop.f32.mrf.mxu0
    %870 = vmatprep.mubr.f32.mxu0 0.0
    %871 = vmatmul.mubr.f32.gmra.mxu0 %v705
    %v872 = vpop.f32.mrf.mxu0
    %v873 = vadd.f32 %v692, %v872
    %v874 = vpop.f32.mrf.mxu0
    %875 = vmatprep.mubr.f32.mxu0 0.0
    %876 = vmatmul.mubr.f32.gmra.mxu0 %v708
    %v877 = vpop.f32.mrf.mxu0
    %v878 = vadd.f32 %v692, %v877
    %v879 = vpop.f32.mrf.mxu0
    %880 = vmatprep.mubr.f32.mxu0 0.0
    %881 = vmatmul.mubr.f32.gmra.mxu0 %v711
    %v882 = vpop.f32.mrf.mxu0
    %v883 = vadd.f32 %v692, %v882
    %v884 = vpop.f32.mrf.mxu0
    %885 = vmatprep.mubr.f32.mxu0 0.0
    %886 = vmatmul.mubr.f32.gmra.mxu0 %v714
    %v887 = vpop.f32.mrf.mxu0
    %v888 = vadd.f32 %v692, %v887
    %v889 = vpop.f32.mrf.mxu0
    %890 = vmatprep.mubr.f32.mxu0 0.0
    %891 = vmatmul.mubr.f32.gmra.mxu0 %v717
    %v892 = vpop.f32.mrf.mxu0
    %v893 = vadd.f32 %v692, %v892
    %v894 = vpop.f32.mrf.mxu0
    %895 = vmatprep.mubr.f32.mxu0 0.0
    %896 = vmatmul.mubr.f32.gmra.mxu0 %v720
    %v897 = vpop.f32.mrf.mxu0
    %v898 = vadd.f32 %v692, %v897
    %v899 = vpop.f32.mrf.mxu0
    %900 = vmatprep.mubr.f32.mxu0 0.0
    %901 = vmatmul.mubr.f32.gmra.mxu0 %v723
    %v902 = vpop.f32.mrf.mxu0
    %v903 = vadd.f32 %v692, %v902
    %v904 = vpop.f32.mrf.mxu0
    %905 = vmatprep.mubr.f32.mxu0 0.0
    %906 = vmatmul.mubr.f32.gmra.mxu0 %v726
    %v907 = vpop.f32.mrf.mxu0
    %v908 = vadd.f32 %v692, %v907
    %v909 = vpop.f32.mrf.mxu0
    %910 = vmatprep.mubr.f32.mxu0 0.0
    %911 = vmatmul.mubr.f32.gmra.mxu0 %v729
    %v912 = vpop.f32.mrf.mxu0
    %v913 = vadd.f32 %v692, %v912
    %v914 = vpop.f32.mrf.mxu0
    %915 = vmatprep.mubr.f32.mxu0 0.0
    %916 = vmatmul.mubr.f32.gmra.mxu0 %v732
    %v917 = vpop.f32.mrf.mxu0
    %v918 = vadd.f32 %v692, %v917
    %v919 = vpop.f32.mrf.mxu0
    %920 = vmatprep.mubr.f32.mxu0 0.0
    %921 = vmatmul.mubr.f32.gmra.mxu0 %v735
    %v922 = vpop.f32.mrf.mxu0
    %v923 = vadd.f32 %v692, %v922
    %v924 = vpop.f32.mrf.mxu0
    %925 = vmatprep.mubr.f32.mxu0 0.0
    %926 = vmatmul.mubr.f32.gmra.mxu0 %v738
    %v927 = vpop.f32.mrf.mxu0
    %v928 = vadd.f32 %v692, %v927
    %v929 = vpop.f32.mrf.mxu0
    %930 = vmatprep.mubr.f32.mxu0 0.0
    %931 = vmatmul.mubr.f32.gmra.mxu0 %v741
    %v932 = vpop.f32.mrf.mxu0
    %v933 = vadd.f32 %v692, %v932
    %v934 = vpop.f32.mrf.mxu0
    %935 = vmatprep.mubr.f32.mxu0 0.0
    %936 = vmatmul.mubr.f32.gmra.mxu0 %v744
    %v937 = vpop.f32.mrf.mxu0
    %v938 = vadd.f32 %v692, %v937
    %v939 = vpop.f32.mrf.mxu0
    %940 = vmatprep.mubr.f32.mxu0 0.0
    %941 = vmatmul.mubr.f32.gmra.mxu0 %v747
    %v942 = vpop.f32.mrf.mxu0
    %v943 = vadd.f32 %v692, %v942
    %v944 = vpop.f32.mrf.mxu0
    %945 = vmatprep.mubr.f32.mxu0 0.0
    %946 = vmatmul.mubr.f32.gmra.mxu0 %v750
    %v947 = vpop.f32.mrf.mxu0
    %v948 = vadd.f32 %v692, %v947
    %v949 = vpop.f32.mrf.mxu0
    %950 = vmatprep.mubr.f32.mxu0 0.0
    %951 = vmatmul.mubr.f32.gmra.mxu0 %v753
    %v952 = vpop.f32.mrf.mxu0
    %v953 = vadd.f32 %v692, %v952
    %v954 = vpop.f32.mrf.mxu0
    %955 = vmatprep.mubr.f32.mxu0 0.0
    %956 = vmatmul.mubr.f32.gmra.mxu0 %v756
    %v957 = vpop.f32.mrf.mxu0
    %v958 = vadd.f32 %v692, %v957
    %v959 = vpop.f32.mrf.mxu0
    %960 = vmatprep.mubr.f32.mxu0 0.0
    %961 = vmatmul.mubr.f32.gmra.mxu0 %v759
    %v962 = vpop.f32.mrf.mxu0
    %v963 = vadd.f32 %v692, %v962
    %v964 = vpop.f32.mrf.mxu0
    %965 = vmatprep.mubr.f32.mxu0 0.0
    %966 = vmatmul.mubr.f32.gmra.mxu0 %v762
    %v967 = vpop.f32.mrf.mxu0
    %v968 = vadd.f32 %v692, %v967
    %v969 = vpop.f32.mrf.mxu0
    %970 = vmatprep.mubr.f32.mxu0 0.0
    %971 = vmatmul.mubr.f32.gmra.mxu0 %v765
    %v972 = vpop.f32.mrf.mxu0
    %v973 = vadd.f32 %v692, %v972
    %v974 = vpop.f32.mrf.mxu0
    %975 = vmatprep.mubr.f32.mxu0 0.0
    %976 = vmatmul.mubr.f32.gmra.mxu0 %v768
    %v977 = vpop.f32.mrf.mxu0
    %v978 = vadd.f32 %v692, %v977
    %v979 = vpop.f32.mrf.mxu0
    %980 = vmatprep.mubr.f32.mxu0 0.0
    %981 = vmatmul.mubr.f32.gmra.mxu0 %v771
    %v982 = vpop.f32.mrf.mxu0
    %v983 = vadd.f32 %v692, %v982
    %v984 = vpop.f32.mrf.mxu0
    %985 = vmatprep.mubr.f32.mxu0 0.0
    %986 = vmatmul.mubr.f32.gmra.mxu0 %v774
    %v987 = vpop.f32.mrf.mxu0
    %v988 = vadd.f32 %v692, %v987
    %v989 = vpop.f32.mrf.mxu0
    %990 = vmatprep.mubr.f32.mxu0 0.0
    %991 = vmatmul.mubr.f32.gmra.mxu0 %v777
    %v992 = vpop.f32.mrf.mxu0
    %v993 = vadd.f32 %v692, %v992
    %v994 = vpop.f32.mrf.mxu0
    %995 = vmatprep.mubr.f32.mxu0 0.0
    %996 = vmatmul.mubr.f32.gmra.mxu0 %v780
    %v997 = vpop.f32.mrf.mxu0
    %v998 = vadd.f32 %v692, %v997
    %v999 = vpop.f32.mrf.mxu0
    %1000 = vmatprep.mubr.f32.mxu0 0.0
    %1001 = vmatmul.mubr.f32.gmra.mxu0 %v783
    %v1002 = vpop.f32.mrf.mxu0
    %v1003 = vadd.f32 %v692, %v1002
    %v1004 = vpop.f32.mrf.mxu0
    %1005 = vmatprep.mubr.f32.mxu0 0.0
    %1006 = vmatmul.mubr.f32.gmra.mxu0 %v786
    %v1007 = vpop.f32.mrf.mxu0
    %v1008 = vadd.f32 %v692, %v1007
    %v1009 = vpop.f32.mrf.mxu0
    %1010 = vmatprep.mubr.f32.mxu0 0.0
    %1011 = vmatmul.mubr.f32.gmra.mxu0 %v789
    %v1012 = vpop.f32.mrf.mxu0
    %v1013 = vadd.f32 %v692, %v1012
    %v1014 = vpop.f32.mrf.mxu0
    %1015 = vdwg.mxu0
    %v1016 = vlaneseq
    %v1017 = vand.u32 %v1016, 127
    %vm1018 = vcmp.lt.s32.totalorder %v1017, 32
    %1019 = vadd.xlane.f32.xlu0 %v858
    %v1020 = vpop.xlane.xlu0 %1019
    %1021 = vadd.xlane.f32.xlu0 %v863
    %v1022 = vpop.xlane.xlu0 %1021
    %1023 = vadd.xlane.f32.xlu0 %v868
    %v1024 = vpop.xlane.xlu0 %1023
    %1025 = vadd.xlane.f32.xlu0 %v873
    %v1026 = vpop.xlane.xlu0 %1025
    %1027 = vadd.xlane.f32.xlu0 %v878
    %v1028 = vpop.xlane.xlu0 %1027
    %1029 = vadd.xlane.f32.xlu0 %v883
    %v1030 = vpop.xlane.xlu0 %1029
    %1031 = vadd.xlane.f32.xlu0 %v888
    %v1032 = vpop.xlane.xlu0 %1031
    %1033 = vadd.xlane.f32.xlu0 %v893
    %v1034 = vpop.xlane.xlu0 %1033
    %1035 = vadd.xlane.f32.xlu0 %v898
    %v1036 = vpop.xlane.xlu0 %1035
    %1037 = vadd.xlane.f32.xlu0 %v903
    %v1038 = vpop.xlane.xlu0 %1037
    %1039 = vadd.xlane.f32.xlu0 %v908
    %v1040 = vpop.xlane.xlu0 %1039
    %1041 = vadd.xlane.f32.xlu0 %v913
    %v1042 = vpop.xlane.xlu0 %1041
    %1043 = vadd.xlane.f32.xlu0 %v918
    %v1044 = vpop.xlane.xlu0 %1043
    %1045 = vadd.xlane.f32.xlu0 %v923
    %v1046 = vpop.xlane.xlu0 %1045
    %1047 = vadd.xlane.f32.xlu0 %v928
    %v1048 = vpop.xlane.xlu0 %1047
    %1049 = vadd.xlane.f32.xlu0 %v933
    %v1050 = vpop.xlane.xlu0 %1049
    %1051 = vadd.xlane.f32.xlu0 %v938
    %v1052 = vpop.xlane.xlu0 %1051
    %1053 = vadd.xlane.f32.xlu0 %v943
    %v1054 = vpop.xlane.xlu0 %1053
    %1055 = vadd.xlane.f32.xlu0 %v948
    %v1056 = vpop.xlane.xlu0 %1055
    %1057 = vadd.xlane.f32.xlu0 %v953
    %v1058 = vpop.xlane.xlu0 %1057
    %1059 = vadd.xlane.f32.xlu0 %v958
    %v1060 = vpop.xlane.xlu0 %1059
    %1061 = vadd.xlane.f32.xlu0 %v963
    %v1062 = vpop.xlane.xlu0 %1061
    %1063 = vadd.xlane.f32.xlu0 %v968
    %v1064 = vpop.xlane.xlu0 %1063
    %1065 = vadd.xlane.f32.xlu0 %v973
    %v1066 = vpop.xlane.xlu0 %1065
    %1067 = vadd.xlane.f32.xlu0 %v978
    %v1068 = vpop.xlane.xlu0 %1067
    %1069 = vadd.xlane.f32.xlu0 %v983
    %v1070 = vpop.xlane.xlu0 %1069
    %1071 = vadd.xlane.f32.xlu0 %v988
    %v1072 = vpop.xlane.xlu0 %1071
    %1073 = vadd.xlane.f32.xlu0 %v993
    %v1074 = vpop.xlane.xlu0 %1073
    %1075 = vadd.xlane.f32.xlu0 %v998
    %v1076 = vpop.xlane.xlu0 %1075
    %1077 = vadd.xlane.f32.xlu0 %v1003
    %v1078 = vpop.xlane.xlu0 %1077
    %1079 = vadd.xlane.f32.xlu0 %v1008
    %v1080 = vpop.xlane.xlu0 %1079
    %1081 = vadd.xlane.f32.xlu0 %v1013
    %v1082 = vpop.xlane.xlu0 %1081
    %v1083 = vmul.f32 %v1020, 0.03125
    %v1084 = vmul.f32 %v1022, 0.03125
    %v1085 = vmul.f32 %v1024, 0.03125
    %v1086 = vmul.f32 %v1026, 0.03125
    %v1087 = vmul.f32 %v1028, 0.03125
    %v1088 = vmul.f32 %v1030, 0.03125
    %v1089 = vmul.f32 %v1032, 0.03125
    %v1090 = vmul.f32 %v1034, 0.03125
    %v1091 = vmul.f32 %v1036, 0.03125
    %v1092 = vmul.f32 %v1038, 0.03125
    %v1093 = vmul.f32 %v1040, 0.03125
    %v1094 = vmul.f32 %v1042, 0.03125
    %v1095 = vmul.f32 %v1044, 0.03125
    %v1096 = vmul.f32 %v1046, 0.03125
    %v1097 = vmul.f32 %v1048, 0.03125
    %v1098 = vmul.f32 %v1050, 0.03125
    %v1099 = vmul.f32 %v1052, 0.03125
    %v1100 = vmul.f32 %v1054, 0.03125
    %v1101 = vmul.f32 %v1056, 0.03125
    %v1102 = vmul.f32 %v1058, 0.03125
    %v1103 = vmul.f32 %v1060, 0.03125
    %v1104 = vmul.f32 %v1062, 0.03125
    %v1105 = vmul.f32 %v1064, 0.03125
    %v1106 = vmul.f32 %v1066, 0.03125
    %v1107 = vmul.f32 %v1068, 0.03125
    %v1108 = vmul.f32 %v1070, 0.03125
    %v1109 = vmul.f32 %v1072, 0.03125
    %v1110 = vmul.f32 %v1074, 0.03125
    %v1111 = vmul.f32 %v1076, 0.03125
    %v1112 = vmul.f32 %v1078, 0.03125
    %v1113 = vmul.f32 %v1080, 0.03125
    %v1114 = vmul.f32 %v1082, 0.03125
    %v1115 = vsub.f32 %v858, %v1083
    %v1116 = vsub.f32 %v863, %v1084
    %v1117 = vsub.f32 %v868, %v1085
    %v1118 = vsub.f32 %v873, %v1086
    %v1119 = vsub.f32 %v878, %v1087
    %v1120 = vsub.f32 %v883, %v1088
    %v1121 = vsub.f32 %v888, %v1089
    %v1122 = vsub.f32 %v893, %v1090
    %v1123 = vsub.f32 %v898, %v1091
    %v1124 = vsub.f32 %v903, %v1092
    %v1125 = vsub.f32 %v908, %v1093
    %v1126 = vsub.f32 %v913, %v1094
    %v1127 = vsub.f32 %v918, %v1095
    %v1128 = vsub.f32 %v923, %v1096
    %v1129 = vsub.f32 %v928, %v1097
    %v1130 = vsub.f32 %v933, %v1098
    %v1131 = vsub.f32 %v938, %v1099
    %v1132 = vsub.f32 %v943, %v1100
    %v1133 = vsub.f32 %v948, %v1101
    %v1134 = vsub.f32 %v953, %v1102
    %v1135 = vsub.f32 %v958, %v1103
    %v1136 = vsub.f32 %v963, %v1104
    %v1137 = vsub.f32 %v968, %v1105
    %v1138 = vsub.f32 %v973, %v1106
    %v1139 = vsub.f32 %v978, %v1107
    %v1140 = vsub.f32 %v983, %v1108
    %v1141 = vsub.f32 %v988, %v1109
    %v1142 = vsub.f32 %v993, %v1110
    %v1143 = vsub.f32 %v998, %v1111
    %v1144 = vsub.f32 %v1003, %v1112
    %v1145 = vsub.f32 %v1008, %v1113
    %v1146 = vsub.f32 %v1013, %v1114
    %v1147 = vsel %vm1018, %v1115, 0.0
    %v1148 = vsel %vm1018, %v1116, 0.0
    %v1149 = vsel %vm1018, %v1117, 0.0
    %v1150 = vsel %vm1018, %v1118, 0.0
    %v1151 = vsel %vm1018, %v1119, 0.0
    %v1152 = vsel %vm1018, %v1120, 0.0
    %v1153 = vsel %vm1018, %v1121, 0.0
    %v1154 = vsel %vm1018, %v1122, 0.0
    %v1155 = vsel %vm1018, %v1123, 0.0
    %v1156 = vsel %vm1018, %v1124, 0.0
    %v1157 = vsel %vm1018, %v1125, 0.0
    %v1158 = vsel %vm1018, %v1126, 0.0
    %v1159 = vsel %vm1018, %v1127, 0.0
    %v1160 = vsel %vm1018, %v1128, 0.0
    %v1161 = vsel %vm1018, %v1129, 0.0
    %v1162 = vsel %vm1018, %v1130, 0.0
    %v1163 = vsel %vm1018, %v1131, 0.0
    %v1164 = vsel %vm1018, %v1132, 0.0
    %v1165 = vsel %vm1018, %v1133, 0.0
    %v1166 = vsel %vm1018, %v1134, 0.0
    %v1167 = vsel %vm1018, %v1135, 0.0
    %v1168 = vsel %vm1018, %v1136, 0.0
    %v1169 = vsel %vm1018, %v1137, 0.0
    %v1170 = vsel %vm1018, %v1138, 0.0
    %v1171 = vsel %vm1018, %v1139, 0.0
    %v1172 = vsel %vm1018, %v1140, 0.0
    %v1173 = vsel %vm1018, %v1141, 0.0
    %v1174 = vsel %vm1018, %v1142, 0.0
    %v1175 = vsel %vm1018, %v1143, 0.0
    %v1176 = vsel %vm1018, %v1144, 0.0
    %v1177 = vsel %vm1018, %v1145, 0.0
    %v1178 = vsel %vm1018, %v1146, 0.0
    %v1179 = vmul.f32 %v1147, %v1147
    %v1180 = vmul.f32 %v1148, %v1148
    %v1181 = vmul.f32 %v1149, %v1149
    %v1182 = vmul.f32 %v1150, %v1150
    %v1183 = vmul.f32 %v1151, %v1151
    %v1184 = vmul.f32 %v1152, %v1152
    %v1185 = vmul.f32 %v1153, %v1153
    %v1186 = vmul.f32 %v1154, %v1154
    %v1187 = vmul.f32 %v1155, %v1155
    %v1188 = vmul.f32 %v1156, %v1156
    %v1189 = vmul.f32 %v1157, %v1157
    %v1190 = vmul.f32 %v1158, %v1158
    %v1191 = vmul.f32 %v1159, %v1159
    %v1192 = vmul.f32 %v1160, %v1160
    %v1193 = vmul.f32 %v1161, %v1161
    %v1194 = vmul.f32 %v1162, %v1162
    %v1195 = vmul.f32 %v1163, %v1163
    %v1196 = vmul.f32 %v1164, %v1164
    %v1197 = vmul.f32 %v1165, %v1165
    %v1198 = vmul.f32 %v1166, %v1166
    %v1199 = vmul.f32 %v1167, %v1167
    %v1200 = vmul.f32 %v1168, %v1168
    %v1201 = vmul.f32 %v1169, %v1169
    %v1202 = vmul.f32 %v1170, %v1170
    %v1203 = vmul.f32 %v1171, %v1171
    %v1204 = vmul.f32 %v1172, %v1172
    %v1205 = vmul.f32 %v1173, %v1173
    %v1206 = vmul.f32 %v1174, %v1174
    %v1207 = vmul.f32 %v1175, %v1175
    %v1208 = vmul.f32 %v1176, %v1176
    %v1209 = vmul.f32 %v1177, %v1177
    %v1210 = vmul.f32 %v1178, %v1178
    %1211 = vadd.xlane.f32.xlu0 %v1179
    %v1212 = vpop.xlane.xlu0 %1211
    %1213 = vadd.xlane.f32.xlu0 %v1180
    %v1214 = vpop.xlane.xlu0 %1213
    %1215 = vadd.xlane.f32.xlu0 %v1181
    %v1216 = vpop.xlane.xlu0 %1215
    %1217 = vadd.xlane.f32.xlu0 %v1182
    %v1218 = vpop.xlane.xlu0 %1217
    %1219 = vadd.xlane.f32.xlu0 %v1183
    %v1220 = vpop.xlane.xlu0 %1219
    %1221 = vadd.xlane.f32.xlu0 %v1184
    %v1222 = vpop.xlane.xlu0 %1221
    %1223 = vadd.xlane.f32.xlu0 %v1185
    %v1224 = vpop.xlane.xlu0 %1223
    %1225 = vadd.xlane.f32.xlu0 %v1186
    %v1226 = vpop.xlane.xlu0 %1225
    %1227 = vadd.xlane.f32.xlu0 %v1187
    %v1228 = vpop.xlane.xlu0 %1227
    %1229 = vadd.xlane.f32.xlu0 %v1188
    %v1230 = vpop.xlane.xlu0 %1229
    %1231 = vadd.xlane.f32.xlu0 %v1189
    %v1232 = vpop.xlane.xlu0 %1231
    %1233 = vadd.xlane.f32.xlu0 %v1190
    %v1234 = vpop.xlane.xlu0 %1233
    %1235 = vadd.xlane.f32.xlu0 %v1191
    %v1236 = vpop.xlane.xlu0 %1235
    %1237 = vadd.xlane.f32.xlu0 %v1192
    %v1238 = vpop.xlane.xlu0 %1237
    %1239 = vadd.xlane.f32.xlu0 %v1193
    %v1240 = vpop.xlane.xlu0 %1239
    %1241 = vadd.xlane.f32.xlu0 %v1194
    %v1242 = vpop.xlane.xlu0 %1241
    %1243 = vadd.xlane.f32.xlu0 %v1195
    %v1244 = vpop.xlane.xlu0 %1243
    %1245 = vadd.xlane.f32.xlu0 %v1196
    %v1246 = vpop.xlane.xlu0 %1245
    %1247 = vadd.xlane.f32.xlu0 %v1197
    %v1248 = vpop.xlane.xlu0 %1247
    %1249 = vadd.xlane.f32.xlu0 %v1198
    %v1250 = vpop.xlane.xlu0 %1249
    %1251 = vadd.xlane.f32.xlu0 %v1199
    %v1252 = vpop.xlane.xlu0 %1251
    %1253 = vadd.xlane.f32.xlu0 %v1200
    %v1254 = vpop.xlane.xlu0 %1253
    %1255 = vadd.xlane.f32.xlu0 %v1201
    %v1256 = vpop.xlane.xlu0 %1255
    %1257 = vadd.xlane.f32.xlu0 %v1202
    %v1258 = vpop.xlane.xlu0 %1257
    %1259 = vadd.xlane.f32.xlu0 %v1203
    %v1260 = vpop.xlane.xlu0 %1259
    %1261 = vadd.xlane.f32.xlu0 %v1204
    %v1262 = vpop.xlane.xlu0 %1261
    %1263 = vadd.xlane.f32.xlu0 %v1205
    %v1264 = vpop.xlane.xlu0 %1263
    %1265 = vadd.xlane.f32.xlu0 %v1206
    %v1266 = vpop.xlane.xlu0 %1265
    %1267 = vadd.xlane.f32.xlu0 %v1207
    %v1268 = vpop.xlane.xlu0 %1267
    %1269 = vadd.xlane.f32.xlu0 %v1208
    %v1270 = vpop.xlane.xlu0 %1269
    %1271 = vadd.xlane.f32.xlu0 %v1209
    %v1272 = vpop.xlane.xlu0 %1271
    %1273 = vadd.xlane.f32.xlu0 %v1210
    %v1274 = vpop.xlane.xlu0 %1273
    %v1275 = vmul.f32 %v1212, 0.03125
    %v1276 = vmul.f32 %v1214, 0.03125
    %v1277 = vmul.f32 %v1216, 0.03125
    %v1278 = vmul.f32 %v1218, 0.03125
    %v1279 = vmul.f32 %v1220, 0.03125
    %v1280 = vmul.f32 %v1222, 0.03125
    %v1281 = vmul.f32 %v1224, 0.03125
    %v1282 = vmul.f32 %v1226, 0.03125
    %v1283 = vmul.f32 %v1228, 0.03125
    %v1284 = vmul.f32 %v1230, 0.03125
    %v1285 = vmul.f32 %v1232, 0.03125
    %v1286 = vmul.f32 %v1234, 0.03125
    %v1287 = vmul.f32 %v1236, 0.03125
    %v1288 = vmul.f32 %v1238, 0.03125
    %v1289 = vmul.f32 %v1240, 0.03125
    %v1290 = vmul.f32 %v1242, 0.03125
    %v1291 = vmul.f32 %v1244, 0.03125
    %v1292 = vmul.f32 %v1246, 0.03125
    %v1293 = vmul.f32 %v1248, 0.03125
    %v1294 = vmul.f32 %v1250, 0.03125
    %v1295 = vmul.f32 %v1252, 0.03125
    %v1296 = vmul.f32 %v1254, 0.03125
    %v1297 = vmul.f32 %v1256, 0.03125
    %v1298 = vmul.f32 %v1258, 0.03125
    %v1299 = vmul.f32 %v1260, 0.03125
    %v1300 = vmul.f32 %v1262, 0.03125
    %v1301 = vmul.f32 %v1264, 0.03125
    %v1302 = vmul.f32 %v1266, 0.03125
    %v1303 = vmul.f32 %v1268, 0.03125
    %v1304 = vmul.f32 %v1270, 0.03125
    %v1305 = vmul.f32 %v1272, 0.03125
    %v1306 = vmul.f32 %v1274, 0.03125
    %v1307 = vadd.f32 %v1275, 1e-05
    %v1308 = vadd.f32 %v1276, 1e-05
    %v1309 = vadd.f32 %v1277, 1e-05
    %v1310 = vadd.f32 %v1278, 1e-05
    %v1311 = vadd.f32 %v1279, 1e-05
    %v1312 = vadd.f32 %v1280, 1e-05
    %v1313 = vadd.f32 %v1281, 1e-05
    %v1314 = vadd.f32 %v1282, 1e-05
    %v1315 = vadd.f32 %v1283, 1e-05
    %v1316 = vadd.f32 %v1284, 1e-05
    %v1317 = vadd.f32 %v1285, 1e-05
    %v1318 = vadd.f32 %v1286, 1e-05
    %v1319 = vadd.f32 %v1287, 1e-05
    %v1320 = vadd.f32 %v1288, 1e-05
    %v1321 = vadd.f32 %v1289, 1e-05
    %v1322 = vadd.f32 %v1290, 1e-05
    %v1323 = vadd.f32 %v1291, 1e-05
    %v1324 = vadd.f32 %v1292, 1e-05
    %v1325 = vadd.f32 %v1293, 1e-05
    %v1326 = vadd.f32 %v1294, 1e-05
    %v1327 = vadd.f32 %v1295, 1e-05
    %v1328 = vadd.f32 %v1296, 1e-05
    %v1329 = vadd.f32 %v1297, 1e-05
    %v1330 = vadd.f32 %v1298, 1e-05
    %v1331 = vadd.f32 %v1299, 1e-05
    %v1332 = vadd.f32 %v1300, 1e-05
    %v1333 = vadd.f32 %v1301, 1e-05
    %v1334 = vadd.f32 %v1302, 1e-05
    %v1335 = vadd.f32 %v1303, 1e-05
    %v1336 = vadd.f32 %v1304, 1e-05
    %v1337 = vadd.f32 %v1305, 1e-05
    %v1338 = vadd.f32 %v1306, 1e-05
    %v1339 = vrsqrt.pop %v1307
    %v1340 = vrsqrt.pop %v1308
    %v1341 = vrsqrt.pop %v1309
    %v1342 = vrsqrt.pop %v1310
    %v1343 = vrsqrt.pop %v1311
    %v1344 = vrsqrt.pop %v1312
    %v1345 = vrsqrt.pop %v1313
    %v1346 = vrsqrt.pop %v1314
    %v1347 = vrsqrt.pop %v1315
    %v1348 = vrsqrt.pop %v1316
    %v1349 = vrsqrt.pop %v1317
    %v1350 = vrsqrt.pop %v1318
    %v1351 = vrsqrt.pop %v1319
    %v1352 = vrsqrt.pop %v1320
    %v1353 = vrsqrt.pop %v1321
    %v1354 = vrsqrt.pop %v1322
    %v1355 = vrsqrt.pop %v1323
    %v1356 = vrsqrt.pop %v1324
    %v1357 = vrsqrt.pop %v1325
    %v1358 = vrsqrt.pop %v1326
    %v1359 = vrsqrt.pop %v1327
    %v1360 = vrsqrt.pop %v1328
    %v1361 = vrsqrt.pop %v1329
    %v1362 = vrsqrt.pop %v1330
    %v1363 = vrsqrt.pop %v1331
    %v1364 = vrsqrt.pop %v1332
    %v1365 = vrsqrt.pop %v1333
    %v1366 = vrsqrt.pop %v1334
    %v1367 = vrsqrt.pop %v1335
    %v1368 = vrsqrt.pop %v1336
    %v1369 = vrsqrt.pop %v1337
    %v1370 = vrsqrt.pop %v1338
    %v1371 = vmul.f32 %v1147, %v1339
    %v1372 = vmul.f32 %v1148, %v1340
    %v1373 = vmul.f32 %v1149, %v1341
    %v1374 = vmul.f32 %v1150, %v1342
    %v1375 = vmul.f32 %v1151, %v1343
    %v1376 = vmul.f32 %v1152, %v1344
    %v1377 = vmul.f32 %v1153, %v1345
    %v1378 = vmul.f32 %v1154, %v1346
    %v1379 = vmul.f32 %v1155, %v1347
    %v1380 = vmul.f32 %v1156, %v1348
    %v1381 = vmul.f32 %v1157, %v1349
    %v1382 = vmul.f32 %v1158, %v1350
    %v1383 = vmul.f32 %v1159, %v1351
    %v1384 = vmul.f32 %v1160, %v1352
    %v1385 = vmul.f32 %v1161, %v1353
    %v1386 = vmul.f32 %v1162, %v1354
    %v1387 = vmul.f32 %v1163, %v1355
    %v1388 = vmul.f32 %v1164, %v1356
    %v1389 = vmul.f32 %v1165, %v1357
    %v1390 = vmul.f32 %v1166, %v1358
    %v1391 = vmul.f32 %v1167, %v1359
    %v1392 = vmul.f32 %v1168, %v1360
    %v1393 = vmul.f32 %v1169, %v1361
    %v1394 = vmul.f32 %v1170, %v1362
    %v1395 = vmul.f32 %v1171, %v1363
    %v1396 = vmul.f32 %v1172, %v1364
    %v1397 = vmul.f32 %v1173, %v1365
    %v1398 = vmul.f32 %v1174, %v1366
    %v1399 = vmul.f32 %v1175, %v1367
    %v1400 = vmul.f32 %v1176, %v1368
    %v1401 = vmul.f32 %v1177, %v1369
    %v1402 = vmul.f32 %v1178, %v1370
    %v1403 = vld [vmem:[%s6] sm:$0x1]
    %v1405 = vlaneseq
    %v1406 = vshrl.u32 %v1405, 7
    %v1407 = vsub.s32 0, %v1406
    %v1408 = vrot.slane %v1403, %v1407
    %v1410 = vmul.f32 %v1371, %v1408
    %v1411 = vmul.f32 %v1372, %v1408
    %v1412 = vmul.f32 %v1373, %v1408
    %v1413 = vmul.f32 %v1374, %v1408
    %v1414 = vmul.f32 %v1375, %v1408
    %v1415 = vmul.f32 %v1376, %v1408
    %v1416 = vmul.f32 %v1377, %v1408
    %v1417 = vmul.f32 %v1378, %v1408
    %v1418 = vmul.f32 %v1379, %v1408
    %v1419 = vmul.f32 %v1380, %v1408
    %v1420 = vmul.f32 %v1381, %v1408
    %v1421 = vmul.f32 %v1382, %v1408
    %v1422 = vmul.f32 %v1383, %v1408
    %v1423 = vmul.f32 %v1384, %v1408
    %v1424 = vmul.f32 %v1385, %v1408
    %v1425 = vmul.f32 %v1386, %v1408
    %v1426 = vmul.f32 %v1387, %v1408
    %v1427 = vmul.f32 %v1388, %v1408
    %v1428 = vmul.f32 %v1389, %v1408
    %v1429 = vmul.f32 %v1390, %v1408
    %v1430 = vmul.f32 %v1391, %v1408
    %v1431 = vmul.f32 %v1392, %v1408
    %v1432 = vmul.f32 %v1393, %v1408
    %v1433 = vmul.f32 %v1394, %v1408
    %v1434 = vmul.f32 %v1395, %v1408
    %v1435 = vmul.f32 %v1396, %v1408
    %v1436 = vmul.f32 %v1397, %v1408
    %v1437 = vmul.f32 %v1398, %v1408
    %v1438 = vmul.f32 %v1399, %v1408
    %v1439 = vmul.f32 %v1400, %v1408
    %v1440 = vmul.f32 %v1401, %v1408
    %v1441 = vmul.f32 %v1402, %v1408
    %v1442 = vld [vmem:[%s7] sm:$0x1]
    %v1444 = vlaneseq
    %v1445 = vshrl.u32 %v1444, 7
    %v1446 = vsub.s32 0, %v1445
    %v1447 = vrot.slane %v1442, %v1446
    %v1449 = vadd.f32 %v1410, %v1447
    %v1450 = vadd.f32 %v1411, %v1447
    %v1451 = vadd.f32 %v1412, %v1447
    %v1452 = vadd.f32 %v1413, %v1447
    %v1453 = vadd.f32 %v1414, %v1447
    %v1454 = vadd.f32 %v1415, %v1447
    %v1455 = vadd.f32 %v1416, %v1447
    %v1456 = vadd.f32 %v1417, %v1447
    %v1457 = vadd.f32 %v1418, %v1447
    %v1458 = vadd.f32 %v1419, %v1447
    %v1459 = vadd.f32 %v1420, %v1447
    %v1460 = vadd.f32 %v1421, %v1447
    %v1461 = vadd.f32 %v1422, %v1447
    %v1462 = vadd.f32 %v1423, %v1447
    %v1463 = vadd.f32 %v1424, %v1447
    %v1464 = vadd.f32 %v1425, %v1447
    %v1465 = vadd.f32 %v1426, %v1447
    %v1466 = vadd.f32 %v1427, %v1447
    %v1467 = vadd.f32 %v1428, %v1447
    %v1468 = vadd.f32 %v1429, %v1447
    %v1469 = vadd.f32 %v1430, %v1447
    %v1470 = vadd.f32 %v1431, %v1447
    %v1471 = vadd.f32 %v1432, %v1447
    %v1472 = vadd.f32 %v1433, %v1447
    %v1473 = vadd.f32 %v1434, %v1447
    %v1474 = vadd.f32 %v1435, %v1447
    %v1475 = vadd.f32 %v1436, %v1447
    %v1476 = vadd.f32 %v1437, %v1447
    %v1477 = vadd.f32 %v1438, %v1447
    %v1478 = vadd.f32 %v1439, %v1447
    %v1479 = vadd.f32 %v1440, %v1447
    %v1480 = vadd.f32 %v1441, %v1447
    %v1481 = vmul.f32 %v1449, %v1449
    %v1482 = vmul.f32 %v1450, %v1450
    %v1483 = vmul.f32 %v1451, %v1451
    %v1484 = vmul.f32 %v1452, %v1452
    %v1485 = vmul.f32 %v1453, %v1453
    %v1486 = vmul.f32 %v1454, %v1454
    %v1487 = vmul.f32 %v1455, %v1455
    %v1488 = vmul.f32 %v1456, %v1456
    %v1489 = vmul.f32 %v1457, %v1457
    %v1490 = vmul.f32 %v1458, %v1458
    %v1491 = vmul.f32 %v1459, %v1459
    %v1492 = vmul.f32 %v1460, %v1460
    %v1493 = vmul.f32 %v1461, %v1461
    %v1494 = vmul.f32 %v1462, %v1462
    %v1495 = vmul.f32 %v1463, %v1463
    %v1496 = vmul.f32 %v1464, %v1464
    %v1497 = vmul.f32 %v1465, %v1465
    %v1498 = vmul.f32 %v1466, %v1466
    %v1499 = vmul.f32 %v1467, %v1467
    %v1500 = vmul.f32 %v1468, %v1468
    %v1501 = vmul.f32 %v1469, %v1469
    %v1502 = vmul.f32 %v1470, %v1470
    %v1503 = vmul.f32 %v1471, %v1471
    %v1504 = vmul.f32 %v1472, %v1472
    %v1505 = vmul.f32 %v1473, %v1473
    %v1506 = vmul.f32 %v1474, %v1474
    %v1507 = vmul.f32 %v1475, %v1475
    %v1508 = vmul.f32 %v1476, %v1476
    %v1509 = vmul.f32 %v1477, %v1477
    %v1510 = vmul.f32 %v1478, %v1478
    %v1511 = vmul.f32 %v1479, %v1479
    %v1512 = vmul.f32 %v1480, %v1480
    %v1513 = vmul.f32 %v1449, %v1481
    %v1514 = vmul.f32 %v1450, %v1482
    %v1515 = vmul.f32 %v1451, %v1483
    %v1516 = vmul.f32 %v1452, %v1484
    %v1517 = vmul.f32 %v1453, %v1485
    %v1518 = vmul.f32 %v1454, %v1486
    %v1519 = vmul.f32 %v1455, %v1487
    %v1520 = vmul.f32 %v1456, %v1488
    %v1521 = vmul.f32 %v1457, %v1489
    %v1522 = vmul.f32 %v1458, %v1490
    %v1523 = vmul.f32 %v1459, %v1491
    %v1524 = vmul.f32 %v1460, %v1492
    %v1525 = vmul.f32 %v1461, %v1493
    %v1526 = vmul.f32 %v1462, %v1494
    %v1527 = vmul.f32 %v1463, %v1495
    %v1528 = vmul.f32 %v1464, %v1496
    %v1529 = vmul.f32 %v1465, %v1497
    %v1530 = vmul.f32 %v1466, %v1498
    %v1531 = vmul.f32 %v1467, %v1499
    %v1532 = vmul.f32 %v1468, %v1500
    %v1533 = vmul.f32 %v1469, %v1501
    %v1534 = vmul.f32 %v1470, %v1502
    %v1535 = vmul.f32 %v1471, %v1503
    %v1536 = vmul.f32 %v1472, %v1504
    %v1537 = vmul.f32 %v1473, %v1505
    %v1538 = vmul.f32 %v1474, %v1506
    %v1539 = vmul.f32 %v1475, %v1507
    %v1540 = vmul.f32 %v1476, %v1508
    %v1541 = vmul.f32 %v1477, %v1509
    %v1542 = vmul.f32 %v1478, %v1510
    %v1543 = vmul.f32 %v1479, %v1511
    %v1544 = vmul.f32 %v1480, %v1512
    %v1545 = vmul.f32 %v1513, 0.044715
    %v1546 = vmul.f32 %v1514, 0.044715
    %v1547 = vmul.f32 %v1515, 0.044715
    %v1548 = vmul.f32 %v1516, 0.044715
    %v1549 = vmul.f32 %v1517, 0.044715
    %v1550 = vmul.f32 %v1518, 0.044715
    %v1551 = vmul.f32 %v1519, 0.044715
    %v1552 = vmul.f32 %v1520, 0.044715
    %v1553 = vmul.f32 %v1521, 0.044715
    %v1554 = vmul.f32 %v1522, 0.044715
    %v1555 = vmul.f32 %v1523, 0.044715
    %v1556 = vmul.f32 %v1524, 0.044715
    %v1557 = vmul.f32 %v1525, 0.044715
    %v1558 = vmul.f32 %v1526, 0.044715
    %v1559 = vmul.f32 %v1527, 0.044715
    %v1560 = vmul.f32 %v1528, 0.044715
    %v1561 = vmul.f32 %v1529, 0.044715
    %v1562 = vmul.f32 %v1530, 0.044715
    %v1563 = vmul.f32 %v1531, 0.044715
    %v1564 = vmul.f32 %v1532, 0.044715
    %v1565 = vmul.f32 %v1533, 0.044715
    %v1566 = vmul.f32 %v1534, 0.044715
    %v1567 = vmul.f32 %v1535, 0.044715
    %v1568 = vmul.f32 %v1536, 0.044715
    %v1569 = vmul.f32 %v1537, 0.044715
    %v1570 = vmul.f32 %v1538, 0.044715
    %v1571 = vmul.f32 %v1539, 0.044715
    %v1572 = vmul.f32 %v1540, 0.044715
    %v1573 = vmul.f32 %v1541, 0.044715
    %v1574 = vmul.f32 %v1542, 0.044715
    %v1575 = vmul.f32 %v1543, 0.044715
    %v1576 = vmul.f32 %v1544, 0.044715
    %v1577 = vadd.f32 %v1449, %v1545
    %v1578 = vadd.f32 %v1450, %v1546
    %v1579 = vadd.f32 %v1451, %v1547
    %v1580 = vadd.f32 %v1452, %v1548
    %v1581 = vadd.f32 %v1453, %v1549
    %v1582 = vadd.f32 %v1454, %v1550
    %v1583 = vadd.f32 %v1455, %v1551
    %v1584 = vadd.f32 %v1456, %v1552
    %v1585 = vadd.f32 %v1457, %v1553
    %v1586 = vadd.f32 %v1458, %v1554
    %v1587 = vadd.f32 %v1459, %v1555
    %v1588 = vadd.f32 %v1460, %v1556
    %v1589 = vadd.f32 %v1461, %v1557
    %v1590 = vadd.f32 %v1462, %v1558
    %v1591 = vadd.f32 %v1463, %v1559
    %v1592 = vadd.f32 %v1464, %v1560
    %v1593 = vadd.f32 %v1465, %v1561
    %v1594 = vadd.f32 %v1466, %v1562
    %v1595 = vadd.f32 %v1467, %v1563
    %v1596 = vadd.f32 %v1468, %v1564
    %v1597 = vadd.f32 %v1469, %v1565
    %v1598 = vadd.f32 %v1470, %v1566
    %v1599 = vadd.f32 %v1471, %v1567
    %v1600 = vadd.f32 %v1472, %v1568
    %v1601 = vadd.f32 %v1473, %v1569
    %v1602 = vadd.f32 %v1474, %v1570
    %v1603 = vadd.f32 %v1475, %v1571
    %v1604 = vadd.f32 %v1476, %v1572
    %v1605 = vadd.f32 %v1477, %v1573
    %v1606 = vadd.f32 %v1478, %v1574
    %v1607 = vadd.f32 %v1479, %v1575
    %v1608 = vadd.f32 %v1480, %v1576
    %v1609 = vmul.f32 %v1577, 0.7978846
    %v1610 = vmul.f32 %v1578, 0.7978846
    %v1611 = vmul.f32 %v1579, 0.7978846
    %v1612 = vmul.f32 %v1580, 0.7978846
    %v1613 = vmul.f32 %v1581, 0.7978846
    %v1614 = vmul.f32 %v1582, 0.7978846
    %v1615 = vmul.f32 %v1583, 0.7978846
    %v1616 = vmul.f32 %v1584, 0.7978846
    %v1617 = vmul.f32 %v1585, 0.7978846
    %v1618 = vmul.f32 %v1586, 0.7978846
    %v1619 = vmul.f32 %v1587, 0.7978846
    %v1620 = vmul.f32 %v1588, 0.7978846
    %v1621 = vmul.f32 %v1589, 0.7978846
    %v1622 = vmul.f32 %v1590, 0.7978846
    %v1623 = vmul.f32 %v1591, 0.7978846
    %v1624 = vmul.f32 %v1592, 0.7978846
    %v1625 = vmul.f32 %v1593, 0.7978846
    %v1626 = vmul.f32 %v1594, 0.7978846
    %v1627 = vmul.f32 %v1595, 0.7978846
    %v1628 = vmul.f32 %v1596, 0.7978846
    %v1629 = vmul.f32 %v1597, 0.7978846
    %v1630 = vmul.f32 %v1598, 0.7978846
    %v1631 = vmul.f32 %v1599, 0.7978846
    %v1632 = vmul.f32 %v1600, 0.7978846
    %v1633 = vmul.f32 %v1601, 0.7978846
    %v1634 = vmul.f32 %v1602, 0.7978846
    %v1635 = vmul.f32 %v1603, 0.7978846
    %v1636 = vmul.f32 %v1604, 0.7978846
    %v1637 = vmul.f32 %v1605, 0.7978846
    %v1638 = vmul.f32 %v1606, 0.7978846
    %v1639 = vmul.f32 %v1607, 0.7978846
    %v1640 = vmul.f32 %v1608, 0.7978846
    %v1641 = vtanh.pop %v1609
    %v1642 = vtanh.pop %v1610
    %v1643 = vtanh.pop %v1611
    %v1644 = vtanh.pop %v1612
    %v1645 = vtanh.pop %v1613
    %v1646 = vtanh.pop %v1614
    %v1647 = vtanh.pop %v1615
    %v1648 = vtanh.pop %v1616
    %v1649 = vtanh.pop %v1617
    %v1650 = vtanh.pop %v1618
    %v1651 = vtanh.pop %v1619
    %v1652 = vtanh.pop %v1620
    %v1653 = vtanh.pop %v1621
    %v1654 = vtanh.pop %v1622
    %v1655 = vtanh.pop %v1623
    %v1656 = vtanh.pop %v1624
    %v1657 = vtanh.pop %v1625
    %v1658 = vtanh.pop %v1626
    %v1659 = vtanh.pop %v1627
    %v1660 = vtanh.pop %v1628
    %v1661 = vtanh.pop %v1629
    %v1662 = vtanh.pop %v1630
    %v1663 = vtanh.pop %v1631
    %v1664 = vtanh.pop %v1632
    %v1665 = vtanh.pop %v1633
    %v1666 = vtanh.pop %v1634
    %v1667 = vtanh.pop %v1635
    %v1668 = vtanh.pop %v1636
    %v1669 = vtanh.pop %v1637
    %v1670 = vtanh.pop %v1638
    %v1671 = vtanh.pop %v1639
    %v1672 = vtanh.pop %v1640
    %v1673 = vadd.f32 %v1641, 1.0
    %v1674 = vadd.f32 %v1642, 1.0
    %v1675 = vadd.f32 %v1643, 1.0
    %v1676 = vadd.f32 %v1644, 1.0
    %v1677 = vadd.f32 %v1645, 1.0
    %v1678 = vadd.f32 %v1646, 1.0
    %v1679 = vadd.f32 %v1647, 1.0
    %v1680 = vadd.f32 %v1648, 1.0
    %v1681 = vadd.f32 %v1649, 1.0
    %v1682 = vadd.f32 %v1650, 1.0
    %v1683 = vadd.f32 %v1651, 1.0
    %v1684 = vadd.f32 %v1652, 1.0
    %v1685 = vadd.f32 %v1653, 1.0
    %v1686 = vadd.f32 %v1654, 1.0
    %v1687 = vadd.f32 %v1655, 1.0
    %v1688 = vadd.f32 %v1656, 1.0
    %v1689 = vadd.f32 %v1657, 1.0
    %v1690 = vadd.f32 %v1658, 1.0
    %v1691 = vadd.f32 %v1659, 1.0
    %v1692 = vadd.f32 %v1660, 1.0
    %v1693 = vadd.f32 %v1661, 1.0
    %v1694 = vadd.f32 %v1662, 1.0
    %v1695 = vadd.f32 %v1663, 1.0
    %v1696 = vadd.f32 %v1664, 1.0
    %v1697 = vadd.f32 %v1665, 1.0
    %v1698 = vadd.f32 %v1666, 1.0
    %v1699 = vadd.f32 %v1667, 1.0
    %v1700 = vadd.f32 %v1668, 1.0
    %v1701 = vadd.f32 %v1669, 1.0
    %v1702 = vadd.f32 %v1670, 1.0
    %v1703 = vadd.f32 %v1671, 1.0
    %v1704 = vadd.f32 %v1672, 1.0
    %v1705 = vmul.f32 %v1673, 0.5
    %v1706 = vmul.f32 %v1674, 0.5
    %v1707 = vmul.f32 %v1675, 0.5
    %v1708 = vmul.f32 %v1676, 0.5
    %v1709 = vmul.f32 %v1677, 0.5
    %v1710 = vmul.f32 %v1678, 0.5
    %v1711 = vmul.f32 %v1679, 0.5
    %v1712 = vmul.f32 %v1680, 0.5
    %v1713 = vmul.f32 %v1681, 0.5
    %v1714 = vmul.f32 %v1682, 0.5
    %v1715 = vmul.f32 %v1683, 0.5
    %v1716 = vmul.f32 %v1684, 0.5
    %v1717 = vmul.f32 %v1685, 0.5
    %v1718 = vmul.f32 %v1686, 0.5
    %v1719 = vmul.f32 %v1687, 0.5
    %v1720 = vmul.f32 %v1688, 0.5
    %v1721 = vmul.f32 %v1689, 0.5
    %v1722 = vmul.f32 %v1690, 0.5
    %v1723 = vmul.f32 %v1691, 0.5
    %v1724 = vmul.f32 %v1692, 0.5
    %v1725 = vmul.f32 %v1693, 0.5
    %v1726 = vmul.f32 %v1694, 0.5
    %v1727 = vmul.f32 %v1695, 0.5
    %v1728 = vmul.f32 %v1696, 0.5
    %v1729 = vmul.f32 %v1697, 0.5
    %v1730 = vmul.f32 %v1698, 0.5
    %v1731 = vmul.f32 %v1699, 0.5
    %v1732 = vmul.f32 %v1700, 0.5
    %v1733 = vmul.f32 %v1701, 0.5
    %v1734 = vmul.f32 %v1702, 0.5
    %v1735 = vmul.f32 %v1703, 0.5
    %v1736 = vmul.f32 %v1704, 0.5
    %v1737 = vmul.f32 %v1449, %v1705
    %v1738 = vmul.f32 %v1450, %v1706
    %v1739 = vmul.f32 %v1451, %v1707
    %v1740 = vmul.f32 %v1452, %v1708
    %v1741 = vmul.f32 %v1453, %v1709
    %v1742 = vmul.f32 %v1454, %v1710
    %v1743 = vmul.f32 %v1455, %v1711
    %v1744 = vmul.f32 %v1456, %v1712
    %v1745 = vmul.f32 %v1457, %v1713
    %v1746 = vmul.f32 %v1458, %v1714
    %v1747 = vmul.f32 %v1459, %v1715
    %v1748 = vmul.f32 %v1460, %v1716
    %v1749 = vmul.f32 %v1461, %v1717
    %v1750 = vmul.f32 %v1462, %v1718
    %v1751 = vmul.f32 %v1463, %v1719
    %v1752 = vmul.f32 %v1464, %v1720
    %v1753 = vmul.f32 %v1465, %v1721
    %v1754 = vmul.f32 %v1466, %v1722
    %v1755 = vmul.f32 %v1467, %v1723
    %v1756 = vmul.f32 %v1468, %v1724
    %v1757 = vmul.f32 %v1469, %v1725
    %v1758 = vmul.f32 %v1470, %v1726
    %v1759 = vmul.f32 %v1471, %v1727
    %v1760 = vmul.f32 %v1472, %v1728
    %v1761 = vmul.f32 %v1473, %v1729
    %v1762 = vmul.f32 %v1474, %v1730
    %v1763 = vmul.f32 %v1475, %v1731
    %v1764 = vmul.f32 %v1476, %v1732
    %v1765 = vmul.f32 %v1477, %v1733
    %v1766 = vmul.f32 %v1478, %v1734
    %v1767 = vmul.f32 %v1479, %v1735
    %v1768 = vmul.f32 %v1480, %v1736
    %v1769 = vld [vmem:[%s1] sm:$0xff]
    %v1770 = vld [vmem:[%s1 + $0x8] sm:$0xff]
    %v1771 = vld [vmem:[%s1 + $0x10] sm:$0xff]
    %v1772 = vld [vmem:[%s1 + $0x18] sm:$0xff]
    %v1773 = vld [vmem:[%s1 + $0x20] sm:$0xff]
    %v1774 = vld [vmem:[%s1 + $0x28] sm:$0xff]
    %v1775 = vld [vmem:[%s1 + $0x30] sm:$0xff]
    %v1776 = vld [vmem:[%s1 + $0x38] sm:$0xff]
    %v1777 = vld [vmem:[%s1 + $0x40] sm:$0xff]
    %v1778 = vld [vmem:[%s1 + $0x48] sm:$0xff]
    %v1779 = vld [vmem:[%s1 + $0x50] sm:$0xff]
    %v1780 = vld [vmem:[%s1 + $0x58] sm:$0xff]
    %v1781 = vld [vmem:[%s1 + $0x60] sm:$0xff]
    %v1782 = vld [vmem:[%s1 + $0x68] sm:$0xff]
    %v1783 = vld [vmem:[%s1 + $0x70] sm:$0xff]
    %v1784 = vld [vmem:[%s1 + $0x78] sm:$0xff]
    %v1785 = vld [vmem:[%s1 + $0x80] sm:$0xff]
    %v1786 = vld [vmem:[%s1 + $0x88] sm:$0xff]
    %v1787 = vld [vmem:[%s1 + $0x90] sm:$0xff]
    %v1788 = vld [vmem:[%s1 + $0x98] sm:$0xff]
    %v1789 = vld [vmem:[%s1 + $0xa0] sm:$0xff]
    %v1790 = vld [vmem:[%s1 + $0xa8] sm:$0xff]
    %v1791 = vld [vmem:[%s1 + $0xb0] sm:$0xff]
    %v1792 = vld [vmem:[%s1 + $0xb8] sm:$0xff]
    %v1793 = vld [vmem:[%s1 + $0xc0] sm:$0xff]
    %v1794 = vld [vmem:[%s1 + $0xc8] sm:$0xff]
    %v1795 = vld [vmem:[%s1 + $0xd0] sm:$0xff]
    %v1796 = vld [vmem:[%s1 + $0xd8] sm:$0xff]
    %v1797 = vld [vmem:[%s1 + $0xe0] sm:$0xff]
    %v1798 = vld [vmem:[%s1 + $0xe8] sm:$0xff]
    %v1799 = vld [vmem:[%s1 + $0xf0] sm:$0xff]
    %v1800 = vld [vmem:[%s1 + $0xf8] sm:$0xff]
    %vm1801 = vcmp.eq.s32.totalorder %v1769, 0
    %vm1802 = vcmp.eq.s32.totalorder %v1770, 0
    %vm1803 = vcmp.eq.s32.totalorder %v1771, 0
    %vm1804 = vcmp.eq.s32.totalorder %v1772, 0
    %vm1805 = vcmp.eq.s32.totalorder %v1773, 0
    %vm1806 = vcmp.eq.s32.totalorder %v1774, 0
    %vm1807 = vcmp.eq.s32.totalorder %v1775, 0
    %vm1808 = vcmp.eq.s32.totalorder %v1776, 0
    %vm1809 = vcmp.eq.s32.totalorder %v1777, 0
    %vm1810 = vcmp.eq.s32.totalorder %v1778, 0
    %vm1811 = vcmp.eq.s32.totalorder %v1779, 0
    %vm1812 = vcmp.eq.s32.totalorder %v1780, 0
    %vm1813 = vcmp.eq.s32.totalorder %v1781, 0
    %vm1814 = vcmp.eq.s32.totalorder %v1782, 0
    %vm1815 = vcmp.eq.s32.totalorder %v1783, 0
    %vm1816 = vcmp.eq.s32.totalorder %v1784, 0
    %vm1817 = vcmp.eq.s32.totalorder %v1785, 0
    %vm1818 = vcmp.eq.s32.totalorder %v1786, 0
    %vm1819 = vcmp.eq.s32.totalorder %v1787, 0
    %vm1820 = vcmp.eq.s32.totalorder %v1788, 0
    %vm1821 = vcmp.eq.s32.totalorder %v1789, 0
    %vm1822 = vcmp.eq.s32.totalorder %v1790, 0
    %vm1823 = vcmp.eq.s32.totalorder %v1791, 0
    %vm1824 = vcmp.eq.s32.totalorder %v1792, 0
    %vm1825 = vcmp.eq.s32.totalorder %v1793, 0
    %vm1826 = vcmp.eq.s32.totalorder %v1794, 0
    %vm1827 = vcmp.eq.s32.totalorder %v1795, 0
    %vm1828 = vcmp.eq.s32.totalorder %v1796, 0
    %vm1829 = vcmp.eq.s32.totalorder %v1797, 0
    %vm1830 = vcmp.eq.s32.totalorder %v1798, 0
    %vm1831 = vcmp.eq.s32.totalorder %v1799, 0
    %vm1832 = vcmp.eq.s32.totalorder %v1800, 0
    %v1833 = vsel %vm1801, 1, 0
    %v1834 = vsel %vm1802, 1, 0
    %v1835 = vsel %vm1803, 1, 0
    %v1836 = vsel %vm1804, 1, 0
    %v1837 = vsel %vm1805, 1, 0
    %v1838 = vsel %vm1806, 1, 0
    %v1839 = vsel %vm1807, 1, 0
    %v1840 = vsel %vm1808, 1, 0
    %v1841 = vsel %vm1809, 1, 0
    %v1842 = vsel %vm1810, 1, 0
    %v1843 = vsel %vm1811, 1, 0
    %v1844 = vsel %vm1812, 1, 0
    %v1845 = vsel %vm1813, 1, 0
    %v1846 = vsel %vm1814, 1, 0
    %v1847 = vsel %vm1815, 1, 0
    %v1848 = vsel %vm1816, 1, 0
    %v1849 = vsel %vm1817, 1, 0
    %v1850 = vsel %vm1818, 1, 0
    %v1851 = vsel %vm1819, 1, 0
    %v1852 = vsel %vm1820, 1, 0
    %v1853 = vsel %vm1821, 1, 0
    %v1854 = vsel %vm1822, 1, 0
    %v1855 = vsel %vm1823, 1, 0
    %v1856 = vsel %vm1824, 1, 0
    %v1857 = vsel %vm1825, 1, 0
    %v1858 = vsel %vm1826, 1, 0
    %v1859 = vsel %vm1827, 1, 0
    %v1860 = vsel %vm1828, 1, 0
    %v1861 = vsel %vm1829, 1, 0
    %v1862 = vsel %vm1830, 1, 0
    %v1863 = vsel %vm1831, 1, 0
    %v1864 = vsel %vm1832, 1, 0
    %1865 = vset.pattern.permute.xlu0 0
    %1866 = vperm.xlu0 %1865, %v1833
    %v1867 = vpop.permute.xlu0 %1866
    %1868 = vset.pattern.permute.xlu0 0
    %1869 = vperm.xlu0 %1868, %v1834
    %v1870 = vpop.permute.xlu0 %1869
    %1871 = vset.pattern.permute.xlu0 0
    %1872 = vperm.xlu0 %1871, %v1835
    %v1873 = vpop.permute.xlu0 %1872
    %1874 = vset.pattern.permute.xlu0 0
    %1875 = vperm.xlu0 %1874, %v1836
    %v1876 = vpop.permute.xlu0 %1875
    %1877 = vset.pattern.permute.xlu0 0
    %1878 = vperm.xlu0 %1877, %v1837
    %v1879 = vpop.permute.xlu0 %1878
    %1880 = vset.pattern.permute.xlu0 0
    %1881 = vperm.xlu0 %1880, %v1838
    %v1882 = vpop.permute.xlu0 %1881
    %1883 = vset.pattern.permute.xlu0 0
    %1884 = vperm.xlu0 %1883, %v1839
    %v1885 = vpop.permute.xlu0 %1884
    %1886 = vset.pattern.permute.xlu0 0
    %1887 = vperm.xlu0 %1886, %v1840
    %v1888 = vpop.permute.xlu0 %1887
    %1889 = vset.pattern.permute.xlu0 0
    %1890 = vperm.xlu0 %1889, %v1841
    %v1891 = vpop.permute.xlu0 %1890
    %1892 = vset.pattern.permute.xlu0 0
    %1893 = vperm.xlu0 %1892, %v1842
    %v1894 = vpop.permute.xlu0 %1893
    %1895 = vset.pattern.permute.xlu0 0
    %1896 = vperm.xlu0 %1895, %v1843
    %v1897 = vpop.permute.xlu0 %1896
    %1898 = vset.pattern.permute.xlu0 0
    %1899 = vperm.xlu0 %1898, %v1844
    %v1900 = vpop.permute.xlu0 %1899
    %1901 = vset.pattern.permute.xlu0 0
    %1902 = vperm.xlu0 %1901, %v1845
    %v1903 = vpop.permute.xlu0 %1902
    %1904 = vset.pattern.permute.xlu0 0
    %1905 = vperm.xlu0 %1904, %v1846
    %v1906 = vpop.permute.xlu0 %1905
    %1907 = vset.pattern.permute.xlu0 0
    %1908 = vperm.xlu0 %1907, %v1847
    %v1909 = vpop.permute.xlu0 %1908
    %1910 = vset.pattern.permute.xlu0 0
    %1911 = vperm.xlu0 %1910, %v1848
    %v1912 = vpop.permute.xlu0 %1911
    %1913 = vset.pattern.permute.xlu0 0
    %1914 = vperm.xlu0 %1913, %v1849
    %v1915 = vpop.permute.xlu0 %1914
    %1916 = vset.pattern.permute.xlu0 0
    %1917 = vperm.xlu0 %1916, %v1850
    %v1918 = vpop.permute.xlu0 %1917
    %1919 = vset.pattern.permute.xlu0 0
    %1920 = vperm.xlu0 %1919, %v1851
    %v1921 = vpop.permute.xlu0 %1920
    %1922 = vset.pattern.permute.xlu0 0
    %1923 = vperm.xlu0 %1922, %v1852
    %v1924 = vpop.permute.xlu0 %1923
    %1925 = vset.pattern.permute.xlu0 0
    %1926 = vperm.xlu0 %1925, %v1853
    %v1927 = vpop.permute.xlu0 %1926
    %1928 = vset.pattern.permute.xlu0 0
    %1929 = vperm.xlu0 %1928, %v1854
    %v1930 = vpop.permute.xlu0 %1929
    %1931 = vset.pattern.permute.xlu0 0
    %1932 = vperm.xlu0 %1931, %v1855
    %v1933 = vpop.permute.xlu0 %1932
    %1934 = vset.pattern.permute.xlu0 0
    %1935 = vperm.xlu0 %1934, %v1856
    %v1936 = vpop.permute.xlu0 %1935
    %1937 = vset.pattern.permute.xlu0 0
    %1938 = vperm.xlu0 %1937, %v1857
    %v1939 = vpop.permute.xlu0 %1938
    %1940 = vset.pattern.permute.xlu0 0
    %1941 = vperm.xlu0 %1940, %v1858
    %v1942 = vpop.permute.xlu0 %1941
    %1943 = vset.pattern.permute.xlu0 0
    %1944 = vperm.xlu0 %1943, %v1859
    %v1945 = vpop.permute.xlu0 %1944
    %1946 = vset.pattern.permute.xlu0 0
    %1947 = vperm.xlu0 %1946, %v1860
    %v1948 = vpop.permute.xlu0 %1947
    %1949 = vset.pattern.permute.xlu0 0
    %1950 = vperm.xlu0 %1949, %v1861
    %v1951 = vpop.permute.xlu0 %1950
    %1952 = vset.pattern.permute.xlu0 0
    %1953 = vperm.xlu0 %1952, %v1862
    %v1954 = vpop.permute.xlu0 %1953
    %1955 = vset.pattern.permute.xlu0 0
    %1956 = vperm.xlu0 %1955, %v1863
    %v1957 = vpop.permute.xlu0 %1956
    %1958 = vset.pattern.permute.xlu0 0
    %1959 = vperm.xlu0 %1958, %v1864
    %v1960 = vpop.permute.xlu0 %1959
    %vm1961 = vcmp.eq.s32.totalorder %v1867, 1
    %vm1962 = vcmp.eq.s32.totalorder %v1870, 1
    %vm1963 = vcmp.eq.s32.totalorder %v1873, 1
    %vm1964 = vcmp.eq.s32.totalorder %v1876, 1
    %vm1965 = vcmp.eq.s32.totalorder %v1879, 1
    %vm1966 = vcmp.eq.s32.totalorder %v1882, 1
    %vm1967 = vcmp.eq.s32.totalorder %v1885, 1
    %vm1968 = vcmp.eq.s32.totalorder %v1888, 1
    %vm1969 = vcmp.eq.s32.totalorder %v1891, 1
    %vm1970 = vcmp.eq.s32.totalorder %v1894, 1
    %vm1971 = vcmp.eq.s32.totalorder %v1897, 1
    %vm1972 = vcmp.eq.s32.totalorder %v1900, 1
    %vm1973 = vcmp.eq.s32.totalorder %v1903, 1
    %vm1974 = vcmp.eq.s32.totalorder %v1906, 1
    %vm1975 = vcmp.eq.s32.totalorder %v1909, 1
    %vm1976 = vcmp.eq.s32.totalorder %v1912, 1
    %vm1977 = vcmp.eq.s32.totalorder %v1915, 1
    %vm1978 = vcmp.eq.s32.totalorder %v1918, 1
    %vm1979 = vcmp.eq.s32.totalorder %v1921, 1
    %vm1980 = vcmp.eq.s32.totalorder %v1924, 1
    %vm1981 = vcmp.eq.s32.totalorder %v1927, 1
    %vm1982 = vcmp.eq.s32.totalorder %v1930, 1
    %vm1983 = vcmp.eq.s32.totalorder %v1933, 1
    %vm1984 = vcmp.eq.s32.totalorder %v1936, 1
    %vm1985 = vcmp.eq.s32.totalorder %v1939, 1
    %vm1986 = vcmp.eq.s32.totalorder %v1942, 1
    %vm1987 = vcmp.eq.s32.totalorder %v1945, 1
    %vm1988 = vcmp.eq.s32.totalorder %v1948, 1
    %vm1989 = vcmp.eq.s32.totalorder %v1951, 1
    %vm1990 = vcmp.eq.s32.totalorder %v1954, 1
    %vm1991 = vcmp.eq.s32.totalorder %v1957, 1
    %vm1992 = vcmp.eq.s32.totalorder %v1960, 1
    %v1993 = vsel %vm1961, %v1737, -inf
    %v1994 = vsel %vm1962, %v1738, -inf
    %v1995 = vsel %vm1963, %v1739, -inf
    %v1996 = vsel %vm1964, %v1740, -inf
    %v1997 = vsel %vm1965, %v1741, -inf
    %v1998 = vsel %vm1966, %v1742, -inf
    %v1999 = vsel %vm1967, %v1743, -inf
    %v2000 = vsel %vm1968, %v1744, -inf
    %v2001 = vsel %vm1969, %v1745, -inf
    %v2002 = vsel %vm1970, %v1746, -inf
    %v2003 = vsel %vm1971, %v1747, -inf
    %v2004 = vsel %vm1972, %v1748, -inf
    %v2005 = vsel %vm1973, %v1749, -inf
    %v2006 = vsel %vm1974, %v1750, -inf
    %v2007 = vsel %vm1975, %v1751, -inf
    %v2008 = vsel %vm1976, %v1752, -inf
    %v2009 = vsel %vm1977, %v1753, -inf
    %v2010 = vsel %vm1978, %v1754, -inf
    %v2011 = vsel %vm1979, %v1755, -inf
    %v2012 = vsel %vm1980, %v1756, -inf
    %v2013 = vsel %vm1981, %v1757, -inf
    %v2014 = vsel %vm1982, %v1758, -inf
    %v2015 = vsel %vm1983, %v1759, -inf
    %v2016 = vsel %vm1984, %v1760, -inf
    %v2017 = vsel %vm1985, %v1761, -inf
    %v2018 = vsel %vm1986, %v1762, -inf
    %v2019 = vsel %vm1987, %v1763, -inf
    %v2020 = vsel %vm1988, %v1764, -inf
    %v2021 = vsel %vm1989, %v1765, -inf
    %v2022 = vsel %vm1990, %v1766, -inf
    %v2023 = vsel %vm1991, %v1767, -inf
    %v2024 = vsel %vm1992, %v1768, -inf
    %v2025 = vmax.f32 %v1993, %v1997
    %v2026 = vmax.f32 %v1994, %v1998
    %v2027 = vmax.f32 %v1995, %v1999
    %v2028 = vmax.f32 %v1996, %v2000
    %v2029 = vmax.f32 %v2025, %v2001
    %v2030 = vmax.f32 %v2026, %v2002
    %v2031 = vmax.f32 %v2027, %v2003
    %v2032 = vmax.f32 %v2028, %v2004
    %v2033 = vmax.f32 %v2029, %v2005
    %v2034 = vmax.f32 %v2030, %v2006
    %v2035 = vmax.f32 %v2031, %v2007
    %v2036 = vmax.f32 %v2032, %v2008
    %v2037 = vmax.f32 %v2033, %v2009
    %v2038 = vmax.f32 %v2034, %v2010
    %v2039 = vmax.f32 %v2035, %v2011
    %v2040 = vmax.f32 %v2036, %v2012
    %v2041 = vmax.f32 %v2037, %v2013
    %v2042 = vmax.f32 %v2038, %v2014
    %v2043 = vmax.f32 %v2039, %v2015
    %v2044 = vmax.f32 %v2040, %v2016
    %v2045 = vmax.f32 %v2041, %v2017
    %v2046 = vmax.f32 %v2042, %v2018
    %v2047 = vmax.f32 %v2043, %v2019
    %v2048 = vmax.f32 %v2044, %v2020
    %v2049 = vmax.f32 %v2045, %v2021
    %v2050 = vmax.f32 %v2046, %v2022
    %v2051 = vmax.f32 %v2047, %v2023
    %v2052 = vmax.f32 %v2048, %v2024
    %v2053 = vmax.f32 %v2049, %v2050
    %v2054 = vmax.f32 %v2051, %v2052
    %v2055 = vmax.f32 %v2053, %v2054
    %v2056 = vrot.slane %v2055, 4
    %v2057 = vmax.f32 %v2055, %v2056
    %v2058 = vrot.slane %v2057, 2
    %v2059 = vmax.f32 %v2057, %v2058
    %v2060 = vrot.slane %v2059, 1
    %v2061 = vmax.f32 %v2059, %v2060
    %vm2062 = vcmp.eq.s32.totalorder %v1769, 1
    %vm2063 = vcmp.eq.s32.totalorder %v1770, 1
    %vm2064 = vcmp.eq.s32.totalorder %v1771, 1
    %vm2065 = vcmp.eq.s32.totalorder %v1772, 1
    %vm2066 = vcmp.eq.s32.totalorder %v1773, 1
    %vm2067 = vcmp.eq.s32.totalorder %v1774, 1
    %vm2068 = vcmp.eq.s32.totalorder %v1775, 1
    %vm2069 = vcmp.eq.s32.totalorder %v1776, 1
    %vm2070 = vcmp.eq.s32.totalorder %v1777, 1
    %vm2071 = vcmp.eq.s32.totalorder %v1778, 1
    %vm2072 = vcmp.eq.s32.totalorder %v1779, 1
    %vm2073 = vcmp.eq.s32.totalorder %v1780, 1
    %vm2074 = vcmp.eq.s32.totalorder %v1781, 1
    %vm2075 = vcmp.eq.s32.totalorder %v1782, 1
    %vm2076 = vcmp.eq.s32.totalorder %v1783, 1
    %vm2077 = vcmp.eq.s32.totalorder %v1784, 1
    %vm2078 = vcmp.eq.s32.totalorder %v1785, 1
    %vm2079 = vcmp.eq.s32.totalorder %v1786, 1
    %vm2080 = vcmp.eq.s32.totalorder %v1787, 1
    %vm2081 = vcmp.eq.s32.totalorder %v1788, 1
    %vm2082 = vcmp.eq.s32.totalorder %v1789, 1
    %vm2083 = vcmp.eq.s32.totalorder %v1790, 1
    %vm2084 = vcmp.eq.s32.totalorder %v1791, 1
    %vm2085 = vcmp.eq.s32.totalorder %v1792, 1
    %vm2086 = vcmp.eq.s32.totalorder %v1793, 1
    %vm2087 = vcmp.eq.s32.totalorder %v1794, 1
    %vm2088 = vcmp.eq.s32.totalorder %v1795, 1
    %vm2089 = vcmp.eq.s32.totalorder %v1796, 1
    %vm2090 = vcmp.eq.s32.totalorder %v1797, 1
    %vm2091 = vcmp.eq.s32.totalorder %v1798, 1
    %vm2092 = vcmp.eq.s32.totalorder %v1799, 1
    %vm2093 = vcmp.eq.s32.totalorder %v1800, 1
    %v2094 = vsel %vm2062, 1, 0
    %v2095 = vsel %vm2063, 1, 0
    %v2096 = vsel %vm2064, 1, 0
    %v2097 = vsel %vm2065, 1, 0
    %v2098 = vsel %vm2066, 1, 0
    %v2099 = vsel %vm2067, 1, 0
    %v2100 = vsel %vm2068, 1, 0
    %v2101 = vsel %vm2069, 1, 0
    %v2102 = vsel %vm2070, 1, 0
    %v2103 = vsel %vm2071, 1, 0
    %v2104 = vsel %vm2072, 1, 0
    %v2105 = vsel %vm2073, 1, 0
    %v2106 = vsel %vm2074, 1, 0
    %v2107 = vsel %vm2075, 1, 0
    %v2108 = vsel %vm2076, 1, 0
    %v2109 = vsel %vm2077, 1, 0
    %v2110 = vsel %vm2078, 1, 0
    %v2111 = vsel %vm2079, 1, 0
    %v2112 = vsel %vm2080, 1, 0
    %v2113 = vsel %vm2081, 1, 0
    %v2114 = vsel %vm2082, 1, 0
    %v2115 = vsel %vm2083, 1, 0
    %v2116 = vsel %vm2084, 1, 0
    %v2117 = vsel %vm2085, 1, 0
    %v2118 = vsel %vm2086, 1, 0
    %v2119 = vsel %vm2087, 1, 0
    %v2120 = vsel %vm2088, 1, 0
    %v2121 = vsel %vm2089, 1, 0
    %v2122 = vsel %vm2090, 1, 0
    %v2123 = vsel %vm2091, 1, 0
    %v2124 = vsel %vm2092, 1, 0
    %v2125 = vsel %vm2093, 1, 0
    %2126 = vset.pattern.permute.xlu0 0
    %2127 = vperm.xlu0 %2126, %v2094
    %v2128 = vpop.permute.xlu0 %2127
    %2129 = vset.pattern.permute.xlu0 0
    %2130 = vperm.xlu0 %2129, %v2095
    %v2131 = vpop.permute.xlu0 %2130
    %2132 = vset.pattern.permute.xlu0 0
    %2133 = vperm.xlu0 %2132, %v2096
    %v2134 = vpop.permute.xlu0 %2133
    %2135 = vset.pattern.permute.xlu0 0
    %2136 = vperm.xlu0 %2135, %v2097
    %v2137 = vpop.permute.xlu0 %2136
    %2138 = vset.pattern.permute.xlu0 0
    %2139 = vperm.xlu0 %2138, %v2098
    %v2140 = vpop.permute.xlu0 %2139
    %2141 = vset.pattern.permute.xlu0 0
    %2142 = vperm.xlu0 %2141, %v2099
    %v2143 = vpop.permute.xlu0 %2142
    %2144 = vset.pattern.permute.xlu0 0
    %2145 = vperm.xlu0 %2144, %v2100
    %v2146 = vpop.permute.xlu0 %2145
    %2147 = vset.pattern.permute.xlu0 0
    %2148 = vperm.xlu0 %2147, %v2101
    %v2149 = vpop.permute.xlu0 %2148
    %2150 = vset.pattern.permute.xlu0 0
    %2151 = vperm.xlu0 %2150, %v2102
    %v2152 = vpop.permute.xlu0 %2151
    %2153 = vset.pattern.permute.xlu0 0
    %2154 = vperm.xlu0 %2153, %v2103
    %v2155 = vpop.permute.xlu0 %2154
    %2156 = vset.pattern.permute.xlu0 0
    %2157 = vperm.xlu0 %2156, %v2104
    %v2158 = vpop.permute.xlu0 %2157
    %2159 = vset.pattern.permute.xlu0 0
    %2160 = vperm.xlu0 %2159, %v2105
    %v2161 = vpop.permute.xlu0 %2160
    %2162 = vset.pattern.permute.xlu0 0
    %2163 = vperm.xlu0 %2162, %v2106
    %v2164 = vpop.permute.xlu0 %2163
    %2165 = vset.pattern.permute.xlu0 0
    %2166 = vperm.xlu0 %2165, %v2107
    %v2167 = vpop.permute.xlu0 %2166
    %2168 = vset.pattern.permute.xlu0 0
    %2169 = vperm.xlu0 %2168, %v2108
    %v2170 = vpop.permute.xlu0 %2169
    %2171 = vset.pattern.permute.xlu0 0
    %2172 = vperm.xlu0 %2171, %v2109
    %v2173 = vpop.permute.xlu0 %2172
    %2174 = vset.pattern.permute.xlu0 0
    %2175 = vperm.xlu0 %2174, %v2110
    %v2176 = vpop.permute.xlu0 %2175
    %2177 = vset.pattern.permute.xlu0 0
    %2178 = vperm.xlu0 %2177, %v2111
    %v2179 = vpop.permute.xlu0 %2178
    %2180 = vset.pattern.permute.xlu0 0
    %2181 = vperm.xlu0 %2180, %v2112
    %v2182 = vpop.permute.xlu0 %2181
    %2183 = vset.pattern.permute.xlu0 0
    %2184 = vperm.xlu0 %2183, %v2113
    %v2185 = vpop.permute.xlu0 %2184
    %2186 = vset.pattern.permute.xlu0 0
    %2187 = vperm.xlu0 %2186, %v2114
    %v2188 = vpop.permute.xlu0 %2187
    %2189 = vset.pattern.permute.xlu0 0
    %2190 = vperm.xlu0 %2189, %v2115
    %v2191 = vpop.permute.xlu0 %2190
    %2192 = vset.pattern.permute.xlu0 0
    %2193 = vperm.xlu0 %2192, %v2116
    %v2194 = vpop.permute.xlu0 %2193
    %2195 = vset.pattern.permute.xlu0 0
    %2196 = vperm.xlu0 %2195, %v2117
    %v2197 = vpop.permute.xlu0 %2196
    %2198 = vset.pattern.permute.xlu0 0
    %2199 = vperm.xlu0 %2198, %v2118
    %v2200 = vpop.permute.xlu0 %2199
    %2201 = vset.pattern.permute.xlu0 0
    %2202 = vperm.xlu0 %2201, %v2119
    %v2203 = vpop.permute.xlu0 %2202
    %2204 = vset.pattern.permute.xlu0 0
    %2205 = vperm.xlu0 %2204, %v2120
    %v2206 = vpop.permute.xlu0 %2205
    %2207 = vset.pattern.permute.xlu0 0
    %2208 = vperm.xlu0 %2207, %v2121
    %v2209 = vpop.permute.xlu0 %2208
    %2210 = vset.pattern.permute.xlu0 0
    %2211 = vperm.xlu0 %2210, %v2122
    %v2212 = vpop.permute.xlu0 %2211
    %2213 = vset.pattern.permute.xlu0 0
    %2214 = vperm.xlu0 %2213, %v2123
    %v2215 = vpop.permute.xlu0 %2214
    %2216 = vset.pattern.permute.xlu0 0
    %2217 = vperm.xlu0 %2216, %v2124
    %v2218 = vpop.permute.xlu0 %2217
    %2219 = vset.pattern.permute.xlu0 0
    %2220 = vperm.xlu0 %2219, %v2125
    %v2221 = vpop.permute.xlu0 %2220
    %vm2222 = vcmp.eq.s32.totalorder %v2128, 1
    %vm2223 = vcmp.eq.s32.totalorder %v2131, 1
    %vm2224 = vcmp.eq.s32.totalorder %v2134, 1
    %vm2225 = vcmp.eq.s32.totalorder %v2137, 1
    %vm2226 = vcmp.eq.s32.totalorder %v2140, 1
    %vm2227 = vcmp.eq.s32.totalorder %v2143, 1
    %vm2228 = vcmp.eq.s32.totalorder %v2146, 1
    %vm2229 = vcmp.eq.s32.totalorder %v2149, 1
    %vm2230 = vcmp.eq.s32.totalorder %v2152, 1
    %vm2231 = vcmp.eq.s32.totalorder %v2155, 1
    %vm2232 = vcmp.eq.s32.totalorder %v2158, 1
    %vm2233 = vcmp.eq.s32.totalorder %v2161, 1
    %vm2234 = vcmp.eq.s32.totalorder %v2164, 1
    %vm2235 = vcmp.eq.s32.totalorder %v2167, 1
    %vm2236 = vcmp.eq.s32.totalorder %v2170, 1
    %vm2237 = vcmp.eq.s32.totalorder %v2173, 1
    %vm2238 = vcmp.eq.s32.totalorder %v2176, 1
    %vm2239 = vcmp.eq.s32.totalorder %v2179, 1
    %vm2240 = vcmp.eq.s32.totalorder %v2182, 1
    %vm2241 = vcmp.eq.s32.totalorder %v2185, 1
    %vm2242 = vcmp.eq.s32.totalorder %v2188, 1
    %vm2243 = vcmp.eq.s32.totalorder %v2191, 1
    %vm2244 = vcmp.eq.s32.totalorder %v2194, 1
    %vm2245 = vcmp.eq.s32.totalorder %v2197, 1
    %vm2246 = vcmp.eq.s32.totalorder %v2200, 1
    %vm2247 = vcmp.eq.s32.totalorder %v2203, 1
    %vm2248 = vcmp.eq.s32.totalorder %v2206, 1
    %vm2249 = vcmp.eq.s32.totalorder %v2209, 1
    %vm2250 = vcmp.eq.s32.totalorder %v2212, 1
    %vm2251 = vcmp.eq.s32.totalorder %v2215, 1
    %vm2252 = vcmp.eq.s32.totalorder %v2218, 1
    %vm2253 = vcmp.eq.s32.totalorder %v2221, 1
    %v2254 = vsel %vm2222, %v1737, -inf
    %v2255 = vsel %vm2223, %v1738, -inf
    %v2256 = vsel %vm2224, %v1739, -inf
    %v2257 = vsel %vm2225, %v1740, -inf
    %v2258 = vsel %vm2226, %v1741, -inf
    %v2259 = vsel %vm2227, %v1742, -inf
    %v2260 = vsel %vm2228, %v1743, -inf
    %v2261 = vsel %vm2229, %v1744, -inf
    %v2262 = vsel %vm2230, %v1745, -inf
    %v2263 = vsel %vm2231, %v1746, -inf
    %v2264 = vsel %vm2232, %v1747, -inf
    %v2265 = vsel %vm2233, %v1748, -inf
    %v2266 = vsel %vm2234, %v1749, -inf
    %v2267 = vsel %vm2235, %v1750, -inf
    %v2268 = vsel %vm2236, %v1751, -inf
    %v2269 = vsel %vm2237, %v1752, -inf
    %v2270 = vsel %vm2238, %v1753, -inf
    %v2271 = vsel %vm2239, %v1754, -inf
    %v2272 = vsel %vm2240, %v1755, -inf
    %v2273 = vsel %vm2241, %v1756, -inf
    %v2274 = vsel %vm2242, %v1757, -inf
    %v2275 = vsel %vm2243, %v1758, -inf
    %v2276 = vsel %vm2244, %v1759, -inf
    %v2277 = vsel %vm2245, %v1760, -inf
    %v2278 = vsel %vm2246, %v1761, -inf
    %v2279 = vsel %vm2247, %v1762, -inf
    %v2280 = vsel %vm2248, %v1763, -inf
    %v2281 = vsel %vm2249, %v1764, -inf
    %v2282 = vsel %vm2250, %v1765, -inf
    %v2283 = vsel %vm2251, %v1766, -inf
    %v2284 = vsel %vm2252, %v1767, -inf
    %v2285 = vsel %vm2253, %v1768, -inf
    %v2286 = vmax.f32 %v2254, %v2258
    %v2287 = vmax.f32 %v2255, %v2259
    %v2288 = vmax.f32 %v2256, %v2260
    %v2289 = vmax.f32 %v2257, %v2261
    %v2290 = vmax.f32 %v2286, %v2262
    %v2291 = vmax.f32 %v2287, %v2263
    %v2292 = vmax.f32 %v2288, %v2264
    %v2293 = vmax.f32 %v2289, %v2265
    %v2294 = vmax.f32 %v2290, %v2266
    %v2295 = vmax.f32 %v2291, %v2267
    %v2296 = vmax.f32 %v2292, %v2268
    %v2297 = vmax.f32 %v2293, %v2269
    %v2298 = vmax.f32 %v2294, %v2270
    %v2299 = vmax.f32 %v2295, %v2271
    %v2300 = vmax.f32 %v2296, %v2272
    %v2301 = vmax.f32 %v2297, %v2273
    %v2302 = vmax.f32 %v2298, %v2274
    %v2303 = vmax.f32 %v2299, %v2275
    %v2304 = vmax.f32 %v2300, %v2276
    %v2305 = vmax.f32 %v2301, %v2277
    %v2306 = vmax.f32 %v2302, %v2278
    %v2307 = vmax.f32 %v2303, %v2279
    %v2308 = vmax.f32 %v2304, %v2280
    %v2309 = vmax.f32 %v2305, %v2281
    %v2310 = vmax.f32 %v2306, %v2282
    %v2311 = vmax.f32 %v2307, %v2283
    %v2312 = vmax.f32 %v2308, %v2284
    %v2313 = vmax.f32 %v2309, %v2285
    %v2314 = vmax.f32 %v2310, %v2311
    %v2315 = vmax.f32 %v2312, %v2313
    %v2316 = vmax.f32 %v2314, %v2315
    %v2317 = vrot.slane %v2316, 4
    %v2318 = vmax.f32 %v2316, %v2317
    %v2319 = vrot.slane %v2318, 2
    %v2320 = vmax.f32 %v2318, %v2319
    %v2321 = vrot.slane %v2320, 1
    %v2322 = vmax.f32 %v2320, %v2321
    %vm2323 = vcmp.eq.s32.totalorder %v1769, 2
    %vm2324 = vcmp.eq.s32.totalorder %v1770, 2
    %vm2325 = vcmp.eq.s32.totalorder %v1771, 2
    %vm2326 = vcmp.eq.s32.totalorder %v1772, 2
    %vm2327 = vcmp.eq.s32.totalorder %v1773, 2
    %vm2328 = vcmp.eq.s32.totalorder %v1774, 2
    %vm2329 = vcmp.eq.s32.totalorder %v1775, 2
    %vm2330 = vcmp.eq.s32.totalorder %v1776, 2
    %vm2331 = vcmp.eq.s32.totalorder %v1777, 2
    %vm2332 = vcmp.eq.s32.totalorder %v1778, 2
    %vm2333 = vcmp.eq.s32.totalorder %v1779, 2
    %vm2334 = vcmp.eq.s32.totalorder %v1780, 2
    %vm2335 = vcmp.eq.s32.totalorder %v1781, 2
    %vm2336 = vcmp.eq.s32.totalorder %v1782, 2
    %vm2337 = vcmp.eq.s32.totalorder %v1783, 2
    %vm2338 = vcmp.eq.s32.totalorder %v1784, 2
    %vm2339 = vcmp.eq.s32.totalorder %v1785, 2
    %vm2340 = vcmp.eq.s32.totalorder %v1786, 2
    %vm2341 = vcmp.eq.s32.totalorder %v1787, 2
    %vm2342 = vcmp.eq.s32.totalorder %v1788, 2
    %vm2343 = vcmp.eq.s32.totalorder %v1789, 2
    %vm2344 = vcmp.eq.s32.totalorder %v1790, 2
    %vm2345 = vcmp.eq.s32.totalorder %v1791, 2
    %vm2346 = vcmp.eq.s32.totalorder %v1792, 2
    %vm2347 = vcmp.eq.s32.totalorder %v1793, 2
    %vm2348 = vcmp.eq.s32.totalorder %v1794, 2
    %vm2349 = vcmp.eq.s32.totalorder %v1795, 2
    %vm2350 = vcmp.eq.s32.totalorder %v1796, 2
    %vm2351 = vcmp.eq.s32.totalorder %v1797, 2
    %vm2352 = vcmp.eq.s32.totalorder %v1798, 2
    %vm2353 = vcmp.eq.s32.totalorder %v1799, 2
    %vm2354 = vcmp.eq.s32.totalorder %v1800, 2
    %v2355 = vsel %vm2323, 1, 0
    %v2356 = vsel %vm2324, 1, 0
    %v2357 = vsel %vm2325, 1, 0
    %v2358 = vsel %vm2326, 1, 0
    %v2359 = vsel %vm2327, 1, 0
    %v2360 = vsel %vm2328, 1, 0
    %v2361 = vsel %vm2329, 1, 0
    %v2362 = vsel %vm2330, 1, 0
    %v2363 = vsel %vm2331, 1, 0
    %v2364 = vsel %vm2332, 1, 0
    %v2365 = vsel %vm2333, 1, 0
    %v2366 = vsel %vm2334, 1, 0
    %v2367 = vsel %vm2335, 1, 0
    %v2368 = vsel %vm2336, 1, 0
    %v2369 = vsel %vm2337, 1, 0
    %v2370 = vsel %vm2338, 1, 0
    %v2371 = vsel %vm2339, 1, 0
    %v2372 = vsel %vm2340, 1, 0
    %v2373 = vsel %vm2341, 1, 0
    %v2374 = vsel %vm2342, 1, 0
    %v2375 = vsel %vm2343, 1, 0
    %v2376 = vsel %vm2344, 1, 0
    %v2377 = vsel %vm2345, 1, 0
    %v2378 = vsel %vm2346, 1, 0
    %v2379 = vsel %vm2347, 1, 0
    %v2380 = vsel %vm2348, 1, 0
    %v2381 = vsel %vm2349, 1, 0
    %v2382 = vsel %vm2350, 1, 0
    %v2383 = vsel %vm2351, 1, 0
    %v2384 = vsel %vm2352, 1, 0
    %v2385 = vsel %vm2353, 1, 0
    %v2386 = vsel %vm2354, 1, 0
    %2387 = vset.pattern.permute.xlu0 0
    %2388 = vperm.xlu0 %2387, %v2355
    %v2389 = vpop.permute.xlu0 %2388
    %2390 = vset.pattern.permute.xlu0 0
    %2391 = vperm.xlu0 %2390, %v2356
    %v2392 = vpop.permute.xlu0 %2391
    %2393 = vset.pattern.permute.xlu0 0
    %2394 = vperm.xlu0 %2393, %v2357
    %v2395 = vpop.permute.xlu0 %2394
    %2396 = vset.pattern.permute.xlu0 0
    %2397 = vperm.xlu0 %2396, %v2358
    %v2398 = vpop.permute.xlu0 %2397
    %2399 = vset.pattern.permute.xlu0 0
    %2400 = vperm.xlu0 %2399, %v2359
    %v2401 = vpop.permute.xlu0 %2400
    %2402 = vset.pattern.permute.xlu0 0
    %2403 = vperm.xlu0 %2402, %v2360
    %v2404 = vpop.permute.xlu0 %2403
    %2405 = vset.pattern.permute.xlu0 0
    %2406 = vperm.xlu0 %2405, %v2361
    %v2407 = vpop.permute.xlu0 %2406
    %2408 = vset.pattern.permute.xlu0 0
    %2409 = vperm.xlu0 %2408, %v2362
    %v2410 = vpop.permute.xlu0 %2409
    %2411 = vset.pattern.permute.xlu0 0
    %2412 = vperm.xlu0 %2411, %v2363
    %v2413 = vpop.permute.xlu0 %2412
    %2414 = vset.pattern.permute.xlu0 0
    %2415 = vperm.xlu0 %2414, %v2364
    %v2416 = vpop.permute.xlu0 %2415
    %2417 = vset.pattern.permute.xlu0 0
    %2418 = vperm.xlu0 %2417, %v2365
    %v2419 = vpop.permute.xlu0 %2418
    %2420 = vset.pattern.permute.xlu0 0
    %2421 = vperm.xlu0 %2420, %v2366
    %v2422 = vpop.permute.xlu0 %2421
    %2423 = vset.pattern.permute.xlu0 0
    %2424 = vperm.xlu0 %2423, %v2367
    %v2425 = vpop.permute.xlu0 %2424
    %2426 = vset.pattern.permute.xlu0 0
    %2427 = vperm.xlu0 %2426, %v2368
    %v2428 = vpop.permute.xlu0 %2427
    %2429 = vset.pattern.permute.xlu0 0
    %2430 = vperm.xlu0 %2429, %v2369
    %v2431 = vpop.permute.xlu0 %2430
    %2432 = vset.pattern.permute.xlu0 0
    %2433 = vperm.xlu0 %2432, %v2370
    %v2434 = vpop.permute.xlu0 %2433
    %2435 = vset.pattern.permute.xlu0 0
    %2436 = vperm.xlu0 %2435, %v2371
    %v2437 = vpop.permute.xlu0 %2436
    %2438 = vset.pattern.permute.xlu0 0
    %2439 = vperm.xlu0 %2438, %v2372
    %v2440 = vpop.permute.xlu0 %2439
    %2441 = vset.pattern.permute.xlu0 0
    %2442 = vperm.xlu0 %2441, %v2373
    %v2443 = vpop.permute.xlu0 %2442
    %2444 = vset.pattern.permute.xlu0 0
    %2445 = vperm.xlu0 %2444, %v2374
    %v2446 = vpop.permute.xlu0 %2445
    %2447 = vset.pattern.permute.xlu0 0
    %2448 = vperm.xlu0 %2447, %v2375
    %v2449 = vpop.permute.xlu0 %2448
    %2450 = vset.pattern.permute.xlu0 0
    %2451 = vperm.xlu0 %2450, %v2376
    %v2452 = vpop.permute.xlu0 %2451
    %2453 = vset.pattern.permute.xlu0 0
    %2454 = vperm.xlu0 %2453, %v2377
    %v2455 = vpop.permute.xlu0 %2454
    %2456 = vset.pattern.permute.xlu0 0
    %2457 = vperm.xlu0 %2456, %v2378
    %v2458 = vpop.permute.xlu0 %2457
    %2459 = vset.pattern.permute.xlu0 0
    %2460 = vperm.xlu0 %2459, %v2379
    %v2461 = vpop.permute.xlu0 %2460
    %2462 = vset.pattern.permute.xlu0 0
    %2463 = vperm.xlu0 %2462, %v2380
    %v2464 = vpop.permute.xlu0 %2463
    %2465 = vset.pattern.permute.xlu0 0
    %2466 = vperm.xlu0 %2465, %v2381
    %v2467 = vpop.permute.xlu0 %2466
    %2468 = vset.pattern.permute.xlu0 0
    %2469 = vperm.xlu0 %2468, %v2382
    %v2470 = vpop.permute.xlu0 %2469
    %2471 = vset.pattern.permute.xlu0 0
    %2472 = vperm.xlu0 %2471, %v2383
    %v2473 = vpop.permute.xlu0 %2472
    %2474 = vset.pattern.permute.xlu0 0
    %2475 = vperm.xlu0 %2474, %v2384
    %v2476 = vpop.permute.xlu0 %2475
    %2477 = vset.pattern.permute.xlu0 0
    %2478 = vperm.xlu0 %2477, %v2385
    %v2479 = vpop.permute.xlu0 %2478
    %2480 = vset.pattern.permute.xlu0 0
    %2481 = vperm.xlu0 %2480, %v2386
    %v2482 = vpop.permute.xlu0 %2481
    %vm2483 = vcmp.eq.s32.totalorder %v2389, 1
    %vm2484 = vcmp.eq.s32.totalorder %v2392, 1
    %vm2485 = vcmp.eq.s32.totalorder %v2395, 1
    %vm2486 = vcmp.eq.s32.totalorder %v2398, 1
    %vm2487 = vcmp.eq.s32.totalorder %v2401, 1
    %vm2488 = vcmp.eq.s32.totalorder %v2404, 1
    %vm2489 = vcmp.eq.s32.totalorder %v2407, 1
    %vm2490 = vcmp.eq.s32.totalorder %v2410, 1
    %vm2491 = vcmp.eq.s32.totalorder %v2413, 1
    %vm2492 = vcmp.eq.s32.totalorder %v2416, 1
    %vm2493 = vcmp.eq.s32.totalorder %v2419, 1
    %vm2494 = vcmp.eq.s32.totalorder %v2422, 1
    %vm2495 = vcmp.eq.s32.totalorder %v2425, 1
    %vm2496 = vcmp.eq.s32.totalorder %v2428, 1
    %vm2497 = vcmp.eq.s32.totalorder %v2431, 1
    %vm2498 = vcmp.eq.s32.totalorder %v2434, 1
    %vm2499 = vcmp.eq.s32.totalorder %v2437, 1
    %vm2500 = vcmp.eq.s32.totalorder %v2440, 1
    %vm2501 = vcmp.eq.s32.totalorder %v2443, 1
    %vm2502 = vcmp.eq.s32.totalorder %v2446, 1
    %vm2503 = vcmp.eq.s32.totalorder %v2449, 1
    %vm2504 = vcmp.eq.s32.totalorder %v2452, 1
    %vm2505 = vcmp.eq.s32.totalorder %v2455, 1
    %vm2506 = vcmp.eq.s32.totalorder %v2458, 1
    %vm2507 = vcmp.eq.s32.totalorder %v2461, 1
    %vm2508 = vcmp.eq.s32.totalorder %v2464, 1
    %vm2509 = vcmp.eq.s32.totalorder %v2467, 1
    %vm2510 = vcmp.eq.s32.totalorder %v2470, 1
    %vm2511 = vcmp.eq.s32.totalorder %v2473, 1
    %vm2512 = vcmp.eq.s32.totalorder %v2476, 1
    %vm2513 = vcmp.eq.s32.totalorder %v2479, 1
    %vm2514 = vcmp.eq.s32.totalorder %v2482, 1
    %v2515 = vsel %vm2483, %v1737, -inf
    %v2516 = vsel %vm2484, %v1738, -inf
    %v2517 = vsel %vm2485, %v1739, -inf
    %v2518 = vsel %vm2486, %v1740, -inf
    %v2519 = vsel %vm2487, %v1741, -inf
    %v2520 = vsel %vm2488, %v1742, -inf
    %v2521 = vsel %vm2489, %v1743, -inf
    %v2522 = vsel %vm2490, %v1744, -inf
    %v2523 = vsel %vm2491, %v1745, -inf
    %v2524 = vsel %vm2492, %v1746, -inf
    %v2525 = vsel %vm2493, %v1747, -inf
    %v2526 = vsel %vm2494, %v1748, -inf
    %v2527 = vsel %vm2495, %v1749, -inf
    %v2528 = vsel %vm2496, %v1750, -inf
    %v2529 = vsel %vm2497, %v1751, -inf
    %v2530 = vsel %vm2498, %v1752, -inf
    %v2531 = vsel %vm2499, %v1753, -inf
    %v2532 = vsel %vm2500, %v1754, -inf
    %v2533 = vsel %vm2501, %v1755, -inf
    %v2534 = vsel %vm2502, %v1756, -inf
    %v2535 = vsel %vm2503, %v1757, -inf
    %v2536 = vsel %vm2504, %v1758, -inf
    %v2537 = vsel %vm2505, %v1759, -inf
    %v2538 = vsel %vm2506, %v1760, -inf
    %v2539 = vsel %vm2507, %v1761, -inf
    %v2540 = vsel %vm2508, %v1762, -inf
    %v2541 = vsel %vm2509, %v1763, -inf
    %v2542 = vsel %vm2510, %v1764, -inf
    %v2543 = vsel %vm2511, %v1765, -inf
    %v2544 = vsel %vm2512, %v1766, -inf
    %v2545 = vsel %vm2513, %v1767, -inf
    %v2546 = vsel %vm2514, %v1768, -inf
    %v2547 = vmax.f32 %v2515, %v2519
    %v2548 = vmax.f32 %v2516, %v2520
    %v2549 = vmax.f32 %v2517, %v2521
    %v2550 = vmax.f32 %v2518, %v2522
    %v2551 = vmax.f32 %v2547, %v2523
    %v2552 = vmax.f32 %v2548, %v2524
    %v2553 = vmax.f32 %v2549, %v2525
    %v2554 = vmax.f32 %v2550, %v2526
    %v2555 = vmax.f32 %v2551, %v2527
    %v2556 = vmax.f32 %v2552, %v2528
    %v2557 = vmax.f32 %v2553, %v2529
    %v2558 = vmax.f32 %v2554, %v2530
    %v2559 = vmax.f32 %v2555, %v2531
    %v2560 = vmax.f32 %v2556, %v2532
    %v2561 = vmax.f32 %v2557, %v2533
    %v2562 = vmax.f32 %v2558, %v2534
    %v2563 = vmax.f32 %v2559, %v2535
    %v2564 = vmax.f32 %v2560, %v2536
    %v2565 = vmax.f32 %v2561, %v2537
    %v2566 = vmax.f32 %v2562, %v2538
    %v2567 = vmax.f32 %v2563, %v2539
    %v2568 = vmax.f32 %v2564, %v2540
    %v2569 = vmax.f32 %v2565, %v2541
    %v2570 = vmax.f32 %v2566, %v2542
    %v2571 = vmax.f32 %v2567, %v2543
    %v2572 = vmax.f32 %v2568, %v2544
    %v2573 = vmax.f32 %v2569, %v2545
    %v2574 = vmax.f32 %v2570, %v2546
    %v2575 = vmax.f32 %v2571, %v2572
    %v2576 = vmax.f32 %v2573, %v2574
    %v2577 = vmax.f32 %v2575, %v2576
    %v2578 = vrot.slane %v2577, 4
    %v2579 = vmax.f32 %v2577, %v2578
    %v2580 = vrot.slane %v2579, 2
    %v2581 = vmax.f32 %v2579, %v2580
    %v2582 = vrot.slane %v2581, 1
    %v2583 = vmax.f32 %v2581, %v2582
    %vm2584 = vcmp.eq.s32.totalorder %v1769, 3
    %vm2585 = vcmp.eq.s32.totalorder %v1770, 3
    %vm2586 = vcmp.eq.s32.totalorder %v1771, 3
    %vm2587 = vcmp.eq.s32.totalorder %v1772, 3
    %vm2588 = vcmp.eq.s32.totalorder %v1773, 3
    %vm2589 = vcmp.eq.s32.totalorder %v1774, 3
    %vm2590 = vcmp.eq.s32.totalorder %v1775, 3
    %vm2591 = vcmp.eq.s32.totalorder %v1776, 3
    %vm2592 = vcmp.eq.s32.totalorder %v1777, 3
    %vm2593 = vcmp.eq.s32.totalorder %v1778, 3
    %vm2594 = vcmp.eq.s32.totalorder %v1779, 3
    %vm2595 = vcmp.eq.s32.totalorder %v1780, 3
    %vm2596 = vcmp.eq.s32.totalorder %v1781, 3
    %vm2597 = vcmp.eq.s32.totalorder %v1782, 3
    %vm2598 = vcmp.eq.s32.totalorder %v1783, 3
    %vm2599 = vcmp.eq.s32.totalorder %v1784, 3
    %vm2600 = vcmp.eq.s32.totalorder %v1785, 3
    %vm2601 = vcmp.eq.s32.totalorder %v1786, 3
    %vm2602 = vcmp.eq.s32.totalorder %v1787, 3
    %vm2603 = vcmp.eq.s32.totalorder %v1788, 3
    %vm2604 = vcmp.eq.s32.totalorder %v1789, 3
    %vm2605 = vcmp.eq.s32.totalorder %v1790, 3
    %vm2606 = vcmp.eq.s32.totalorder %v1791, 3
    %vm2607 = vcmp.eq.s32.totalorder %v1792, 3
    %vm2608 = vcmp.eq.s32.totalorder %v1793, 3
    %vm2609 = vcmp.eq.s32.totalorder %v1794, 3
    %vm2610 = vcmp.eq.s32.totalorder %v1795, 3
    %vm2611 = vcmp.eq.s32.totalorder %v1796, 3
    %vm2612 = vcmp.eq.s32.totalorder %v1797, 3
    %vm2613 = vcmp.eq.s32.totalorder %v1798, 3
    %vm2614 = vcmp.eq.s32.totalorder %v1799, 3
    %vm2615 = vcmp.eq.s32.totalorder %v1800, 3
    %v2616 = vsel %vm2584, 1, 0
    %v2617 = vsel %vm2585, 1, 0
    %v2618 = vsel %vm2586, 1, 0
    %v2619 = vsel %vm2587, 1, 0
    %v2620 = vsel %vm2588, 1, 0
    %v2621 = vsel %vm2589, 1, 0
    %v2622 = vsel %vm2590, 1, 0
    %v2623 = vsel %vm2591, 1, 0
    %v2624 = vsel %vm2592, 1, 0
    %v2625 = vsel %vm2593, 1, 0
    %v2626 = vsel %vm2594, 1, 0
    %v2627 = vsel %vm2595, 1, 0
    %v2628 = vsel %vm2596, 1, 0
    %v2629 = vsel %vm2597, 1, 0
    %v2630 = vsel %vm2598, 1, 0
    %v2631 = vsel %vm2599, 1, 0
    %v2632 = vsel %vm2600, 1, 0
    %v2633 = vsel %vm2601, 1, 0
    %v2634 = vsel %vm2602, 1, 0
    %v2635 = vsel %vm2603, 1, 0
    %v2636 = vsel %vm2604, 1, 0
    %v2637 = vsel %vm2605, 1, 0
    %v2638 = vsel %vm2606, 1, 0
    %v2639 = vsel %vm2607, 1, 0
    %v2640 = vsel %vm2608, 1, 0
    %v2641 = vsel %vm2609, 1, 0
    %v2642 = vsel %vm2610, 1, 0
    %v2643 = vsel %vm2611, 1, 0
    %v2644 = vsel %vm2612, 1, 0
    %v2645 = vsel %vm2613, 1, 0
    %v2646 = vsel %vm2614, 1, 0
    %v2647 = vsel %vm2615, 1, 0
    %2648 = vset.pattern.permute.xlu0 0
    %2649 = vperm.xlu0 %2648, %v2616
    %v2650 = vpop.permute.xlu0 %2649
    %2651 = vset.pattern.permute.xlu0 0
    %2652 = vperm.xlu0 %2651, %v2617
    %v2653 = vpop.permute.xlu0 %2652
    %2654 = vset.pattern.permute.xlu0 0
    %2655 = vperm.xlu0 %2654, %v2618
    %v2656 = vpop.permute.xlu0 %2655
    %2657 = vset.pattern.permute.xlu0 0
    %2658 = vperm.xlu0 %2657, %v2619
    %v2659 = vpop.permute.xlu0 %2658
    %2660 = vset.pattern.permute.xlu0 0
    %2661 = vperm.xlu0 %2660, %v2620
    %v2662 = vpop.permute.xlu0 %2661
    %2663 = vset.pattern.permute.xlu0 0
    %2664 = vperm.xlu0 %2663, %v2621
    %v2665 = vpop.permute.xlu0 %2664
    %2666 = vset.pattern.permute.xlu0 0
    %2667 = vperm.xlu0 %2666, %v2622
    %v2668 = vpop.permute.xlu0 %2667
    %2669 = vset.pattern.permute.xlu0 0
    %2670 = vperm.xlu0 %2669, %v2623
    %v2671 = vpop.permute.xlu0 %2670
    %2672 = vset.pattern.permute.xlu0 0
    %2673 = vperm.xlu0 %2672, %v2624
    %v2674 = vpop.permute.xlu0 %2673
    %2675 = vset.pattern.permute.xlu0 0
    %2676 = vperm.xlu0 %2675, %v2625
    %v2677 = vpop.permute.xlu0 %2676
    %2678 = vset.pattern.permute.xlu0 0
    %2679 = vperm.xlu0 %2678, %v2626
    %v2680 = vpop.permute.xlu0 %2679
    %2681 = vset.pattern.permute.xlu0 0
    %2682 = vperm.xlu0 %2681, %v2627
    %v2683 = vpop.permute.xlu0 %2682
    %2684 = vset.pattern.permute.xlu0 0
    %2685 = vperm.xlu0 %2684, %v2628
    %v2686 = vpop.permute.xlu0 %2685
    %2687 = vset.pattern.permute.xlu0 0
    %2688 = vperm.xlu0 %2687, %v2629
    %v2689 = vpop.permute.xlu0 %2688
    %2690 = vset.pattern.permute.xlu0 0
    %2691 = vperm.xlu0 %2690, %v2630
    %v2692 = vpop.permute.xlu0 %2691
    %2693 = vset.pattern.permute.xlu0 0
    %2694 = vperm.xlu0 %2693, %v2631
    %v2695 = vpop.permute.xlu0 %2694
    %2696 = vset.pattern.permute.xlu0 0
    %2697 = vperm.xlu0 %2696, %v2632
    %v2698 = vpop.permute.xlu0 %2697
    %2699 = vset.pattern.permute.xlu0 0
    %2700 = vperm.xlu0 %2699, %v2633
    %v2701 = vpop.permute.xlu0 %2700
    %2702 = vset.pattern.permute.xlu0 0
    %2703 = vperm.xlu0 %2702, %v2634
    %v2704 = vpop.permute.xlu0 %2703
    %2705 = vset.pattern.permute.xlu0 0
    %2706 = vperm.xlu0 %2705, %v2635
    %v2707 = vpop.permute.xlu0 %2706
    %2708 = vset.pattern.permute.xlu0 0
    %2709 = vperm.xlu0 %2708, %v2636
    %v2710 = vpop.permute.xlu0 %2709
    %2711 = vset.pattern.permute.xlu0 0
    %2712 = vperm.xlu0 %2711, %v2637
    %v2713 = vpop.permute.xlu0 %2712
    %2714 = vset.pattern.permute.xlu0 0
    %2715 = vperm.xlu0 %2714, %v2638
    %v2716 = vpop.permute.xlu0 %2715
    %2717 = vset.pattern.permute.xlu0 0
    %2718 = vperm.xlu0 %2717, %v2639
    %v2719 = vpop.permute.xlu0 %2718
    %2720 = vset.pattern.permute.xlu0 0
    %2721 = vperm.xlu0 %2720, %v2640
    %v2722 = vpop.permute.xlu0 %2721
    %2723 = vset.pattern.permute.xlu0 0
    %2724 = vperm.xlu0 %2723, %v2641
    %v2725 = vpop.permute.xlu0 %2724
    %2726 = vset.pattern.permute.xlu0 0
    %2727 = vperm.xlu0 %2726, %v2642
    %v2728 = vpop.permute.xlu0 %2727
    %2729 = vset.pattern.permute.xlu0 0
    %2730 = vperm.xlu0 %2729, %v2643
    %v2731 = vpop.permute.xlu0 %2730
    %2732 = vset.pattern.permute.xlu0 0
    %2733 = vperm.xlu0 %2732, %v2644
    %v2734 = vpop.permute.xlu0 %2733
    %2735 = vset.pattern.permute.xlu0 0
    %2736 = vperm.xlu0 %2735, %v2645
    %v2737 = vpop.permute.xlu0 %2736
    %2738 = vset.pattern.permute.xlu0 0
    %2739 = vperm.xlu0 %2738, %v2646
    %v2740 = vpop.permute.xlu0 %2739
    %2741 = vset.pattern.permute.xlu0 0
    %2742 = vperm.xlu0 %2741, %v2647
    %v2743 = vpop.permute.xlu0 %2742
    %vm2744 = vcmp.eq.s32.totalorder %v2650, 1
    %vm2745 = vcmp.eq.s32.totalorder %v2653, 1
    %vm2746 = vcmp.eq.s32.totalorder %v2656, 1
    %vm2747 = vcmp.eq.s32.totalorder %v2659, 1
    %vm2748 = vcmp.eq.s32.totalorder %v2662, 1
    %vm2749 = vcmp.eq.s32.totalorder %v2665, 1
    %vm2750 = vcmp.eq.s32.totalorder %v2668, 1
    %vm2751 = vcmp.eq.s32.totalorder %v2671, 1
    %vm2752 = vcmp.eq.s32.totalorder %v2674, 1
    %vm2753 = vcmp.eq.s32.totalorder %v2677, 1
    %vm2754 = vcmp.eq.s32.totalorder %v2680, 1
    %vm2755 = vcmp.eq.s32.totalorder %v2683, 1
    %vm2756 = vcmp.eq.s32.totalorder %v2686, 1
    %vm2757 = vcmp.eq.s32.totalorder %v2689, 1
    %vm2758 = vcmp.eq.s32.totalorder %v2692, 1
    %vm2759 = vcmp.eq.s32.totalorder %v2695, 1
    %vm2760 = vcmp.eq.s32.totalorder %v2698, 1
    %vm2761 = vcmp.eq.s32.totalorder %v2701, 1
    %vm2762 = vcmp.eq.s32.totalorder %v2704, 1
    %vm2763 = vcmp.eq.s32.totalorder %v2707, 1
    %vm2764 = vcmp.eq.s32.totalorder %v2710, 1
    %vm2765 = vcmp.eq.s32.totalorder %v2713, 1
    %vm2766 = vcmp.eq.s32.totalorder %v2716, 1
    %vm2767 = vcmp.eq.s32.totalorder %v2719, 1
    %vm2768 = vcmp.eq.s32.totalorder %v2722, 1
    %vm2769 = vcmp.eq.s32.totalorder %v2725, 1
    %vm2770 = vcmp.eq.s32.totalorder %v2728, 1
    %vm2771 = vcmp.eq.s32.totalorder %v2731, 1
    %vm2772 = vcmp.eq.s32.totalorder %v2734, 1
    %vm2773 = vcmp.eq.s32.totalorder %v2737, 1
    %vm2774 = vcmp.eq.s32.totalorder %v2740, 1
    %vm2775 = vcmp.eq.s32.totalorder %v2743, 1
    %v2776 = vsel %vm2744, %v1737, -inf
    %v2777 = vsel %vm2745, %v1738, -inf
    %v2778 = vsel %vm2746, %v1739, -inf
    %v2779 = vsel %vm2747, %v1740, -inf
    %v2780 = vsel %vm2748, %v1741, -inf
    %v2781 = vsel %vm2749, %v1742, -inf
    %v2782 = vsel %vm2750, %v1743, -inf
    %v2783 = vsel %vm2751, %v1744, -inf
    %v2784 = vsel %vm2752, %v1745, -inf
    %v2785 = vsel %vm2753, %v1746, -inf
    %v2786 = vsel %vm2754, %v1747, -inf
    %v2787 = vsel %vm2755, %v1748, -inf
    %v2788 = vsel %vm2756, %v1749, -inf
    %v2789 = vsel %vm2757, %v1750, -inf
    %v2790 = vsel %vm2758, %v1751, -inf
    %v2791 = vsel %vm2759, %v1752, -inf
    %v2792 = vsel %vm2760, %v1753, -inf
    %v2793 = vsel %vm2761, %v1754, -inf
    %v2794 = vsel %vm2762, %v1755, -inf
    %v2795 = vsel %vm2763, %v1756, -inf
    %v2796 = vsel %vm2764, %v1757, -inf
    %v2797 = vsel %vm2765, %v1758, -inf
    %v2798 = vsel %vm2766, %v1759, -inf
    %v2799 = vsel %vm2767, %v1760, -inf
    %v2800 = vsel %vm2768, %v1761, -inf
    %v2801 = vsel %vm2769, %v1762, -inf
    %v2802 = vsel %vm2770, %v1763, -inf
    %v2803 = vsel %vm2771, %v1764, -inf
    %v2804 = vsel %vm2772, %v1765, -inf
    %v2805 = vsel %vm2773, %v1766, -inf
    %v2806 = vsel %vm2774, %v1767, -inf
    %v2807 = vsel %vm2775, %v1768, -inf
    %v2808 = vmax.f32 %v2776, %v2780
    %v2809 = vmax.f32 %v2777, %v2781
    %v2810 = vmax.f32 %v2778, %v2782
    %v2811 = vmax.f32 %v2779, %v2783
    %v2812 = vmax.f32 %v2808, %v2784
    %v2813 = vmax.f32 %v2809, %v2785
    %v2814 = vmax.f32 %v2810, %v2786
    %v2815 = vmax.f32 %v2811, %v2787
    %v2816 = vmax.f32 %v2812, %v2788
    %v2817 = vmax.f32 %v2813, %v2789
    %v2818 = vmax.f32 %v2814, %v2790
    %v2819 = vmax.f32 %v2815, %v2791
    %v2820 = vmax.f32 %v2816, %v2792
    %v2821 = vmax.f32 %v2817, %v2793
    %v2822 = vmax.f32 %v2818, %v2794
    %v2823 = vmax.f32 %v2819, %v2795
    %v2824 = vmax.f32 %v2820, %v2796
    %v2825 = vmax.f32 %v2821, %v2797
    %v2826 = vmax.f32 %v2822, %v2798
    %v2827 = vmax.f32 %v2823, %v2799
    %v2828 = vmax.f32 %v2824, %v2800
    %v2829 = vmax.f32 %v2825, %v2801
    %v2830 = vmax.f32 %v2826, %v2802
    %v2831 = vmax.f32 %v2827, %v2803
    %v2832 = vmax.f32 %v2828, %v2804
    %v2833 = vmax.f32 %v2829, %v2805
    %v2834 = vmax.f32 %v2830, %v2806
    %v2835 = vmax.f32 %v2831, %v2807
    %v2836 = vmax.f32 %v2832, %v2833
    %v2837 = vmax.f32 %v2834, %v2835
    %v2838 = vmax.f32 %v2836, %v2837
    %v2839 = vrot.slane %v2838, 4
    %v2840 = vmax.f32 %v2838, %v2839
    %v2841 = vrot.slane %v2840, 2
    %v2842 = vmax.f32 %v2840, %v2841
    %v2843 = vrot.slane %v2842, 1
    %v2844 = vmax.f32 %v2842, %v2843
    %vm2845 = vcmp.eq.s32.totalorder %v1769, 4
    %vm2846 = vcmp.eq.s32.totalorder %v1770, 4
    %vm2847 = vcmp.eq.s32.totalorder %v1771, 4
    %vm2848 = vcmp.eq.s32.totalorder %v1772, 4
    %vm2849 = vcmp.eq.s32.totalorder %v1773, 4
    %vm2850 = vcmp.eq.s32.totalorder %v1774, 4
    %vm2851 = vcmp.eq.s32.totalorder %v1775, 4
    %vm2852 = vcmp.eq.s32.totalorder %v1776, 4
    %vm2853 = vcmp.eq.s32.totalorder %v1777, 4
    %vm2854 = vcmp.eq.s32.totalorder %v1778, 4
    %vm2855 = vcmp.eq.s32.totalorder %v1779, 4
    %vm2856 = vcmp.eq.s32.totalorder %v1780, 4
    %vm2857 = vcmp.eq.s32.totalorder %v1781, 4
    %vm2858 = vcmp.eq.s32.totalorder %v1782, 4
    %vm2859 = vcmp.eq.s32.totalorder %v1783, 4
    %vm2860 = vcmp.eq.s32.totalorder %v1784, 4
    %vm2861 = vcmp.eq.s32.totalorder %v1785, 4
    %vm2862 = vcmp.eq.s32.totalorder %v1786, 4
    %vm2863 = vcmp.eq.s32.totalorder %v1787, 4
    %vm2864 = vcmp.eq.s32.totalorder %v1788, 4
    %vm2865 = vcmp.eq.s32.totalorder %v1789, 4
    %vm2866 = vcmp.eq.s32.totalorder %v1790, 4
    %vm2867 = vcmp.eq.s32.totalorder %v1791, 4
    %vm2868 = vcmp.eq.s32.totalorder %v1792, 4
    %vm2869 = vcmp.eq.s32.totalorder %v1793, 4
    %vm2870 = vcmp.eq.s32.totalorder %v1794, 4
    %vm2871 = vcmp.eq.s32.totalorder %v1795, 4
    %vm2872 = vcmp.eq.s32.totalorder %v1796, 4
    %vm2873 = vcmp.eq.s32.totalorder %v1797, 4
    %vm2874 = vcmp.eq.s32.totalorder %v1798, 4
    %vm2875 = vcmp.eq.s32.totalorder %v1799, 4
    %vm2876 = vcmp.eq.s32.totalorder %v1800, 4
    %v2877 = vsel %vm2845, 1, 0
    %v2878 = vsel %vm2846, 1, 0
    %v2879 = vsel %vm2847, 1, 0
    %v2880 = vsel %vm2848, 1, 0
    %v2881 = vsel %vm2849, 1, 0
    %v2882 = vsel %vm2850, 1, 0
    %v2883 = vsel %vm2851, 1, 0
    %v2884 = vsel %vm2852, 1, 0
    %v2885 = vsel %vm2853, 1, 0
    %v2886 = vsel %vm2854, 1, 0
    %v2887 = vsel %vm2855, 1, 0
    %v2888 = vsel %vm2856, 1, 0
    %v2889 = vsel %vm2857, 1, 0
    %v2890 = vsel %vm2858, 1, 0
    %v2891 = vsel %vm2859, 1, 0
    %v2892 = vsel %vm2860, 1, 0
    %v2893 = vsel %vm2861, 1, 0
    %v2894 = vsel %vm2862, 1, 0
    %v2895 = vsel %vm2863, 1, 0
    %v2896 = vsel %vm2864, 1, 0
    %v2897 = vsel %vm2865, 1, 0
    %v2898 = vsel %vm2866, 1, 0
    %v2899 = vsel %vm2867, 1, 0
    %v2900 = vsel %vm2868, 1, 0
    %v2901 = vsel %vm2869, 1, 0
    %v2902 = vsel %vm2870, 1, 0
    %v2903 = vsel %vm2871, 1, 0
    %v2904 = vsel %vm2872, 1, 0
    %v2905 = vsel %vm2873, 1, 0
    %v2906 = vsel %vm2874, 1, 0
    %v2907 = vsel %vm2875, 1, 0
    %v2908 = vsel %vm2876, 1, 0
    %2909 = vset.pattern.permute.xlu0 0
    %2910 = vperm.xlu0 %2909, %v2877
    %v2911 = vpop.permute.xlu0 %2910
    %2912 = vset.pattern.permute.xlu0 0
    %2913 = vperm.xlu0 %2912, %v2878
    %v2914 = vpop.permute.xlu0 %2913
    %2915 = vset.pattern.permute.xlu0 0
    %2916 = vperm.xlu0 %2915, %v2879
    %v2917 = vpop.permute.xlu0 %2916
    %2918 = vset.pattern.permute.xlu0 0
    %2919 = vperm.xlu0 %2918, %v2880
    %v2920 = vpop.permute.xlu0 %2919
    %2921 = vset.pattern.permute.xlu0 0
    %2922 = vperm.xlu0 %2921, %v2881
    %v2923 = vpop.permute.xlu0 %2922
    %2924 = vset.pattern.permute.xlu0 0
    %2925 = vperm.xlu0 %2924, %v2882
    %v2926 = vpop.permute.xlu0 %2925
    %2927 = vset.pattern.permute.xlu0 0
    %2928 = vperm.xlu0 %2927, %v2883
    %v2929 = vpop.permute.xlu0 %2928
    %2930 = vset.pattern.permute.xlu0 0
    %2931 = vperm.xlu0 %2930, %v2884
    %v2932 = vpop.permute.xlu0 %2931
    %2933 = vset.pattern.permute.xlu0 0
    %2934 = vperm.xlu0 %2933, %v2885
    %v2935 = vpop.permute.xlu0 %2934
    %2936 = vset.pattern.permute.xlu0 0
    %2937 = vperm.xlu0 %2936, %v2886
    %v2938 = vpop.permute.xlu0 %2937
    %2939 = vset.pattern.permute.xlu0 0
    %2940 = vperm.xlu0 %2939, %v2887
    %v2941 = vpop.permute.xlu0 %2940
    %2942 = vset.pattern.permute.xlu0 0
    %2943 = vperm.xlu0 %2942, %v2888
    %v2944 = vpop.permute.xlu0 %2943
    %2945 = vset.pattern.permute.xlu0 0
    %2946 = vperm.xlu0 %2945, %v2889
    %v2947 = vpop.permute.xlu0 %2946
    %2948 = vset.pattern.permute.xlu0 0
    %2949 = vperm.xlu0 %2948, %v2890
    %v2950 = vpop.permute.xlu0 %2949
    %2951 = vset.pattern.permute.xlu0 0
    %2952 = vperm.xlu0 %2951, %v2891
    %v2953 = vpop.permute.xlu0 %2952
    %2954 = vset.pattern.permute.xlu0 0
    %2955 = vperm.xlu0 %2954, %v2892
    %v2956 = vpop.permute.xlu0 %2955
    %2957 = vset.pattern.permute.xlu0 0
    %2958 = vperm.xlu0 %2957, %v2893
    %v2959 = vpop.permute.xlu0 %2958
    %2960 = vset.pattern.permute.xlu0 0
    %2961 = vperm.xlu0 %2960, %v2894
    %v2962 = vpop.permute.xlu0 %2961
    %2963 = vset.pattern.permute.xlu0 0
    %2964 = vperm.xlu0 %2963, %v2895
    %v2965 = vpop.permute.xlu0 %2964
    %2966 = vset.pattern.permute.xlu0 0
    %2967 = vperm.xlu0 %2966, %v2896
    %v2968 = vpop.permute.xlu0 %2967
    %2969 = vset.pattern.permute.xlu0 0
    %2970 = vperm.xlu0 %2969, %v2897
    %v2971 = vpop.permute.xlu0 %2970
    %2972 = vset.pattern.permute.xlu0 0
    %2973 = vperm.xlu0 %2972, %v2898
    %v2974 = vpop.permute.xlu0 %2973
    %2975 = vset.pattern.permute.xlu0 0
    %2976 = vperm.xlu0 %2975, %v2899
    %v2977 = vpop.permute.xlu0 %2976
    %2978 = vset.pattern.permute.xlu0 0
    %2979 = vperm.xlu0 %2978, %v2900
    %v2980 = vpop.permute.xlu0 %2979
    %2981 = vset.pattern.permute.xlu0 0
    %2982 = vperm.xlu0 %2981, %v2901
    %v2983 = vpop.permute.xlu0 %2982
    %2984 = vset.pattern.permute.xlu0 0
    %2985 = vperm.xlu0 %2984, %v2902
    %v2986 = vpop.permute.xlu0 %2985
    %2987 = vset.pattern.permute.xlu0 0
    %2988 = vperm.xlu0 %2987, %v2903
    %v2989 = vpop.permute.xlu0 %2988
    %2990 = vset.pattern.permute.xlu0 0
    %2991 = vperm.xlu0 %2990, %v2904
    %v2992 = vpop.permute.xlu0 %2991
    %2993 = vset.pattern.permute.xlu0 0
    %2994 = vperm.xlu0 %2993, %v2905
    %v2995 = vpop.permute.xlu0 %2994
    %2996 = vset.pattern.permute.xlu0 0
    %2997 = vperm.xlu0 %2996, %v2906
    %v2998 = vpop.permute.xlu0 %2997
    %2999 = vset.pattern.permute.xlu0 0
    %3000 = vperm.xlu0 %2999, %v2907
    %v3001 = vpop.permute.xlu0 %3000
    %3002 = vset.pattern.permute.xlu0 0
    %3003 = vperm.xlu0 %3002, %v2908
    %v3004 = vpop.permute.xlu0 %3003
    %vm3005 = vcmp.eq.s32.totalorder %v2911, 1
    %vm3006 = vcmp.eq.s32.totalorder %v2914, 1
    %vm3007 = vcmp.eq.s32.totalorder %v2917, 1
    %vm3008 = vcmp.eq.s32.totalorder %v2920, 1
    %vm3009 = vcmp.eq.s32.totalorder %v2923, 1
    %vm3010 = vcmp.eq.s32.totalorder %v2926, 1
    %vm3011 = vcmp.eq.s32.totalorder %v2929, 1
    %vm3012 = vcmp.eq.s32.totalorder %v2932, 1
    %vm3013 = vcmp.eq.s32.totalorder %v2935, 1
    %vm3014 = vcmp.eq.s32.totalorder %v2938, 1
    %vm3015 = vcmp.eq.s32.totalorder %v2941, 1
    %vm3016 = vcmp.eq.s32.totalorder %v2944, 1
    %vm3017 = vcmp.eq.s32.totalorder %v2947, 1
    %vm3018 = vcmp.eq.s32.totalorder %v2950, 1
    %vm3019 = vcmp.eq.s32.totalorder %v2953, 1
    %vm3020 = vcmp.eq.s32.totalorder %v2956, 1
    %vm3021 = vcmp.eq.s32.totalorder %v2959, 1
    %vm3022 = vcmp.eq.s32.totalorder %v2962, 1
    %vm3023 = vcmp.eq.s32.totalorder %v2965, 1
    %vm3024 = vcmp.eq.s32.totalorder %v2968, 1
    %vm3025 = vcmp.eq.s32.totalorder %v2971, 1
    %vm3026 = vcmp.eq.s32.totalorder %v2974, 1
    %vm3027 = vcmp.eq.s32.totalorder %v2977, 1
    %vm3028 = vcmp.eq.s32.totalorder %v2980, 1
    %vm3029 = vcmp.eq.s32.totalorder %v2983, 1
    %vm3030 = vcmp.eq.s32.totalorder %v2986, 1
    %vm3031 = vcmp.eq.s32.totalorder %v2989, 1
    %vm3032 = vcmp.eq.s32.totalorder %v2992, 1
    %vm3033 = vcmp.eq.s32.totalorder %v2995, 1
    %vm3034 = vcmp.eq.s32.totalorder %v2998, 1
    %vm3035 = vcmp.eq.s32.totalorder %v3001, 1
    %vm3036 = vcmp.eq.s32.totalorder %v3004, 1
    %v3037 = vsel %vm3005, %v1737, -inf
    %v3038 = vsel %vm3006, %v1738, -inf
    %v3039 = vsel %vm3007, %v1739, -inf
    %v3040 = vsel %vm3008, %v1740, -inf
    %v3041 = vsel %vm3009, %v1741, -inf
    %v3042 = vsel %vm3010, %v1742, -inf
    %v3043 = vsel %vm3011, %v1743, -inf
    %v3044 = vsel %vm3012, %v1744, -inf
    %v3045 = vsel %vm3013, %v1745, -inf
    %v3046 = vsel %vm3014, %v1746, -inf
    %v3047 = vsel %vm3015, %v1747, -inf
    %v3048 = vsel %vm3016, %v1748, -inf
    %v3049 = vsel %vm3017, %v1749, -inf
    %v3050 = vsel %vm3018, %v1750, -inf
    %v3051 = vsel %vm3019, %v1751, -inf
    %v3052 = vsel %vm3020, %v1752, -inf
    %v3053 = vsel %vm3021, %v1753, -inf
    %v3054 = vsel %vm3022, %v1754, -inf
    %v3055 = vsel %vm3023, %v1755, -inf
    %v3056 = vsel %vm3024, %v1756, -inf
    %v3057 = vsel %vm3025, %v1757, -inf
    %v3058 = vsel %vm3026, %v1758, -inf
    %v3059 = vsel %vm3027, %v1759, -inf
    %v3060 = vsel %vm3028, %v1760, -inf
    %v3061 = vsel %vm3029, %v1761, -inf
    %v3062 = vsel %vm3030, %v1762, -inf
    %v3063 = vsel %vm3031, %v1763, -inf
    %v3064 = vsel %vm3032, %v1764, -inf
    %v3065 = vsel %vm3033, %v1765, -inf
    %v3066 = vsel %vm3034, %v1766, -inf
    %v3067 = vsel %vm3035, %v1767, -inf
    %v3068 = vsel %vm3036, %v1768, -inf
    %v3069 = vmax.f32 %v3037, %v3041
    %v3070 = vmax.f32 %v3038, %v3042
    %v3071 = vmax.f32 %v3039, %v3043
    %v3072 = vmax.f32 %v3040, %v3044
    %v3073 = vmax.f32 %v3069, %v3045
    %v3074 = vmax.f32 %v3070, %v3046
    %v3075 = vmax.f32 %v3071, %v3047
    %v3076 = vmax.f32 %v3072, %v3048
    %v3077 = vmax.f32 %v3073, %v3049
    %v3078 = vmax.f32 %v3074, %v3050
    %v3079 = vmax.f32 %v3075, %v3051
    %v3080 = vmax.f32 %v3076, %v3052
    %v3081 = vmax.f32 %v3077, %v3053
    %v3082 = vmax.f32 %v3078, %v3054
    %v3083 = vmax.f32 %v3079, %v3055
    %v3084 = vmax.f32 %v3080, %v3056
    %v3085 = vmax.f32 %v3081, %v3057
    %v3086 = vmax.f32 %v3082, %v3058
    %v3087 = vmax.f32 %v3083, %v3059
    %v3088 = vmax.f32 %v3084, %v3060
    %v3089 = vmax.f32 %v3085, %v3061
    %v3090 = vmax.f32 %v3086, %v3062
    %v3091 = vmax.f32 %v3087, %v3063
    %v3092 = vmax.f32 %v3088, %v3064
    %v3093 = vmax.f32 %v3089, %v3065
    %v3094 = vmax.f32 %v3090, %v3066
    %v3095 = vmax.f32 %v3091, %v3067
    %v3096 = vmax.f32 %v3092, %v3068
    %v3097 = vmax.f32 %v3093, %v3094
    %v3098 = vmax.f32 %v3095, %v3096
    %v3099 = vmax.f32 %v3097, %v3098
    %v3100 = vrot.slane %v3099, 4
    %v3101 = vmax.f32 %v3099, %v3100
    %v3102 = vrot.slane %v3101, 2
    %v3103 = vmax.f32 %v3101, %v3102
    %v3104 = vrot.slane %v3103, 1
    %v3105 = vmax.f32 %v3103, %v3104
    %vm3106 = vcmp.eq.s32.totalorder %v1769, 5
    %vm3107 = vcmp.eq.s32.totalorder %v1770, 5
    %vm3108 = vcmp.eq.s32.totalorder %v1771, 5
    %vm3109 = vcmp.eq.s32.totalorder %v1772, 5
    %vm3110 = vcmp.eq.s32.totalorder %v1773, 5
    %vm3111 = vcmp.eq.s32.totalorder %v1774, 5
    %vm3112 = vcmp.eq.s32.totalorder %v1775, 5
    %vm3113 = vcmp.eq.s32.totalorder %v1776, 5
    %vm3114 = vcmp.eq.s32.totalorder %v1777, 5
    %vm3115 = vcmp.eq.s32.totalorder %v1778, 5
    %vm3116 = vcmp.eq.s32.totalorder %v1779, 5
    %vm3117 = vcmp.eq.s32.totalorder %v1780, 5
    %vm3118 = vcmp.eq.s32.totalorder %v1781, 5
    %vm3119 = vcmp.eq.s32.totalorder %v1782, 5
    %vm3120 = vcmp.eq.s32.totalorder %v1783, 5
    %vm3121 = vcmp.eq.s32.totalorder %v1784, 5
    %vm3122 = vcmp.eq.s32.totalorder %v1785, 5
    %vm3123 = vcmp.eq.s32.totalorder %v1786, 5
    %vm3124 = vcmp.eq.s32.totalorder %v1787, 5
    %vm3125 = vcmp.eq.s32.totalorder %v1788, 5
    %vm3126 = vcmp.eq.s32.totalorder %v1789, 5
    %vm3127 = vcmp.eq.s32.totalorder %v1790, 5
    %vm3128 = vcmp.eq.s32.totalorder %v1791, 5
    %vm3129 = vcmp.eq.s32.totalorder %v1792, 5
    %vm3130 = vcmp.eq.s32.totalorder %v1793, 5
    %vm3131 = vcmp.eq.s32.totalorder %v1794, 5
    %vm3132 = vcmp.eq.s32.totalorder %v1795, 5
    %vm3133 = vcmp.eq.s32.totalorder %v1796, 5
    %vm3134 = vcmp.eq.s32.totalorder %v1797, 5
    %vm3135 = vcmp.eq.s32.totalorder %v1798, 5
    %vm3136 = vcmp.eq.s32.totalorder %v1799, 5
    %vm3137 = vcmp.eq.s32.totalorder %v1800, 5
    %v3138 = vsel %vm3106, 1, 0
    %v3139 = vsel %vm3107, 1, 0
    %v3140 = vsel %vm3108, 1, 0
    %v3141 = vsel %vm3109, 1, 0
    %v3142 = vsel %vm3110, 1, 0
    %v3143 = vsel %vm3111, 1, 0
    %v3144 = vsel %vm3112, 1, 0
    %v3145 = vsel %vm3113, 1, 0
    %v3146 = vsel %vm3114, 1, 0
    %v3147 = vsel %vm3115, 1, 0
    %v3148 = vsel %vm3116, 1, 0
    %v3149 = vsel %vm3117, 1, 0
    %v3150 = vsel %vm3118, 1, 0
    %v3151 = vsel %vm3119, 1, 0
    %v3152 = vsel %vm3120, 1, 0
    %v3153 = vsel %vm3121, 1, 0
    %v3154 = vsel %vm3122, 1, 0
    %v3155 = vsel %vm3123, 1, 0
    %v3156 = vsel %vm3124, 1, 0
    %v3157 = vsel %vm3125, 1, 0
    %v3158 = vsel %vm3126, 1, 0
    %v3159 = vsel %vm3127, 1, 0
    %v3160 = vsel %vm3128, 1, 0
    %v3161 = vsel %vm3129, 1, 0
    %v3162 = vsel %vm3130, 1, 0
    %v3163 = vsel %vm3131, 1, 0
    %v3164 = vsel %vm3132, 1, 0
    %v3165 = vsel %vm3133, 1, 0
    %v3166 = vsel %vm3134, 1, 0
    %v3167 = vsel %vm3135, 1, 0
    %v3168 = vsel %vm3136, 1, 0
    %v3169 = vsel %vm3137, 1, 0
    %3170 = vset.pattern.permute.xlu0 0
    %3171 = vperm.xlu0 %3170, %v3138
    %v3172 = vpop.permute.xlu0 %3171
    %3173 = vset.pattern.permute.xlu0 0
    %3174 = vperm.xlu0 %3173, %v3139
    %v3175 = vpop.permute.xlu0 %3174
    %3176 = vset.pattern.permute.xlu0 0
    %3177 = vperm.xlu0 %3176, %v3140
    %v3178 = vpop.permute.xlu0 %3177
    %3179 = vset.pattern.permute.xlu0 0
    %3180 = vperm.xlu0 %3179, %v3141
    %v3181 = vpop.permute.xlu0 %3180
    %3182 = vset.pattern.permute.xlu0 0
    %3183 = vperm.xlu0 %3182, %v3142
    %v3184 = vpop.permute.xlu0 %3183
    %3185 = vset.pattern.permute.xlu0 0
    %3186 = vperm.xlu0 %3185, %v3143
    %v3187 = vpop.permute.xlu0 %3186
    %3188 = vset.pattern.permute.xlu0 0
    %3189 = vperm.xlu0 %3188, %v3144
    %v3190 = vpop.permute.xlu0 %3189
    %3191 = vset.pattern.permute.xlu0 0
    %3192 = vperm.xlu0 %3191, %v3145
    %v3193 = vpop.permute.xlu0 %3192
    %3194 = vset.pattern.permute.xlu0 0
    %3195 = vperm.xlu0 %3194, %v3146
    %v3196 = vpop.permute.xlu0 %3195
    %3197 = vset.pattern.permute.xlu0 0
    %3198 = vperm.xlu0 %3197, %v3147
    %v3199 = vpop.permute.xlu0 %3198
    %3200 = vset.pattern.permute.xlu0 0
    %3201 = vperm.xlu0 %3200, %v3148
    %v3202 = vpop.permute.xlu0 %3201
    %3203 = vset.pattern.permute.xlu0 0
    %3204 = vperm.xlu0 %3203, %v3149
    %v3205 = vpop.permute.xlu0 %3204
    %3206 = vset.pattern.permute.xlu0 0
    %3207 = vperm.xlu0 %3206, %v3150
    %v3208 = vpop.permute.xlu0 %3207
    %3209 = vset.pattern.permute.xlu0 0
    %3210 = vperm.xlu0 %3209, %v3151
    %v3211 = vpop.permute.xlu0 %3210
    %3212 = vset.pattern.permute.xlu0 0
    %3213 = vperm.xlu0 %3212, %v3152
    %v3214 = vpop.permute.xlu0 %3213
    %3215 = vset.pattern.permute.xlu0 0
    %3216 = vperm.xlu0 %3215, %v3153
    %v3217 = vpop.permute.xlu0 %3216
    %3218 = vset.pattern.permute.xlu0 0
    %3219 = vperm.xlu0 %3218, %v3154
    %v3220 = vpop.permute.xlu0 %3219
    %3221 = vset.pattern.permute.xlu0 0
    %3222 = vperm.xlu0 %3221, %v3155
    %v3223 = vpop.permute.xlu0 %3222
    %3224 = vset.pattern.permute.xlu0 0
    %3225 = vperm.xlu0 %3224, %v3156
    %v3226 = vpop.permute.xlu0 %3225
    %3227 = vset.pattern.permute.xlu0 0
    %3228 = vperm.xlu0 %3227, %v3157
    %v3229 = vpop.permute.xlu0 %3228
    %3230 = vset.pattern.permute.xlu0 0
    %3231 = vperm.xlu0 %3230, %v3158
    %v3232 = vpop.permute.xlu0 %3231
    %3233 = vset.pattern.permute.xlu0 0
    %3234 = vperm.xlu0 %3233, %v3159
    %v3235 = vpop.permute.xlu0 %3234
    %3236 = vset.pattern.permute.xlu0 0
    %3237 = vperm.xlu0 %3236, %v3160
    %v3238 = vpop.permute.xlu0 %3237
    %3239 = vset.pattern.permute.xlu0 0
    %3240 = vperm.xlu0 %3239, %v3161
    %v3241 = vpop.permute.xlu0 %3240
    %3242 = vset.pattern.permute.xlu0 0
    %3243 = vperm.xlu0 %3242, %v3162
    %v3244 = vpop.permute.xlu0 %3243
    %3245 = vset.pattern.permute.xlu0 0
    %3246 = vperm.xlu0 %3245, %v3163
    %v3247 = vpop.permute.xlu0 %3246
    %3248 = vset.pattern.permute.xlu0 0
    %3249 = vperm.xlu0 %3248, %v3164
    %v3250 = vpop.permute.xlu0 %3249
    %3251 = vset.pattern.permute.xlu0 0
    %3252 = vperm.xlu0 %3251, %v3165
    %v3253 = vpop.permute.xlu0 %3252
    %3254 = vset.pattern.permute.xlu0 0
    %3255 = vperm.xlu0 %3254, %v3166
    %v3256 = vpop.permute.xlu0 %3255
    %3257 = vset.pattern.permute.xlu0 0
    %3258 = vperm.xlu0 %3257, %v3167
    %v3259 = vpop.permute.xlu0 %3258
    %3260 = vset.pattern.permute.xlu0 0
    %3261 = vperm.xlu0 %3260, %v3168
    %v3262 = vpop.permute.xlu0 %3261
    %3263 = vset.pattern.permute.xlu0 0
    %3264 = vperm.xlu0 %3263, %v3169
    %v3265 = vpop.permute.xlu0 %3264
    %vm3266 = vcmp.eq.s32.totalorder %v3172, 1
    %vm3267 = vcmp.eq.s32.totalorder %v3175, 1
    %vm3268 = vcmp.eq.s32.totalorder %v3178, 1
    %vm3269 = vcmp.eq.s32.totalorder %v3181, 1
    %vm3270 = vcmp.eq.s32.totalorder %v3184, 1
    %vm3271 = vcmp.eq.s32.totalorder %v3187, 1
    %vm3272 = vcmp.eq.s32.totalorder %v3190, 1
    %vm3273 = vcmp.eq.s32.totalorder %v3193, 1
    %vm3274 = vcmp.eq.s32.totalorder %v3196, 1
    %vm3275 = vcmp.eq.s32.totalorder %v3199, 1
    %vm3276 = vcmp.eq.s32.totalorder %v3202, 1
    %vm3277 = vcmp.eq.s32.totalorder %v3205, 1
    %vm3278 = vcmp.eq.s32.totalorder %v3208, 1
    %vm3279 = vcmp.eq.s32.totalorder %v3211, 1
    %vm3280 = vcmp.eq.s32.totalorder %v3214, 1
    %vm3281 = vcmp.eq.s32.totalorder %v3217, 1
    %vm3282 = vcmp.eq.s32.totalorder %v3220, 1
    %vm3283 = vcmp.eq.s32.totalorder %v3223, 1
    %vm3284 = vcmp.eq.s32.totalorder %v3226, 1
    %vm3285 = vcmp.eq.s32.totalorder %v3229, 1
    %vm3286 = vcmp.eq.s32.totalorder %v3232, 1
    %vm3287 = vcmp.eq.s32.totalorder %v3235, 1
    %vm3288 = vcmp.eq.s32.totalorder %v3238, 1
    %vm3289 = vcmp.eq.s32.totalorder %v3241, 1
    %vm3290 = vcmp.eq.s32.totalorder %v3244, 1
    %vm3291 = vcmp.eq.s32.totalorder %v3247, 1
    %vm3292 = vcmp.eq.s32.totalorder %v3250, 1
    %vm3293 = vcmp.eq.s32.totalorder %v3253, 1
    %vm3294 = vcmp.eq.s32.totalorder %v3256, 1
    %vm3295 = vcmp.eq.s32.totalorder %v3259, 1
    %vm3296 = vcmp.eq.s32.totalorder %v3262, 1
    %vm3297 = vcmp.eq.s32.totalorder %v3265, 1
    %v3298 = vsel %vm3266, %v1737, -inf
    %v3299 = vsel %vm3267, %v1738, -inf
    %v3300 = vsel %vm3268, %v1739, -inf
    %v3301 = vsel %vm3269, %v1740, -inf
    %v3302 = vsel %vm3270, %v1741, -inf
    %v3303 = vsel %vm3271, %v1742, -inf
    %v3304 = vsel %vm3272, %v1743, -inf
    %v3305 = vsel %vm3273, %v1744, -inf
    %v3306 = vsel %vm3274, %v1745, -inf
    %v3307 = vsel %vm3275, %v1746, -inf
    %v3308 = vsel %vm3276, %v1747, -inf
    %v3309 = vsel %vm3277, %v1748, -inf
    %v3310 = vsel %vm3278, %v1749, -inf
    %v3311 = vsel %vm3279, %v1750, -inf
    %v3312 = vsel %vm3280, %v1751, -inf
    %v3313 = vsel %vm3281, %v1752, -inf
    %v3314 = vsel %vm3282, %v1753, -inf
    %v3315 = vsel %vm3283, %v1754, -inf
    %v3316 = vsel %vm3284, %v1755, -inf
    %v3317 = vsel %vm3285, %v1756, -inf
    %v3318 = vsel %vm3286, %v1757, -inf
    %v3319 = vsel %vm3287, %v1758, -inf
    %v3320 = vsel %vm3288, %v1759, -inf
    %v3321 = vsel %vm3289, %v1760, -inf
    %v3322 = vsel %vm3290, %v1761, -inf
    %v3323 = vsel %vm3291, %v1762, -inf
    %v3324 = vsel %vm3292, %v1763, -inf
    %v3325 = vsel %vm3293, %v1764, -inf
    %v3326 = vsel %vm3294, %v1765, -inf
    %v3327 = vsel %vm3295, %v1766, -inf
    %v3328 = vsel %vm3296, %v1767, -inf
    %v3329 = vsel %vm3297, %v1768, -inf
    %v3330 = vmax.f32 %v3298, %v3302
    %v3331 = vmax.f32 %v3299, %v3303
    %v3332 = vmax.f32 %v3300, %v3304
    %v3333 = vmax.f32 %v3301, %v3305
    %v3334 = vmax.f32 %v3330, %v3306
    %v3335 = vmax.f32 %v3331, %v3307
    %v3336 = vmax.f32 %v3332, %v3308
    %v3337 = vmax.f32 %v3333, %v3309
    %v3338 = vmax.f32 %v3334, %v3310
    %v3339 = vmax.f32 %v3335, %v3311
    %v3340 = vmax.f32 %v3336, %v3312
    %v3341 = vmax.f32 %v3337, %v3313
    %v3342 = vmax.f32 %v3338, %v3314
    %v3343 = vmax.f32 %v3339, %v3315
    %v3344 = vmax.f32 %v3340, %v3316
    %v3345 = vmax.f32 %v3341, %v3317
    %v3346 = vmax.f32 %v3342, %v3318
    %v3347 = vmax.f32 %v3343, %v3319
    %v3348 = vmax.f32 %v3344, %v3320
    %v3349 = vmax.f32 %v3345, %v3321
    %v3350 = vmax.f32 %v3346, %v3322
    %v3351 = vmax.f32 %v3347, %v3323
    %v3352 = vmax.f32 %v3348, %v3324
    %v3353 = vmax.f32 %v3349, %v3325
    %v3354 = vmax.f32 %v3350, %v3326
    %v3355 = vmax.f32 %v3351, %v3327
    %v3356 = vmax.f32 %v3352, %v3328
    %v3357 = vmax.f32 %v3353, %v3329
    %v3358 = vmax.f32 %v3354, %v3355
    %v3359 = vmax.f32 %v3356, %v3357
    %v3360 = vmax.f32 %v3358, %v3359
    %v3361 = vrot.slane %v3360, 4
    %v3362 = vmax.f32 %v3360, %v3361
    %v3363 = vrot.slane %v3362, 2
    %v3364 = vmax.f32 %v3362, %v3363
    %v3365 = vrot.slane %v3364, 1
    %v3366 = vmax.f32 %v3364, %v3365
    %vm3367 = vcmp.eq.s32.totalorder %v1769, 6
    %vm3368 = vcmp.eq.s32.totalorder %v1770, 6
    %vm3369 = vcmp.eq.s32.totalorder %v1771, 6
    %vm3370 = vcmp.eq.s32.totalorder %v1772, 6
    %vm3371 = vcmp.eq.s32.totalorder %v1773, 6
    %vm3372 = vcmp.eq.s32.totalorder %v1774, 6
    %vm3373 = vcmp.eq.s32.totalorder %v1775, 6
    %vm3374 = vcmp.eq.s32.totalorder %v1776, 6
    %vm3375 = vcmp.eq.s32.totalorder %v1777, 6
    %vm3376 = vcmp.eq.s32.totalorder %v1778, 6
    %vm3377 = vcmp.eq.s32.totalorder %v1779, 6
    %vm3378 = vcmp.eq.s32.totalorder %v1780, 6
    %vm3379 = vcmp.eq.s32.totalorder %v1781, 6
    %vm3380 = vcmp.eq.s32.totalorder %v1782, 6
    %vm3381 = vcmp.eq.s32.totalorder %v1783, 6
    %vm3382 = vcmp.eq.s32.totalorder %v1784, 6
    %vm3383 = vcmp.eq.s32.totalorder %v1785, 6
    %vm3384 = vcmp.eq.s32.totalorder %v1786, 6
    %vm3385 = vcmp.eq.s32.totalorder %v1787, 6
    %vm3386 = vcmp.eq.s32.totalorder %v1788, 6
    %vm3387 = vcmp.eq.s32.totalorder %v1789, 6
    %vm3388 = vcmp.eq.s32.totalorder %v1790, 6
    %vm3389 = vcmp.eq.s32.totalorder %v1791, 6
    %vm3390 = vcmp.eq.s32.totalorder %v1792, 6
    %vm3391 = vcmp.eq.s32.totalorder %v1793, 6
    %vm3392 = vcmp.eq.s32.totalorder %v1794, 6
    %vm3393 = vcmp.eq.s32.totalorder %v1795, 6
    %vm3394 = vcmp.eq.s32.totalorder %v1796, 6
    %vm3395 = vcmp.eq.s32.totalorder %v1797, 6
    %vm3396 = vcmp.eq.s32.totalorder %v1798, 6
    %vm3397 = vcmp.eq.s32.totalorder %v1799, 6
    %vm3398 = vcmp.eq.s32.totalorder %v1800, 6
    %v3399 = vsel %vm3367, 1, 0
    %v3400 = vsel %vm3368, 1, 0
    %v3401 = vsel %vm3369, 1, 0
    %v3402 = vsel %vm3370, 1, 0
    %v3403 = vsel %vm3371, 1, 0
    %v3404 = vsel %vm3372, 1, 0
    %v3405 = vsel %vm3373, 1, 0
    %v3406 = vsel %vm3374, 1, 0
    %v3407 = vsel %vm3375, 1, 0
    %v3408 = vsel %vm3376, 1, 0
    %v3409 = vsel %vm3377, 1, 0
    %v3410 = vsel %vm3378, 1, 0
    %v3411 = vsel %vm3379, 1, 0
    %v3412 = vsel %vm3380, 1, 0
    %v3413 = vsel %vm3381, 1, 0
    %v3414 = vsel %vm3382, 1, 0
    %v3415 = vsel %vm3383, 1, 0
    %v3416 = vsel %vm3384, 1, 0
    %v3417 = vsel %vm3385, 1, 0
    %v3418 = vsel %vm3386, 1, 0
    %v3419 = vsel %vm3387, 1, 0
    %v3420 = vsel %vm3388, 1, 0
    %v3421 = vsel %vm3389, 1, 0
    %v3422 = vsel %vm3390, 1, 0
    %v3423 = vsel %vm3391, 1, 0
    %v3424 = vsel %vm3392, 1, 0
    %v3425 = vsel %vm3393, 1, 0
    %v3426 = vsel %vm3394, 1, 0
    %v3427 = vsel %vm3395, 1, 0
    %v3428 = vsel %vm3396, 1, 0
    %v3429 = vsel %vm3397, 1, 0
    %v3430 = vsel %vm3398, 1, 0
    %3431 = vset.pattern.permute.xlu0 0
    %3432 = vperm.xlu0 %3431, %v3399
    %v3433 = vpop.permute.xlu0 %3432
    %3434 = vset.pattern.permute.xlu0 0
    %3435 = vperm.xlu0 %3434, %v3400
    %v3436 = vpop.permute.xlu0 %3435
    %3437 = vset.pattern.permute.xlu0 0
    %3438 = vperm.xlu0 %3437, %v3401
    %v3439 = vpop.permute.xlu0 %3438
    %3440 = vset.pattern.permute.xlu0 0
    %3441 = vperm.xlu0 %3440, %v3402
    %v3442 = vpop.permute.xlu0 %3441
    %3443 = vset.pattern.permute.xlu0 0
    %3444 = vperm.xlu0 %3443, %v3403
    %v3445 = vpop.permute.xlu0 %3444
    %3446 = vset.pattern.permute.xlu0 0
    %3447 = vperm.xlu0 %3446, %v3404
    %v3448 = vpop.permute.xlu0 %3447
    %3449 = vset.pattern.permute.xlu0 0
    %3450 = vperm.xlu0 %3449, %v3405
    %v3451 = vpop.permute.xlu0 %3450
    %3452 = vset.pattern.permute.xlu0 0
    %3453 = vperm.xlu0 %3452, %v3406
    %v3454 = vpop.permute.xlu0 %3453
    %3455 = vset.pattern.permute.xlu0 0
    %3456 = vperm.xlu0 %3455, %v3407
    %v3457 = vpop.permute.xlu0 %3456
    %3458 = vset.pattern.permute.xlu0 0
    %3459 = vperm.xlu0 %3458, %v3408
    %v3460 = vpop.permute.xlu0 %3459
    %3461 = vset.pattern.permute.xlu0 0
    %3462 = vperm.xlu0 %3461, %v3409
    %v3463 = vpop.permute.xlu0 %3462
    %3464 = vset.pattern.permute.xlu0 0
    %3465 = vperm.xlu0 %3464, %v3410
    %v3466 = vpop.permute.xlu0 %3465
    %3467 = vset.pattern.permute.xlu0 0
    %3468 = vperm.xlu0 %3467, %v3411
    %v3469 = vpop.permute.xlu0 %3468
    %3470 = vset.pattern.permute.xlu0 0
    %3471 = vperm.xlu0 %3470, %v3412
    %v3472 = vpop.permute.xlu0 %3471
    %3473 = vset.pattern.permute.xlu0 0
    %3474 = vperm.xlu0 %3473, %v3413
    %v3475 = vpop.permute.xlu0 %3474
    %3476 = vset.pattern.permute.xlu0 0
    %3477 = vperm.xlu0 %3476, %v3414
    %v3478 = vpop.permute.xlu0 %3477
    %3479 = vset.pattern.permute.xlu0 0
    %3480 = vperm.xlu0 %3479, %v3415
    %v3481 = vpop.permute.xlu0 %3480
    %3482 = vset.pattern.permute.xlu0 0
    %3483 = vperm.xlu0 %3482, %v3416
    %v3484 = vpop.permute.xlu0 %3483
    %3485 = vset.pattern.permute.xlu0 0
    %3486 = vperm.xlu0 %3485, %v3417
    %v3487 = vpop.permute.xlu0 %3486
    %3488 = vset.pattern.permute.xlu0 0
    %3489 = vperm.xlu0 %3488, %v3418
    %v3490 = vpop.permute.xlu0 %3489
    %3491 = vset.pattern.permute.xlu0 0
    %3492 = vperm.xlu0 %3491, %v3419
    %v3493 = vpop.permute.xlu0 %3492
    %3494 = vset.pattern.permute.xlu0 0
    %3495 = vperm.xlu0 %3494, %v3420
    %v3496 = vpop.permute.xlu0 %3495
    %3497 = vset.pattern.permute.xlu0 0
    %3498 = vperm.xlu0 %3497, %v3421
    %v3499 = vpop.permute.xlu0 %3498
    %3500 = vset.pattern.permute.xlu0 0
    %3501 = vperm.xlu0 %3500, %v3422
    %v3502 = vpop.permute.xlu0 %3501
    %3503 = vset.pattern.permute.xlu0 0
    %3504 = vperm.xlu0 %3503, %v3423
    %v3505 = vpop.permute.xlu0 %3504
    %3506 = vset.pattern.permute.xlu0 0
    %3507 = vperm.xlu0 %3506, %v3424
    %v3508 = vpop.permute.xlu0 %3507
    %3509 = vset.pattern.permute.xlu0 0
    %3510 = vperm.xlu0 %3509, %v3425
    %v3511 = vpop.permute.xlu0 %3510
    %3512 = vset.pattern.permute.xlu0 0
    %3513 = vperm.xlu0 %3512, %v3426
    %v3514 = vpop.permute.xlu0 %3513
    %3515 = vset.pattern.permute.xlu0 0
    %3516 = vperm.xlu0 %3515, %v3427
    %v3517 = vpop.permute.xlu0 %3516
    %3518 = vset.pattern.permute.xlu0 0
    %3519 = vperm.xlu0 %3518, %v3428
    %v3520 = vpop.permute.xlu0 %3519
    %3521 = vset.pattern.permute.xlu0 0
    %3522 = vperm.xlu0 %3521, %v3429
    %v3523 = vpop.permute.xlu0 %3522
    %3524 = vset.pattern.permute.xlu0 0
    %3525 = vperm.xlu0 %3524, %v3430
    %v3526 = vpop.permute.xlu0 %3525
    %vm3527 = vcmp.eq.s32.totalorder %v3433, 1
    %vm3528 = vcmp.eq.s32.totalorder %v3436, 1
    %vm3529 = vcmp.eq.s32.totalorder %v3439, 1
    %vm3530 = vcmp.eq.s32.totalorder %v3442, 1
    %vm3531 = vcmp.eq.s32.totalorder %v3445, 1
    %vm3532 = vcmp.eq.s32.totalorder %v3448, 1
    %vm3533 = vcmp.eq.s32.totalorder %v3451, 1
    %vm3534 = vcmp.eq.s32.totalorder %v3454, 1
    %vm3535 = vcmp.eq.s32.totalorder %v3457, 1
    %vm3536 = vcmp.eq.s32.totalorder %v3460, 1
    %vm3537 = vcmp.eq.s32.totalorder %v3463, 1
    %vm3538 = vcmp.eq.s32.totalorder %v3466, 1
    %vm3539 = vcmp.eq.s32.totalorder %v3469, 1
    %vm3540 = vcmp.eq.s32.totalorder %v3472, 1
    %vm3541 = vcmp.eq.s32.totalorder %v3475, 1
    %vm3542 = vcmp.eq.s32.totalorder %v3478, 1
    %vm3543 = vcmp.eq.s32.totalorder %v3481, 1
    %vm3544 = vcmp.eq.s32.totalorder %v3484, 1
    %vm3545 = vcmp.eq.s32.totalorder %v3487, 1
    %vm3546 = vcmp.eq.s32.totalorder %v3490, 1
    %vm3547 = vcmp.eq.s32.totalorder %v3493, 1
    %vm3548 = vcmp.eq.s32.totalorder %v3496, 1
    %vm3549 = vcmp.eq.s32.totalorder %v3499, 1
    %vm3550 = vcmp.eq.s32.totalorder %v3502, 1
    %vm3551 = vcmp.eq.s32.totalorder %v3505, 1
    %vm3552 = vcmp.eq.s32.totalorder %v3508, 1
    %vm3553 = vcmp.eq.s32.totalorder %v3511, 1
    %vm3554 = vcmp.eq.s32.totalorder %v3514, 1
    %vm3555 = vcmp.eq.s32.totalorder %v3517, 1
    %vm3556 = vcmp.eq.s32.totalorder %v3520, 1
    %vm3557 = vcmp.eq.s32.totalorder %v3523, 1
    %vm3558 = vcmp.eq.s32.totalorder %v3526, 1
    %v3559 = vsel %vm3527, %v1737, -inf
    %v3560 = vsel %vm3528, %v1738, -inf
    %v3561 = vsel %vm3529, %v1739, -inf
    %v3562 = vsel %vm3530, %v1740, -inf
    %v3563 = vsel %vm3531, %v1741, -inf
    %v3564 = vsel %vm3532, %v1742, -inf
    %v3565 = vsel %vm3533, %v1743, -inf
    %v3566 = vsel %vm3534, %v1744, -inf
    %v3567 = vsel %vm3535, %v1745, -inf
    %v3568 = vsel %vm3536, %v1746, -inf
    %v3569 = vsel %vm3537, %v1747, -inf
    %v3570 = vsel %vm3538, %v1748, -inf
    %v3571 = vsel %vm3539, %v1749, -inf
    %v3572 = vsel %vm3540, %v1750, -inf
    %v3573 = vsel %vm3541, %v1751, -inf
    %v3574 = vsel %vm3542, %v1752, -inf
    %v3575 = vsel %vm3543, %v1753, -inf
    %v3576 = vsel %vm3544, %v1754, -inf
    %v3577 = vsel %vm3545, %v1755, -inf
    %v3578 = vsel %vm3546, %v1756, -inf
    %v3579 = vsel %vm3547, %v1757, -inf
    %v3580 = vsel %vm3548, %v1758, -inf
    %v3581 = vsel %vm3549, %v1759, -inf
    %v3582 = vsel %vm3550, %v1760, -inf
    %v3583 = vsel %vm3551, %v1761, -inf
    %v3584 = vsel %vm3552, %v1762, -inf
    %v3585 = vsel %vm3553, %v1763, -inf
    %v3586 = vsel %vm3554, %v1764, -inf
    %v3587 = vsel %vm3555, %v1765, -inf
    %v3588 = vsel %vm3556, %v1766, -inf
    %v3589 = vsel %vm3557, %v1767, -inf
    %v3590 = vsel %vm3558, %v1768, -inf
    %v3591 = vmax.f32 %v3559, %v3563
    %v3592 = vmax.f32 %v3560, %v3564
    %v3593 = vmax.f32 %v3561, %v3565
    %v3594 = vmax.f32 %v3562, %v3566
    %v3595 = vmax.f32 %v3591, %v3567
    %v3596 = vmax.f32 %v3592, %v3568
    %v3597 = vmax.f32 %v3593, %v3569
    %v3598 = vmax.f32 %v3594, %v3570
    %v3599 = vmax.f32 %v3595, %v3571
    %v3600 = vmax.f32 %v3596, %v3572
    %v3601 = vmax.f32 %v3597, %v3573
    %v3602 = vmax.f32 %v3598, %v3574
    %v3603 = vmax.f32 %v3599, %v3575
    %v3604 = vmax.f32 %v3600, %v3576
    %v3605 = vmax.f32 %v3601, %v3577
    %v3606 = vmax.f32 %v3602, %v3578
    %v3607 = vmax.f32 %v3603, %v3579
    %v3608 = vmax.f32 %v3604, %v3580
    %v3609 = vmax.f32 %v3605, %v3581
    %v3610 = vmax.f32 %v3606, %v3582
    %v3611 = vmax.f32 %v3607, %v3583
    %v3612 = vmax.f32 %v3608, %v3584
    %v3613 = vmax.f32 %v3609, %v3585
    %v3614 = vmax.f32 %v3610, %v3586
    %v3615 = vmax.f32 %v3611, %v3587
    %v3616 = vmax.f32 %v3612, %v3588
    %v3617 = vmax.f32 %v3613, %v3589
    %v3618 = vmax.f32 %v3614, %v3590
    %v3619 = vmax.f32 %v3615, %v3616
    %v3620 = vmax.f32 %v3617, %v3618
    %v3621 = vmax.f32 %v3619, %v3620
    %v3622 = vrot.slane %v3621, 4
    %v3623 = vmax.f32 %v3621, %v3622
    %v3624 = vrot.slane %v3623, 2
    %v3625 = vmax.f32 %v3623, %v3624
    %v3626 = vrot.slane %v3625, 1
    %v3627 = vmax.f32 %v3625, %v3626
    %vm3628 = vcmp.eq.s32.totalorder %v1769, 7
    %vm3629 = vcmp.eq.s32.totalorder %v1770, 7
    %vm3630 = vcmp.eq.s32.totalorder %v1771, 7
    %vm3631 = vcmp.eq.s32.totalorder %v1772, 7
    %vm3632 = vcmp.eq.s32.totalorder %v1773, 7
    %vm3633 = vcmp.eq.s32.totalorder %v1774, 7
    %vm3634 = vcmp.eq.s32.totalorder %v1775, 7
    %vm3635 = vcmp.eq.s32.totalorder %v1776, 7
    %vm3636 = vcmp.eq.s32.totalorder %v1777, 7
    %vm3637 = vcmp.eq.s32.totalorder %v1778, 7
    %vm3638 = vcmp.eq.s32.totalorder %v1779, 7
    %vm3639 = vcmp.eq.s32.totalorder %v1780, 7
    %vm3640 = vcmp.eq.s32.totalorder %v1781, 7
    %vm3641 = vcmp.eq.s32.totalorder %v1782, 7
    %vm3642 = vcmp.eq.s32.totalorder %v1783, 7
    %vm3643 = vcmp.eq.s32.totalorder %v1784, 7
    %vm3644 = vcmp.eq.s32.totalorder %v1785, 7
    %vm3645 = vcmp.eq.s32.totalorder %v1786, 7
    %vm3646 = vcmp.eq.s32.totalorder %v1787, 7
    %vm3647 = vcmp.eq.s32.totalorder %v1788, 7
    %vm3648 = vcmp.eq.s32.totalorder %v1789, 7
    %vm3649 = vcmp.eq.s32.totalorder %v1790, 7
    %vm3650 = vcmp.eq.s32.totalorder %v1791, 7
    %vm3651 = vcmp.eq.s32.totalorder %v1792, 7
    %vm3652 = vcmp.eq.s32.totalorder %v1793, 7
    %vm3653 = vcmp.eq.s32.totalorder %v1794, 7
    %vm3654 = vcmp.eq.s32.totalorder %v1795, 7
    %vm3655 = vcmp.eq.s32.totalorder %v1796, 7
    %vm3656 = vcmp.eq.s32.totalorder %v1797, 7
    %vm3657 = vcmp.eq.s32.totalorder %v1798, 7
    %vm3658 = vcmp.eq.s32.totalorder %v1799, 7
    %vm3659 = vcmp.eq.s32.totalorder %v1800, 7
    %v3660 = vsel %vm3628, 1, 0
    %v3661 = vsel %vm3629, 1, 0
    %v3662 = vsel %vm3630, 1, 0
    %v3663 = vsel %vm3631, 1, 0
    %v3664 = vsel %vm3632, 1, 0
    %v3665 = vsel %vm3633, 1, 0
    %v3666 = vsel %vm3634, 1, 0
    %v3667 = vsel %vm3635, 1, 0
    %v3668 = vsel %vm3636, 1, 0
    %v3669 = vsel %vm3637, 1, 0
    %v3670 = vsel %vm3638, 1, 0
    %v3671 = vsel %vm3639, 1, 0
    %v3672 = vsel %vm3640, 1, 0
    %v3673 = vsel %vm3641, 1, 0
    %v3674 = vsel %vm3642, 1, 0
    %v3675 = vsel %vm3643, 1, 0
    %v3676 = vsel %vm3644, 1, 0
    %v3677 = vsel %vm3645, 1, 0
    %v3678 = vsel %vm3646, 1, 0
    %v3679 = vsel %vm3647, 1, 0
    %v3680 = vsel %vm3648, 1, 0
    %v3681 = vsel %vm3649, 1, 0
    %v3682 = vsel %vm3650, 1, 0
    %v3683 = vsel %vm3651, 1, 0
    %v3684 = vsel %vm3652, 1, 0
    %v3685 = vsel %vm3653, 1, 0
    %v3686 = vsel %vm3654, 1, 0
    %v3687 = vsel %vm3655, 1, 0
    %v3688 = vsel %vm3656, 1, 0
    %v3689 = vsel %vm3657, 1, 0
    %v3690 = vsel %vm3658, 1, 0
    %v3691 = vsel %vm3659, 1, 0
    %3692 = vset.pattern.permute.xlu0 0
    %3693 = vperm.xlu0 %3692, %v3660
    %v3694 = vpop.permute.xlu0 %3693
    %3695 = vset.pattern.permute.xlu0 0
    %3696 = vperm.xlu0 %3695, %v3661
    %v3697 = vpop.permute.xlu0 %3696
    %3698 = vset.pattern.permute.xlu0 0
    %3699 = vperm.xlu0 %3698, %v3662
    %v3700 = vpop.permute.xlu0 %3699
    %3701 = vset.pattern.permute.xlu0 0
    %3702 = vperm.xlu0 %3701, %v3663
    %v3703 = vpop.permute.xlu0 %3702
    %3704 = vset.pattern.permute.xlu0 0
    %3705 = vperm.xlu0 %3704, %v3664
    %v3706 = vpop.permute.xlu0 %3705
    %3707 = vset.pattern.permute.xlu0 0
    %3708 = vperm.xlu0 %3707, %v3665
    %v3709 = vpop.permute.xlu0 %3708
    %3710 = vset.pattern.permute.xlu0 0
    %3711 = vperm.xlu0 %3710, %v3666
    %v3712 = vpop.permute.xlu0 %3711
    %3713 = vset.pattern.permute.xlu0 0
    %3714 = vperm.xlu0 %3713, %v3667
    %v3715 = vpop.permute.xlu0 %3714
    %3716 = vset.pattern.permute.xlu0 0
    %3717 = vperm.xlu0 %3716, %v3668
    %v3718 = vpop.permute.xlu0 %3717
    %3719 = vset.pattern.permute.xlu0 0
    %3720 = vperm.xlu0 %3719, %v3669
    %v3721 = vpop.permute.xlu0 %3720
    %3722 = vset.pattern.permute.xlu0 0
    %3723 = vperm.xlu0 %3722, %v3670
    %v3724 = vpop.permute.xlu0 %3723
    %3725 = vset.pattern.permute.xlu0 0
    %3726 = vperm.xlu0 %3725, %v3671
    %v3727 = vpop.permute.xlu0 %3726
    %3728 = vset.pattern.permute.xlu0 0
    %3729 = vperm.xlu0 %3728, %v3672
    %v3730 = vpop.permute.xlu0 %3729
    %3731 = vset.pattern.permute.xlu0 0
    %3732 = vperm.xlu0 %3731, %v3673
    %v3733 = vpop.permute.xlu0 %3732
    %3734 = vset.pattern.permute.xlu0 0
    %3735 = vperm.xlu0 %3734, %v3674
    %v3736 = vpop.permute.xlu0 %3735
    %3737 = vset.pattern.permute.xlu0 0
    %3738 = vperm.xlu0 %3737, %v3675
    %v3739 = vpop.permute.xlu0 %3738
    %3740 = vset.pattern.permute.xlu0 0
    %3741 = vperm.xlu0 %3740, %v3676
    %v3742 = vpop.permute.xlu0 %3741
    %3743 = vset.pattern.permute.xlu0 0
    %3744 = vperm.xlu0 %3743, %v3677
    %v3745 = vpop.permute.xlu0 %3744
    %3746 = vset.pattern.permute.xlu0 0
    %3747 = vperm.xlu0 %3746, %v3678
    %v3748 = vpop.permute.xlu0 %3747
    %3749 = vset.pattern.permute.xlu0 0
    %3750 = vperm.xlu0 %3749, %v3679
    %v3751 = vpop.permute.xlu0 %3750
    %3752 = vset.pattern.permute.xlu0 0
    %3753 = vperm.xlu0 %3752, %v3680
    %v3754 = vpop.permute.xlu0 %3753
    %3755 = vset.pattern.permute.xlu0 0
    %3756 = vperm.xlu0 %3755, %v3681
    %v3757 = vpop.permute.xlu0 %3756
    %3758 = vset.pattern.permute.xlu0 0
    %3759 = vperm.xlu0 %3758, %v3682
    %v3760 = vpop.permute.xlu0 %3759
    %3761 = vset.pattern.permute.xlu0 0
    %3762 = vperm.xlu0 %3761, %v3683
    %v3763 = vpop.permute.xlu0 %3762
    %3764 = vset.pattern.permute.xlu0 0
    %3765 = vperm.xlu0 %3764, %v3684
    %v3766 = vpop.permute.xlu0 %3765
    %3767 = vset.pattern.permute.xlu0 0
    %3768 = vperm.xlu0 %3767, %v3685
    %v3769 = vpop.permute.xlu0 %3768
    %3770 = vset.pattern.permute.xlu0 0
    %3771 = vperm.xlu0 %3770, %v3686
    %v3772 = vpop.permute.xlu0 %3771
    %3773 = vset.pattern.permute.xlu0 0
    %3774 = vperm.xlu0 %3773, %v3687
    %v3775 = vpop.permute.xlu0 %3774
    %3776 = vset.pattern.permute.xlu0 0
    %3777 = vperm.xlu0 %3776, %v3688
    %v3778 = vpop.permute.xlu0 %3777
    %3779 = vset.pattern.permute.xlu0 0
    %3780 = vperm.xlu0 %3779, %v3689
    %v3781 = vpop.permute.xlu0 %3780
    %3782 = vset.pattern.permute.xlu0 0
    %3783 = vperm.xlu0 %3782, %v3690
    %v3784 = vpop.permute.xlu0 %3783
    %3785 = vset.pattern.permute.xlu0 0
    %3786 = vperm.xlu0 %3785, %v3691
    %v3787 = vpop.permute.xlu0 %3786
    %vm3788 = vcmp.eq.s32.totalorder %v3694, 1
    %vm3789 = vcmp.eq.s32.totalorder %v3697, 1
    %vm3790 = vcmp.eq.s32.totalorder %v3700, 1
    %vm3791 = vcmp.eq.s32.totalorder %v3703, 1
    %vm3792 = vcmp.eq.s32.totalorder %v3706, 1
    %vm3793 = vcmp.eq.s32.totalorder %v3709, 1
    %vm3794 = vcmp.eq.s32.totalorder %v3712, 1
    %vm3795 = vcmp.eq.s32.totalorder %v3715, 1
    %vm3796 = vcmp.eq.s32.totalorder %v3718, 1
    %vm3797 = vcmp.eq.s32.totalorder %v3721, 1
    %vm3798 = vcmp.eq.s32.totalorder %v3724, 1
    %vm3799 = vcmp.eq.s32.totalorder %v3727, 1
    %vm3800 = vcmp.eq.s32.totalorder %v3730, 1
    %vm3801 = vcmp.eq.s32.totalorder %v3733, 1
    %vm3802 = vcmp.eq.s32.totalorder %v3736, 1
    %vm3803 = vcmp.eq.s32.totalorder %v3739, 1
    %vm3804 = vcmp.eq.s32.totalorder %v3742, 1
    %vm3805 = vcmp.eq.s32.totalorder %v3745, 1
    %vm3806 = vcmp.eq.s32.totalorder %v3748, 1
    %vm3807 = vcmp.eq.s32.totalorder %v3751, 1
    %vm3808 = vcmp.eq.s32.totalorder %v3754, 1
    %vm3809 = vcmp.eq.s32.totalorder %v3757, 1
    %vm3810 = vcmp.eq.s32.totalorder %v3760, 1
    %vm3811 = vcmp.eq.s32.totalorder %v3763, 1
    %vm3812 = vcmp.eq.s32.totalorder %v3766, 1
    %vm3813 = vcmp.eq.s32.totalorder %v3769, 1
    %vm3814 = vcmp.eq.s32.totalorder %v3772, 1
    %vm3815 = vcmp.eq.s32.totalorder %v3775, 1
    %vm3816 = vcmp.eq.s32.totalorder %v3778, 1
    %vm3817 = vcmp.eq.s32.totalorder %v3781, 1
    %vm3818 = vcmp.eq.s32.totalorder %v3784, 1
    %vm3819 = vcmp.eq.s32.totalorder %v3787, 1
    %v3820 = vsel %vm3788, %v1737, -inf
    %v3821 = vsel %vm3789, %v1738, -inf
    %v3822 = vsel %vm3790, %v1739, -inf
    %v3823 = vsel %vm3791, %v1740, -inf
    %v3824 = vsel %vm3792, %v1741, -inf
    %v3825 = vsel %vm3793, %v1742, -inf
    %v3826 = vsel %vm3794, %v1743, -inf
    %v3827 = vsel %vm3795, %v1744, -inf
    %v3828 = vsel %vm3796, %v1745, -inf
    %v3829 = vsel %vm3797, %v1746, -inf
    %v3830 = vsel %vm3798, %v1747, -inf
    %v3831 = vsel %vm3799, %v1748, -inf
    %v3832 = vsel %vm3800, %v1749, -inf
    %v3833 = vsel %vm3801, %v1750, -inf
    %v3834 = vsel %vm3802, %v1751, -inf
    %v3835 = vsel %vm3803, %v1752, -inf
    %v3836 = vsel %vm3804, %v1753, -inf
    %v3837 = vsel %vm3805, %v1754, -inf
    %v3838 = vsel %vm3806, %v1755, -inf
    %v3839 = vsel %vm3807, %v1756, -inf
    %v3840 = vsel %vm3808, %v1757, -inf
    %v3841 = vsel %vm3809, %v1758, -inf
    %v3842 = vsel %vm3810, %v1759, -inf
    %v3843 = vsel %vm3811, %v1760, -inf
    %v3844 = vsel %vm3812, %v1761, -inf
    %v3845 = vsel %vm3813, %v1762, -inf
    %v3846 = vsel %vm3814, %v1763, -inf
    %v3847 = vsel %vm3815, %v1764, -inf
    %v3848 = vsel %vm3816, %v1765, -inf
    %v3849 = vsel %vm3817, %v1766, -inf
    %v3850 = vsel %vm3818, %v1767, -inf
    %v3851 = vsel %vm3819, %v1768, -inf
    %v3852 = vmax.f32 %v3820, %v3824
    %v3853 = vmax.f32 %v3821, %v3825
    %v3854 = vmax.f32 %v3822, %v3826
    %v3855 = vmax.f32 %v3823, %v3827
    %v3856 = vmax.f32 %v3852, %v3828
    %v3857 = vmax.f32 %v3853, %v3829
    %v3858 = vmax.f32 %v3854, %v3830
    %v3859 = vmax.f32 %v3855, %v3831
    %v3860 = vmax.f32 %v3856, %v3832
    %v3861 = vmax.f32 %v3857, %v3833
    %v3862 = vmax.f32 %v3858, %v3834
    %v3863 = vmax.f32 %v3859, %v3835
    %v3864 = vmax.f32 %v3860, %v3836
    %v3865 = vmax.f32 %v3861, %v3837
    %v3866 = vmax.f32 %v3862, %v3838
    %v3867 = vmax.f32 %v3863, %v3839
    %v3868 = vmax.f32 %v3864, %v3840
    %v3869 = vmax.f32 %v3865, %v3841
    %v3870 = vmax.f32 %v3866, %v3842
    %v3871 = vmax.f32 %v3867, %v3843
    %v3872 = vmax.f32 %v3868, %v3844
    %v3873 = vmax.f32 %v3869, %v3845
    %v3874 = vmax.f32 %v3870, %v3846
    %v3875 = vmax.f32 %v3871, %v3847
    %v3876 = vmax.f32 %v3872, %v3848
    %v3877 = vmax.f32 %v3873, %v3849
    %v3878 = vmax.f32 %v3874, %v3850
    %v3879 = vmax.f32 %v3875, %v3851
    %v3880 = vmax.f32 %v3876, %v3877
    %v3881 = vmax.f32 %v3878, %v3879
    %v3882 = vmax.f32 %v3880, %v3881
    %v3883 = vrot.slane %v3882, 4
    %v3884 = vmax.f32 %v3882, %v3883
    %v3885 = vrot.slane %v3884, 2
    %v3886 = vmax.f32 %v3884, %v3885
    %v3887 = vrot.slane %v3886, 1
    %v3888 = vmax.f32 %v3886, %v3887
    %vm3889 = vcmask 1040384
    %v3890 = vsel %vm3889, %v2061, %v2322
    %vm3891 = vcmask 1041408
    %v3892 = vsel %vm3891, %v3890, %v2583
    %vm3893 = vcmask 1042432
    %v3894 = vsel %vm3893, %v3892, %v2844
    %vm3895 = vcmask 1043456
    %v3896 = vsel %vm3895, %v3894, %v3105
    %vm3897 = vcmask 1044480
    %v3898 = vsel %vm3897, %v3896, %v3366
    %vm3899 = vcmask 1045504
    %v3900 = vsel %vm3899, %v3898, %v3627
    %vm3901 = vcmask 1046528
    %v3902 = vsel %vm3901, %v3900, %v3888
    %v3903 = vld [vmem:[#allocation2] sm:$0xff]
    %v3904 = vmax.f32 %v3903, %v3902
    %3905 = vst [vmem:[#allocation2] sm:$0xff] %v3904
    // Predicated region
    $region38: #{tpu_custom_call.1} parent=1 // pred_check
      %p3906 = pneg %p30
    $region39: #{tpu_custom_call.1} parent=1 // pred_check_branch
      %3908 = sbr.rel (%p3906) target = $region41
    $region40: #{tpu_custom_call.1} parent=1 // pred_region
      %v3909 = vld [vmem:[#allocation2] sm:$0xff]
      %vm3910 = vcmp.eq.f32.partialorder %v3909, -inf
      %v3911 = vsel %vm3910, 0.0, %v3909
      %3912 = vst [vmem:[#allocation2] sm:$0xff] %v3911
    $region41: #{tpu_custom_call.1} parent=1 // pred_fallthru
      _
    // Predicated region
    $region42: #{tpu_custom_call.1} parent=1 // pred_check
      _
    $region43: #{tpu_custom_call.1} parent=1 // pred_check_branch
      %3914 = sbr.rel (0) target = $region45
    $region44: #{tpu_custom_call.1} parent=1 // pred_region
      %s3916 = ssub.s32 128, 128
      %3917 = vsyncadd [#allocation3], %s3916
      %s3919 = sshll.u32 [#allocation2], 4
      %s3920 = int_to_ptr.vmem [resolvable:$true] %s3919
      %3922 = dma.vmem_to_hbm [thread:$0]  %s3920, 128, %s8, [#allocation3]
    $region45: #{tpu_custom_call.1} parent=1 // pred_fallthru
      _
    // Predicated region
    $region46: #{tpu_custom_call.1} parent=1 // pred_check
      _
    $region47: #{tpu_custom_call.1} parent=1 // pred_check_branch
      %3924 = sbr.rel (0) target = $region49
    $region48: #{tpu_custom_call.1} parent=1 // pred_region
      %3925 = dma.done [#allocation3], 128
    $region49: #{tpu_custom_call.1} parent=1 // pred_fallthru
      _
    %3926 = vsyncpa [#allocation3], 1

</llo_original>
